<compile_context>
chip_gen: v7x
topology: tpu7x:2x2x1
jax: 0.10.0
libtpu: 0.0.40
codegen_flags: <defaults>
</compile_context>

<pallas_src>
import jax
import jax.numpy as jnp
from jax.experimental import pallas as pl
from jax.experimental.pallas import tpu as pltpu

POS = 3            # xyz input coordinates
HIDDEN = 256
DEPTH = 8
SKIPS = (4,)
PPAD = 8           # padded position-feature width (sublane aligned)
OUT_DIM = 4        # rgb(3) + alpha(1)
OUT_PAD = 8        # stored output columns: [rgb | alpha | zeros]
HEAD_PAD = 128     # padded N of the output-head matmul (full MXU N-pass anyway)


def _round_up(x, m):
    return ((x + m - 1) // m) * m


def _cdiv(a, b):
    return -(-a // b)


def _choose_tile(batch, tile_b, align):
    """Pick (tile_rows, padded_batch) such that:
       - tile rows are a multiple of `align` (256 for v6e/v7x, 128 for v5e),
       - tiles are balanced -> padding beyond alignment is bounded,
       - the grid has >= 2 steps whenever the batch allows it (v7x megacore).
    """
    b_aligned = _round_up(max(batch, 1), align)
    total = b_aligned // align                  # batch measured in align-row chunks
    units = max(1, min(tile_b // align, total))
    steps = _cdiv(total, units)
    if steps == 1 and total >= 2:
        steps = 2                               # keep both v7x TensorCores busy
    units = _cdiv(total, steps)                 # balance tiles -> minimal padding
    tb = units * align
    return tb, steps * tb


def _nerf_kernel(x_ref, w_in_ref, w_hid_ref, b_ref, w_out_ref, b_out_ref, out_ref):
    """One batch tile of the NeRF MLP.

    x_ref     : (TB, PPAD)                 f32   positions (cols >= POS are zero)
    w_in_ref  : (2, PPAD, HIDDEN)          f32   [0]=input layer, [1]=skip x-path
    w_hid_ref : (DEPTH-1, HIDDEN, HIDDEN)  bf16  per-layer weight acting on h
    b_ref     : (DEPTH, HIDDEN)            f32   per-layer bias
    w_out_ref : (HIDDEN, HEAD_PAD)         bf16  [rgb | alpha | zeros] columns
    b_out_ref : (1, OUT_PAD)               f32
    out_ref   : (TB, OUT_PAD)              f32
    """
    x = x_ref[...]                                            # (TB, PPAD) f32

    def pos_matmul(w_rows):
        # (TB, POS) @ (POS, HIDDEN) with K=POS=3: three broadcast-FMAs on the
        # VPU instead of a K-padded MXU pass (which would cost like K=128).
        acc = x[:, 0:1] * w_rows[0:1, :]
        for k in range(1, POS):
            acc = acc + x[:, k:k + 1] * w_rows[k:k + 1, :]
        return acc                                            # (TB, HIDDEN) f32

    # ---- input layer + relu (VPU) ----
    acc = pos_matmul(w_in_ref[0]) + b_ref[0:1, :]
    h = jnp.maximum(acc, 0.0).astype(jnp.bfloat16)

    # ---- hidden layers 1 .. DEPTH-1 (MXU) ----
    for i in range(1, DEPTH):
        acc = jnp.dot(h, w_hid_ref[i - 1], preferred_element_type=jnp.float32)
        if i in SKIPS:
            # cat([x, h]) @ W == x @ W[:POS] (VPU) + h @ W[POS:] (MXU above)
            acc = acc + pos_matmul(w_in_ref[1])
        acc = acc + b_ref[i:i + 1, :]
        h = jnp.maximum(acc, 0.0).astype(jnp.bfloat16)

    # ---- output head: wide (N=128) MXU matmul, slim (8-column) store ----
    out = jnp.dot(h, w_out_ref[...], preferred_element_type=jnp.float32)
    out_ref[...] = (out[:, :OUT_PAD] + b_out_ref[...]).astype(out_ref.dtype)


def make_params(key, pos=POS, hidden=HIDDEN, depth=DEPTH, skips=SKIPS):
    """Deterministic synthetic parameters in the packed kernel layout."""
    assert pos <= PPAD
    keys = jax.random.split(key, 2 * (depth + 2))
    kit = iter(keys)

    def lin(fan_in, fan_out):
        kw, kb = next(kit), next(kit)
        bound = float(fan_in) ** -0.5
        w = jax.random.uniform(kw, (fan_in, fan_out), jnp.float32, -bound, bound)
        b = jax.random.uniform(kb, (fan_out,), jnp.float32, -bound, bound)
        return w, b

    w_in = jnp.zeros((2, PPAD, hidden), jnp.float32)
    w_hid, b_all = [], []

    # input layer (pos -> hidden)
    w0, b0 = lin(pos, hidden)
    w_in = w_in.at[0, :pos, :].set(w0)
    b_all.append(b0)

    # intermediate layers 1 .. depth-1
    for i in range(1, depth):
        if i in skips:
            w, b = lin(hidden + pos, hidden)        # PyTorch layer sees cat([x, h])
            w_in = w_in.at[1, :pos, :].set(w[:pos])  # x rows
            w_hid.append(w[pos:])                    # h rows
        else:
            w, b = lin(hidden, hidden)
            w_hid.append(w)
        b_all.append(b)

    # fused output head: columns [rgb(3) | alpha(1) | zeros]
    w_rgb, b_rgb = lin(hidden, 3)
    w_a, b_a = lin(hidden, 1)
    w_out = jnp.zeros((hidden, HEAD_PAD), jnp.float32)
    w_out = w_out.at[:, :3].set(w_rgb).at[:, 3:4].set(w_a)
    b_out = jnp.zeros((1, OUT_PAD), jnp.float32)
    b_out = b_out.at[0, :3].set(b_rgb).at[0, 3].set(b_a[0])

    return (w_in,                                         # (2, PPAD, H)   f32
            jnp.stack(w_hid).astype(jnp.bfloat16),        # (depth-1, H, H) bf16
            jnp.stack(b_all),                             # (depth, H)     f32
            w_out.astype(jnp.bfloat16),                   # (H, HEAD_PAD)  bf16
            b_out)                                        # (1, OUT_PAD)   f32


def _cost_estimate(b_pad, params):
    w_in, w_hid, b_all, w_out, b_out = params
    flops = 2 * b_pad * POS * HIDDEN * 2                        # VPU: layer 0 + skip x-path
    flops += 2 * b_pad * HIDDEN * HIDDEN * int(w_hid.shape[0])  # MXU hidden layers
    flops += 2 * b_pad * HIDDEN * HEAD_PAD                      # MXU output head
    weight_bytes = sum(int(p.size) * p.dtype.itemsize for p in params)
    bytes_accessed = weight_bytes + b_pad * PPAD * 4 + b_pad * OUT_PAD * 4
    return pl.CostEstimate(flops=flops, transcendentals=0,
                           bytes_accessed=bytes_accessed)


def nerf_forward(x, params, *, tile_b=2048, tile_align=256):
    """x: [B, POS] f32  ->  [B, 4] f32.

    Defaults target v6e/v7x (256-aligned M tiles, tile_b=2048).  On v5e use
    tile_align=128 and tile_b<=1024 (16 MiB default scoped VMEM), or raise
    vmem_limit_bytes via pltpu.CompilerParams.
    """
    B = x.shape[0]
    tb, b_pad = _choose_tile(B, tile_b, tile_align)

    # zero-pad positions: batch -> b_pad rows, features -> PPAD lanes, kept f32.
    # Padding rows produce bias-driven outputs that are sliced away below.
    x_pad = jnp.zeros((b_pad, PPAD), jnp.float32)
    x_pad = x_pad.at[:B, :POS].set(x.astype(jnp.float32))

    grid = (b_pad // tb,)
    in_specs = [pl.BlockSpec((tb, PPAD), lambda i: (i, 0))]
    for p in params:  # grid-invariant packed parameters: constant block index
        in_specs.append(pl.BlockSpec(p.shape, lambda i, nd=p.ndim: (0,) * nd))

    out_pad = pl.pallas_call(
        _nerf_kernel,
        out_shape=jax.ShapeDtypeStruct((b_pad, OUT_PAD), jnp.float32),
        grid_spec=pltpu.PrefetchScalarGridSpec(
            num_scalar_prefetch=0,
            grid=grid,
            in_specs=in_specs,
            out_specs=pl.BlockSpec((tb, OUT_PAD), lambda i: (i, 0)),
        ),
        compiler_params=pltpu.CompilerParams(
            dimension_semantics=("parallel",),
        ),
        cost_estimate=_cost_estimate(b_pad, params),
    )(x_pad, *params)

    return out_pad[:B, :OUT_DIM]


def nerf_reference(x, params):
    """Pure-JAX reference mirroring the kernel's dtypes / accumulation order."""
    w_in, w_hid, b_all, w_out, b_out = params
    xf = x.astype(jnp.float32)

    def pos_matmul(w_rows):
        acc = xf[:, 0:1] * w_rows[0:1, :]
        for k in range(1, POS):
            acc = acc + xf[:, k:k + 1] * w_rows[k:k + 1, :]
        return acc

    h = jnp.maximum(pos_matmul(w_in[0]) + b_all[0:1, :], 0.0).astype(jnp.bfloat16)
    for i in range(1, DEPTH):
        acc = jnp.dot(h, w_hid[i - 1], preferred_element_type=jnp.float32)
        if i in SKIPS:
            acc = acc + pos_matmul(w_in[1])
        acc = acc + b_all[i:i + 1, :]
        h = jnp.maximum(acc, 0.0).astype(jnp.bfloat16)
    out = jnp.dot(h, w_out, preferred_element_type=jnp.float32)[:, :OUT_PAD] + b_out
    return out[:, :OUT_DIM]


if __name__ == "__main__":
    key = jax.random.PRNGKey(0)
    k_param, k_x = jax.random.split(key)

    params = make_params(k_param)

    batch = 500   # not tile-aligned: exercises padding, multi-step grid, row slice
    x = jax.random.normal(k_x, (batch, POS), jnp.float32)

    out = jax.block_until_ready(nerf_forward(x, params))

    ref = nerf_reference(x, params)
    assert out.shape == (batch, OUT_DIM)
    assert jnp.allclose(out, ref, atol=2e-3, rtol=2e-3), "mismatch vs reference"

    print("KERNEL_OK")
</pallas_src>

<mosaic_0001>
module attributes {stable_mosaic.version = 11 : i64} {
  func.func @_nerf_kernel(%arg0: i32, %arg1: memref<256x8xf32, #tpu.memory_space<vmem>>, %arg2: memref<2x8x256xf32, #tpu.memory_space<vmem>>, %arg3: memref<7x256x256xbf16, #tpu.memory_space<vmem>>, %arg4: memref<8x256xf32, #tpu.memory_space<vmem>>, %arg5: memref<256x128xbf16, #tpu.memory_space<vmem>>, %arg6: memref<1x8xf32, #tpu.memory_space<vmem>>, %arg7: memref<256x8xf32, #tpu.memory_space<vmem>>) attributes {dimension_semantics = [#tpu.dimension_semantics<parallel>], iteration_bounds = array<i64: 2>, scalar_prefetch = 0 : i64, scratch_operands = 0 : i64, tpu.core_type = #tpu.core_type<tc>, window_params = [{transform_indices = @transform_0, window_bounds = array<i64: 256, 8>}, {pipeline_mode = #tpu.pipeline_mode<synchronous>, transform_indices = @transform_1, window_bounds = array<i64: 2, 8, 256>}, {pipeline_mode = #tpu.pipeline_mode<synchronous>, transform_indices = @transform_2, window_bounds = array<i64: 7, 256, 256>}, {pipeline_mode = #tpu.pipeline_mode<synchronous>, transform_indices = @transform_3, window_bounds = array<i64: 8, 256>}, {pipeline_mode = #tpu.pipeline_mode<synchronous>, transform_indices = @transform_4, window_bounds = array<i64: 256, 128>}, {pipeline_mode = #tpu.pipeline_mode<synchronous>, transform_indices = @transform_5, window_bounds = array<i64: 1, 8>}, {transform_indices = @transform_6, window_bounds = array<i64: 256, 8>}]} {
    %c0 = arith.constant 0 : index
    %c0_0 = arith.constant 0 : index
    %0 = vector.load %arg1[%c0, %c0_0] : memref<256x8xf32, #tpu.memory_space<vmem>>, vector<256x8xf32>
    %c0_1 = arith.constant 0 : index
    %c0_2 = arith.constant 0 : index
    %c0_3 = arith.constant 0 : index
    %1 = vector.load %arg2[%c0_1, %c0_2, %c0_3] : memref<2x8x256xf32, #tpu.memory_space<vmem>>, vector<1x8x256xf32>
    %2 = vector.shape_cast %1 : vector<1x8x256xf32> to vector<8x256xf32>
    %3 = vector.extract_strided_slice %0 {offsets = [0, 0], sizes = [256, 1], strides = [1, 1]} : vector<256x8xf32> to vector<256x1xf32>
    %4 = vector.extract_strided_slice %2 {offsets = [0, 0], sizes = [1, 256], strides = [1, 1]} : vector<8x256xf32> to vector<1x256xf32>
    %5 = vector.broadcast %3 : vector<256x1xf32> to vector<256x256xf32>
    %6 = vector.broadcast %4 : vector<1x256xf32> to vector<256x256xf32>
    %7 = arith.mulf %5, %6 : vector<256x256xf32>
    %8 = vector.extract_strided_slice %0 {offsets = [0, 1], sizes = [256, 1], strides = [1, 1]} : vector<256x8xf32> to vector<256x1xf32>
    %9 = vector.extract_strided_slice %2 {offsets = [1, 0], sizes = [1, 256], strides = [1, 1]} : vector<8x256xf32> to vector<1x256xf32>
    %10 = vector.broadcast %8 : vector<256x1xf32> to vector<256x256xf32>
    %11 = vector.broadcast %9 : vector<1x256xf32> to vector<256x256xf32>
    %12 = arith.mulf %10, %11 : vector<256x256xf32>
    %13 = arith.addf %7, %12 : vector<256x256xf32>
    %14 = vector.extract_strided_slice %0 {offsets = [0, 2], sizes = [256, 1], strides = [1, 1]} : vector<256x8xf32> to vector<256x1xf32>
    %15 = vector.extract_strided_slice %2 {offsets = [2, 0], sizes = [1, 256], strides = [1, 1]} : vector<8x256xf32> to vector<1x256xf32>
    %16 = vector.broadcast %14 : vector<256x1xf32> to vector<256x256xf32>
    %17 = vector.broadcast %15 : vector<1x256xf32> to vector<256x256xf32>
    %18 = arith.mulf %16, %17 : vector<256x256xf32>
    %19 = arith.addf %13, %18 : vector<256x256xf32>
    %c0_4 = arith.constant 0 : index
    %c0_5 = arith.constant 0 : index
    %20 = vector.load %arg4[%c0_4, %c0_5] : memref<8x256xf32, #tpu.memory_space<vmem>>, vector<1x256xf32>
    %21 = vector.broadcast %20 : vector<1x256xf32> to vector<256x256xf32>
    %22 = arith.addf %19, %21 : vector<256x256xf32>
    %cst = arith.constant 0.000000e+00 : f32
    %23 = vector.broadcast %cst : f32 to vector<256x256xf32>
    %24 = arith.maximumf %22, %23 : vector<256x256xf32>
    %25 = arith.truncf %24 : vector<256x256xf32> to vector<256x256xbf16>
    %c0_6 = arith.constant 0 : index
    %c0_7 = arith.constant 0 : index
    %c0_8 = arith.constant 0 : index
    %26 = vector.load %arg3[%c0_6, %c0_7, %c0_8] : memref<7x256x256xbf16, #tpu.memory_space<vmem>>, vector<1x256x256xbf16>
    %27 = vector.shape_cast %26 : vector<1x256x256xbf16> to vector<256x256xbf16>
    %cst_9 = arith.constant dense<0.000000e+00> : vector<256x256xf32>
    %28 = tpu.matmul %25, %27, %cst_9 {dimension_numbers = #tpu.dot_dimension_numbers<[1], [0], [0], [1], [0, 0, 1, 1], [], []>} : vector<256x256xbf16>, vector<256x256xbf16>, vector<256x256xf32> -> vector<256x256xf32>
    %c1 = arith.constant 1 : index
    %c0_10 = arith.constant 0 : index
    %29 = vector.load %arg4[%c1, %c0_10] : memref<8x256xf32, #tpu.memory_space<vmem>>, vector<1x256xf32>
    %30 = vector.broadcast %29 : vector<1x256xf32> to vector<256x256xf32>
    %31 = arith.addf %28, %30 : vector<256x256xf32>
    %cst_11 = arith.constant 0.000000e+00 : f32
    %32 = vector.broadcast %cst_11 : f32 to vector<256x256xf32>
    %33 = arith.maximumf %31, %32 : vector<256x256xf32>
    %34 = arith.truncf %33 : vector<256x256xf32> to vector<256x256xbf16>
    %c1_12 = arith.constant 1 : index
    %c0_13 = arith.constant 0 : index
    %c0_14 = arith.constant 0 : index
    %35 = vector.load %arg3[%c1_12, %c0_13, %c0_14] : memref<7x256x256xbf16, #tpu.memory_space<vmem>>, vector<1x256x256xbf16>
    %36 = vector.shape_cast %35 : vector<1x256x256xbf16> to vector<256x256xbf16>
    %cst_15 = arith.constant dense<0.000000e+00> : vector<256x256xf32>
    %37 = tpu.matmul %34, %36, %cst_15 {dimension_numbers = #tpu.dot_dimension_numbers<[1], [0], [0], [1], [0, 0, 1, 1], [], []>} : vector<256x256xbf16>, vector<256x256xbf16>, vector<256x256xf32> -> vector<256x256xf32>
    %c2 = arith.constant 2 : index
    %c0_16 = arith.constant 0 : index
    %38 = vector.load %arg4[%c2, %c0_16] : memref<8x256xf32, #tpu.memory_space<vmem>>, vector<1x256xf32>
    %39 = vector.broadcast %38 : vector<1x256xf32> to vector<256x256xf32>
    %40 = arith.addf %37, %39 : vector<256x256xf32>
    %cst_17 = arith.constant 0.000000e+00 : f32
    %41 = vector.broadcast %cst_17 : f32 to vector<256x256xf32>
    %42 = arith.maximumf %40, %41 : vector<256x256xf32>
    %43 = arith.truncf %42 : vector<256x256xf32> to vector<256x256xbf16>
    %c2_18 = arith.constant 2 : index
    %c0_19 = arith.constant 0 : index
    %c0_20 = arith.constant 0 : index
    %44 = vector.load %arg3[%c2_18, %c0_19, %c0_20] : memref<7x256x256xbf16, #tpu.memory_space<vmem>>, vector<1x256x256xbf16>
    %45 = vector.shape_cast %44 : vector<1x256x256xbf16> to vector<256x256xbf16>
    %cst_21 = arith.constant dense<0.000000e+00> : vector<256x256xf32>
    %46 = tpu.matmul %43, %45, %cst_21 {dimension_numbers = #tpu.dot_dimension_numbers<[1], [0], [0], [1], [0, 0, 1, 1], [], []>} : vector<256x256xbf16>, vector<256x256xbf16>, vector<256x256xf32> -> vector<256x256xf32>
    %c3 = arith.constant 3 : index
    %c0_22 = arith.constant 0 : index
    %47 = vector.load %arg4[%c3, %c0_22] : memref<8x256xf32, #tpu.memory_space<vmem>>, vector<1x256xf32>
    %48 = vector.broadcast %47 : vector<1x256xf32> to vector<256x256xf32>
    %49 = arith.addf %46, %48 : vector<256x256xf32>
    %cst_23 = arith.constant 0.000000e+00 : f32
    %50 = vector.broadcast %cst_23 : f32 to vector<256x256xf32>
    %51 = arith.maximumf %49, %50 : vector<256x256xf32>
    %52 = arith.truncf %51 : vector<256x256xf32> to vector<256x256xbf16>
    %c3_24 = arith.constant 3 : index
    %c0_25 = arith.constant 0 : index
    %c0_26 = arith.constant 0 : index
    %53 = vector.load %arg3[%c3_24, %c0_25, %c0_26] : memref<7x256x256xbf16, #tpu.memory_space<vmem>>, vector<1x256x256xbf16>
    %54 = vector.shape_cast %53 : vector<1x256x256xbf16> to vector<256x256xbf16>
    %cst_27 = arith.constant dense<0.000000e+00> : vector<256x256xf32>
    %55 = tpu.matmul %52, %54, %cst_27 {dimension_numbers = #tpu.dot_dimension_numbers<[1], [0], [0], [1], [0, 0, 1, 1], [], []>} : vector<256x256xbf16>, vector<256x256xbf16>, vector<256x256xf32> -> vector<256x256xf32>
    %c1_28 = arith.constant 1 : index
    %c0_29 = arith.constant 0 : index
    %c0_30 = arith.constant 0 : index
    %56 = vector.load %arg2[%c1_28, %c0_29, %c0_30] : memref<2x8x256xf32, #tpu.memory_space<vmem>>, vector<1x8x256xf32>
    %57 = vector.shape_cast %56 : vector<1x8x256xf32> to vector<8x256xf32>
    %58 = vector.extract_strided_slice %0 {offsets = [0, 0], sizes = [256, 1], strides = [1, 1]} : vector<256x8xf32> to vector<256x1xf32>
    %59 = vector.extract_strided_slice %57 {offsets = [0, 0], sizes = [1, 256], strides = [1, 1]} : vector<8x256xf32> to vector<1x256xf32>
    %60 = vector.broadcast %58 : vector<256x1xf32> to vector<256x256xf32>
    %61 = vector.broadcast %59 : vector<1x256xf32> to vector<256x256xf32>
    %62 = arith.mulf %60, %61 : vector<256x256xf32>
    %63 = vector.extract_strided_slice %0 {offsets = [0, 1], sizes = [256, 1], strides = [1, 1]} : vector<256x8xf32> to vector<256x1xf32>
    %64 = vector.extract_strided_slice %57 {offsets = [1, 0], sizes = [1, 256], strides = [1, 1]} : vector<8x256xf32> to vector<1x256xf32>
    %65 = vector.broadcast %63 : vector<256x1xf32> to vector<256x256xf32>
    %66 = vector.broadcast %64 : vector<1x256xf32> to vector<256x256xf32>
    %67 = arith.mulf %65, %66 : vector<256x256xf32>
    %68 = arith.addf %62, %67 : vector<256x256xf32>
    %69 = vector.extract_strided_slice %0 {offsets = [0, 2], sizes = [256, 1], strides = [1, 1]} : vector<256x8xf32> to vector<256x1xf32>
    %70 = vector.extract_strided_slice %57 {offsets = [2, 0], sizes = [1, 256], strides = [1, 1]} : vector<8x256xf32> to vector<1x256xf32>
    %71 = vector.broadcast %69 : vector<256x1xf32> to vector<256x256xf32>
    %72 = vector.broadcast %70 : vector<1x256xf32> to vector<256x256xf32>
    %73 = arith.mulf %71, %72 : vector<256x256xf32>
    %74 = arith.addf %68, %73 : vector<256x256xf32>
    %75 = arith.addf %55, %74 : vector<256x256xf32>
    %c4 = arith.constant 4 : index
    %c0_31 = arith.constant 0 : index
    %76 = vector.load %arg4[%c4, %c0_31] : memref<8x256xf32, #tpu.memory_space<vmem>>, vector<1x256xf32>
    %77 = vector.broadcast %76 : vector<1x256xf32> to vector<256x256xf32>
    %78 = arith.addf %75, %77 : vector<256x256xf32>
    %cst_32 = arith.constant 0.000000e+00 : f32
    %79 = vector.broadcast %cst_32 : f32 to vector<256x256xf32>
    %80 = arith.maximumf %78, %79 : vector<256x256xf32>
    %81 = arith.truncf %80 : vector<256x256xf32> to vector<256x256xbf16>
    %c4_33 = arith.constant 4 : index
    %c0_34 = arith.constant 0 : index
    %c0_35 = arith.constant 0 : index
    %82 = vector.load %arg3[%c4_33, %c0_34, %c0_35] : memref<7x256x256xbf16, #tpu.memory_space<vmem>>, vector<1x256x256xbf16>
    %83 = vector.shape_cast %82 : vector<1x256x256xbf16> to vector<256x256xbf16>
    %cst_36 = arith.constant dense<0.000000e+00> : vector<256x256xf32>
    %84 = tpu.matmul %81, %83, %cst_36 {dimension_numbers = #tpu.dot_dimension_numbers<[1], [0], [0], [1], [0, 0, 1, 1], [], []>} : vector<256x256xbf16>, vector<256x256xbf16>, vector<256x256xf32> -> vector<256x256xf32>
    %c5 = arith.constant 5 : index
    %c0_37 = arith.constant 0 : index
    %85 = vector.load %arg4[%c5, %c0_37] : memref<8x256xf32, #tpu.memory_space<vmem>>, vector<1x256xf32>
    %86 = vector.broadcast %85 : vector<1x256xf32> to vector<256x256xf32>
    %87 = arith.addf %84, %86 : vector<256x256xf32>
    %cst_38 = arith.constant 0.000000e+00 : f32
    %88 = vector.broadcast %cst_38 : f32 to vector<256x256xf32>
    %89 = arith.maximumf %87, %88 : vector<256x256xf32>
    %90 = arith.truncf %89 : vector<256x256xf32> to vector<256x256xbf16>
    %c5_39 = arith.constant 5 : index
    %c0_40 = arith.constant 0 : index
    %c0_41 = arith.constant 0 : index
    %91 = vector.load %arg3[%c5_39, %c0_40, %c0_41] : memref<7x256x256xbf16, #tpu.memory_space<vmem>>, vector<1x256x256xbf16>
    %92 = vector.shape_cast %91 : vector<1x256x256xbf16> to vector<256x256xbf16>
    %cst_42 = arith.constant dense<0.000000e+00> : vector<256x256xf32>
    %93 = tpu.matmul %90, %92, %cst_42 {dimension_numbers = #tpu.dot_dimension_numbers<[1], [0], [0], [1], [0, 0, 1, 1], [], []>} : vector<256x256xbf16>, vector<256x256xbf16>, vector<256x256xf32> -> vector<256x256xf32>
    %c6 = arith.constant 6 : index
    %c0_43 = arith.constant 0 : index
    %94 = vector.load %arg4[%c6, %c0_43] : memref<8x256xf32, #tpu.memory_space<vmem>>, vector<1x256xf32>
    %95 = vector.broadcast %94 : vector<1x256xf32> to vector<256x256xf32>
    %96 = arith.addf %93, %95 : vector<256x256xf32>
    %cst_44 = arith.constant 0.000000e+00 : f32
    %97 = vector.broadcast %cst_44 : f32 to vector<256x256xf32>
    %98 = arith.maximumf %96, %97 : vector<256x256xf32>
    %99 = arith.truncf %98 : vector<256x256xf32> to vector<256x256xbf16>
    %c6_45 = arith.constant 6 : index
    %c0_46 = arith.constant 0 : index
    %c0_47 = arith.constant 0 : index
    %100 = vector.load %arg3[%c6_45, %c0_46, %c0_47] : memref<7x256x256xbf16, #tpu.memory_space<vmem>>, vector<1x256x256xbf16>
    %101 = vector.shape_cast %100 : vector<1x256x256xbf16> to vector<256x256xbf16>
    %cst_48 = arith.constant dense<0.000000e+00> : vector<256x256xf32>
    %102 = tpu.matmul %99, %101, %cst_48 {dimension_numbers = #tpu.dot_dimension_numbers<[1], [0], [0], [1], [0, 0, 1, 1], [], []>} : vector<256x256xbf16>, vector<256x256xbf16>, vector<256x256xf32> -> vector<256x256xf32>
    %c7 = arith.constant 7 : index
    %c0_49 = arith.constant 0 : index
    %103 = vector.load %arg4[%c7, %c0_49] : memref<8x256xf32, #tpu.memory_space<vmem>>, vector<1x256xf32>
    %104 = vector.broadcast %103 : vector<1x256xf32> to vector<256x256xf32>
    %105 = arith.addf %102, %104 : vector<256x256xf32>
    %cst_50 = arith.constant 0.000000e+00 : f32
    %106 = vector.broadcast %cst_50 : f32 to vector<256x256xf32>
    %107 = arith.maximumf %105, %106 : vector<256x256xf32>
    %108 = arith.truncf %107 : vector<256x256xf32> to vector<256x256xbf16>
    %c0_51 = arith.constant 0 : index
    %c0_52 = arith.constant 0 : index
    %109 = vector.load %arg5[%c0_51, %c0_52] : memref<256x128xbf16, #tpu.memory_space<vmem>>, vector<256x128xbf16>
    %cst_53 = arith.constant dense<0.000000e+00> : vector<256x128xf32>
    %110 = tpu.matmul %108, %109, %cst_53 {dimension_numbers = #tpu.dot_dimension_numbers<[1], [0], [0], [1], [0, 0, 1, 1], [], []>} : vector<256x256xbf16>, vector<256x128xbf16>, vector<256x128xf32> -> vector<256x128xf32>
    %111 = vector.extract_strided_slice %110 {offsets = [0, 0], sizes = [256, 8], strides = [1, 1]} : vector<256x128xf32> to vector<256x8xf32>
    %c0_54 = arith.constant 0 : index
    %c0_55 = arith.constant 0 : index
    %112 = vector.load %arg6[%c0_54, %c0_55] : memref<1x8xf32, #tpu.memory_space<vmem>>, vector<1x8xf32>
    %113 = vector.broadcast %112 : vector<1x8xf32> to vector<256x8xf32>
    %114 = arith.addf %111, %113 : vector<256x8xf32>
    %c0_56 = arith.constant 0 : index
    %c0_57 = arith.constant 0 : index
    %115 = vector.load %arg7[%c0_56, %c0_57] : memref<256x8xf32, #tpu.memory_space<vmem>>, vector<256x8xf32>
    tpu.vector_store %arg7[%c0_56, %c0_57], %114 {strides = array<i32>} : memref<256x8xf32, #tpu.memory_space<vmem>>, vector<256x8xf32>,
    return
  }
  func.func @transform_0(%arg0: i32) -> (i32, i32) {
    %c0_i32 = arith.constant 0 : i32
    %c0_i32_0 = arith.constant 0 : i32
    return %arg0, %c0_i32 : i32, i32
  }
  func.func @transform_1(%arg0: i32) -> (i32, i32, i32) {
    %c0_i32 = arith.constant 0 : i32
    %c0_i32_0 = arith.constant 0 : i32
    %c0_i32_1 = arith.constant 0 : i32
    %c0_i32_2 = arith.constant 0 : i32
    return %c0_i32, %c0_i32_0, %c0_i32_1 : i32, i32, i32
  }
  func.func @transform_2(%arg0: i32) -> (i32, i32, i32) {
    %c0_i32 = arith.constant 0 : i32
    %c0_i32_0 = arith.constant 0 : i32
    %c0_i32_1 = arith.constant 0 : i32
    %c0_i32_2 = arith.constant 0 : i32
    return %c0_i32, %c0_i32_0, %c0_i32_1 : i32, i32, i32
  }
  func.func @transform_3(%arg0: i32) -> (i32, i32) {
    %c0_i32 = arith.constant 0 : i32
    %c0_i32_0 = arith.constant 0 : i32
    %c0_i32_1 = arith.constant 0 : i32
    return %c0_i32, %c0_i32_0 : i32, i32
  }
  func.func @transform_4(%arg0: i32) -> (i32, i32) {
    %c0_i32 = arith.constant 0 : i32
    %c0_i32_0 = arith.constant 0 : i32
    %c0_i32_1 = arith.constant 0 : i32
    return %c0_i32, %c0_i32_0 : i32, i32
  }
  func.func @transform_5(%arg0: i32) -> (i32, i32) {
    %c0_i32 = arith.constant 0 : i32
    %c0_i32_0 = arith.constant 0 : i32
    %c0_i32_1 = arith.constant 0 : i32
    return %c0_i32, %c0_i32_0 : i32, i32
  }
  func.func @transform_6(%arg0: i32) -> (i32, i32) {
    %c0_i32 = arith.constant 0 : i32
    %c0_i32_0 = arith.constant 0 : i32
    return %arg0, %c0_i32 : i32, i32
  }
}

</mosaic_0001>

<llo_original>
// kernel: tpu_custom_call.1
$region0: #{tpu_custom_call.1}
  #allocation0 [shape = 'u32[]', space=smem, size = 0x4, offset = 0x4, fixed_abs, tag = 'smem constant byte address 0x4 - core index']
  #allocation1 [shape = 'u32[144,128]{1,0:T(1,128)}', space=vmem, size = 0x12000, scoped, tag = 'internal scratch']
  %s0 = inlined_call_operand.vmem [shape: f32[512,8], index: 0, kind: input, shape index: {}]
  %s1 = inlined_call_operand.vmem [shape: f32[2,8,256], index: 1, kind: input, shape index: {}]
  %s2 = inlined_call_operand.hbm [shape: bf16[7,256,256], index: 2, kind: input, shape index: {}]
  %s3 = inlined_call_operand.vmem [shape: f32[8,256], index: 3, kind: input, shape index: {}]
  %s4 = inlined_call_operand.vmem [shape: bf16[256,128], index: 4, kind: input, shape index: {}]
  %s5 = inlined_call_operand.vmem [shape: f32[1,8], index: 5, kind: input, shape index: {}]
  %s6 = inlined_call_operand.vmem [shape: f32[512,8], index: 6, kind: output, shape index: {}]
  %s7 = sld [smem:[#allocation0]]
  $region61: #{tpu_custom_call.1} parent=0
    _
  %s9 = ssub.s32 1, %s7
  %s10 = scalar_select 0, %s9, %s7
  $region1: #{tpu_custom_call.1} parent=0
    #allocation2 [shape = 'u8[917504]{0}', space=vmem, size = 0xe0000, scoped, tag = 'input window, operand 2, single buffered']
    #allocation3 [shape = 's32[2]{0}', space=sflag, size = 0x8, scoped, tag = 'scoped memory for tpu_custom_call.1']
    %11 = vsyncpa [#allocation3], 0
    loop: start=0, step=1, limit=4
    $region2: #{tpu_custom_call.1} parent=1 // loop_pre_header
      _
    $region3: #{tpu_custom_call.1} parent=1 // loop_header
      %s13 = sphi 0, %s17
      %p14 = scmp.ge.s32.totalorder %s13, 4
      %s23 = sphi 0, %s25
      %s26 = sphi 0, %s23
      %s27 = sphi 0, %s26
      %s43 = sphi 0, %s27
      %s47 = sphi 0, %s47
      %s49 = sphi 0, %s47
      %s50 = sphi 0, %s49
      %s64 = sphi 0, %s50
      %s68 = sphi 0, %s68
      %s70 = sphi 0, %s68
      %s71 = sphi 0, %s70
      %s85 = sphi 0, %s71
      %s89 = sphi 0, %s89
      %s91 = sphi 0, %s89
      %s92 = sphi 0, %s91
      %s106 = sphi 0, %s92
      %s110 = sphi 0, %s110
      %s112 = sphi 0, %s110
      %s113 = sphi 0, %s112
      %s127 = sphi 0, %s113
      %s131 = sphi 0, %s131
      %s133 = sphi 0, %s131
      %s134 = sphi 0, %s133
      %s148 = sphi 0, %s134
      %s154 = sphi 0, %s156
      %s157 = sphi 0, %s154
      %s158 = sphi 0, %s157
      %s174 = sphi 0, %s158
    $region4: #{tpu_custom_call.1} parent=1 // loop_header_branch
      %16 = sbr.rel (%p14) target = $region8
    $region5: #{tpu_custom_call.1} parent=1 // loop_body
      %s18 = ssub.s32 %s13, 1
      %s19 = ssub.s32 %s13, 2
      %s20 = sadd.s32 %s13, 1
      %s21 = ssub.s32 %s13, %s20
      %p22 = scmp.eq.s32.totalorder %s21, 0
      %s24 = sadd.s32 %s23, 1
      %s25 = scalar_select %p22, %s23, %s24
      %p28 = pneg %p22
      %p29 = scmp.eq.s32.totalorder %s13, 1
      %p30 = por %p28, %p29
      %p31 = scmp.ne.s32.totalorder %s23, %s26
      %p32 = scmp.eq.s32.totalorder %s13, 0
      %p33 = por %p31, %p32
      %p34 = scmp.ne.s32.totalorder %s23, %s26
      %p35 = scmp.eq.s32.totalorder %s18, 1
      %p36 = por %p34, %p35
      %p37 = scmp.ne.s32.totalorder %s26, %s27
      %p38 = scmp.eq.s32.totalorder %s18, 0
      %p39 = por %p37, %p38
      %p40 = scmp.ne.s32.totalorder %s26, %s27
      %p41 = scmp.eq.s32.totalorder %s19, 1
      %p42 = por %p40, %p41
      %p44 = scmp.ne.s32.totalorder %s27, %s43
      %p45 = scmp.eq.s32.totalorder %s19, 0
      %p46 = por %p44, %p45
      %s48 = sadd.s32 %s47, 1
      %p51 = scmp.eq.s32.totalorder %s13, 1
      %p52 = scmp.ne.s32.totalorder %s47, %s49
      %p53 = scmp.eq.s32.totalorder %s13, 0
      %p54 = por %p52, %p53
      %p55 = scmp.ne.s32.totalorder %s47, %s49
      %p56 = scmp.eq.s32.totalorder %s18, 1
      %p57 = por %p55, %p56
      %p58 = scmp.ne.s32.totalorder %s49, %s50
      %p59 = scmp.eq.s32.totalorder %s18, 0
      %p60 = por %p58, %p59
      %p61 = scmp.ne.s32.totalorder %s49, %s50
      %p62 = scmp.eq.s32.totalorder %s19, 1
      %p63 = por %p61, %p62
      %p65 = scmp.ne.s32.totalorder %s50, %s64
      %p66 = scmp.eq.s32.totalorder %s19, 0
      %p67 = por %p65, %p66
      %s69 = sadd.s32 %s68, 1
      %p72 = scmp.eq.s32.totalorder %s13, 1
      %p73 = scmp.ne.s32.totalorder %s68, %s70
      %p74 = scmp.eq.s32.totalorder %s13, 0
      %p75 = por %p73, %p74
      %p76 = scmp.ne.s32.totalorder %s68, %s70
      %p77 = scmp.eq.s32.totalorder %s18, 1
      %p78 = por %p76, %p77
      %p79 = scmp.ne.s32.totalorder %s70, %s71
      %p80 = scmp.eq.s32.totalorder %s18, 0
      %p81 = por %p79, %p80
      %p82 = scmp.ne.s32.totalorder %s70, %s71
      %p83 = scmp.eq.s32.totalorder %s19, 1
      %p84 = por %p82, %p83
      %p86 = scmp.ne.s32.totalorder %s71, %s85
      %p87 = scmp.eq.s32.totalorder %s19, 0
      %p88 = por %p86, %p87
      %s90 = sadd.s32 %s89, 1
      %p93 = scmp.eq.s32.totalorder %s13, 1
      %p94 = scmp.ne.s32.totalorder %s89, %s91
      %p95 = scmp.eq.s32.totalorder %s13, 0
      %p96 = por %p94, %p95
      %p97 = scmp.ne.s32.totalorder %s89, %s91
      %p98 = scmp.eq.s32.totalorder %s18, 1
      %p99 = por %p97, %p98
      %p100 = scmp.ne.s32.totalorder %s91, %s92
      %p101 = scmp.eq.s32.totalorder %s18, 0
      %p102 = por %p100, %p101
      %p103 = scmp.ne.s32.totalorder %s91, %s92
      %p104 = scmp.eq.s32.totalorder %s19, 1
      %p105 = por %p103, %p104
      %p107 = scmp.ne.s32.totalorder %s92, %s106
      %p108 = scmp.eq.s32.totalorder %s19, 0
      %p109 = por %p107, %p108
      %s111 = sadd.s32 %s110, 1
      %p114 = scmp.eq.s32.totalorder %s13, 1
      %p115 = scmp.ne.s32.totalorder %s110, %s112
      %p116 = scmp.eq.s32.totalorder %s13, 0
      %p117 = por %p115, %p116
      %p118 = scmp.ne.s32.totalorder %s110, %s112
      %p119 = scmp.eq.s32.totalorder %s18, 1
      %p120 = por %p118, %p119
      %p121 = scmp.ne.s32.totalorder %s112, %s113
      %p122 = scmp.eq.s32.totalorder %s18, 0
      %p123 = por %p121, %p122
      %p124 = scmp.ne.s32.totalorder %s112, %s113
      %p125 = scmp.eq.s32.totalorder %s19, 1
      %p126 = por %p124, %p125
      %p128 = scmp.ne.s32.totalorder %s113, %s127
      %p129 = scmp.eq.s32.totalorder %s19, 0
      %p130 = por %p128, %p129
      %s132 = sadd.s32 %s131, 1
      %p135 = scmp.eq.s32.totalorder %s13, 1
      %p136 = scmp.ne.s32.totalorder %s131, %s133
      %p137 = scmp.eq.s32.totalorder %s13, 0
      %p138 = por %p136, %p137
      %p139 = scmp.ne.s32.totalorder %s131, %s133
      %p140 = scmp.eq.s32.totalorder %s18, 1
      %p141 = por %p139, %p140
      %p142 = scmp.ne.s32.totalorder %s133, %s134
      %p143 = scmp.eq.s32.totalorder %s18, 0
      %p144 = por %p142, %p143
      %p145 = scmp.ne.s32.totalorder %s133, %s134
      %p146 = scmp.eq.s32.totalorder %s19, 1
      %p147 = por %p145, %p146
      %p149 = scmp.ne.s32.totalorder %s134, %s148
      %p150 = scmp.eq.s32.totalorder %s19, 0
      %p151 = por %p149, %p150
      %s152 = ssub.s32 %s13, %s20
      %p153 = scmp.eq.s32.totalorder %s152, 0
      %s155 = sadd.s32 %s154, 1
      %s156 = scalar_select %p153, %s154, %s155
      %p159 = pneg %p153
      %p160 = scmp.eq.s32.totalorder %s13, 1
      %p161 = por %p159, %p160
      %p162 = scmp.ne.s32.totalorder %s154, %s157
      %p163 = scmp.eq.s32.totalorder %s13, 0
      %p164 = por %p162, %p163
      %p165 = scmp.ne.s32.totalorder %s154, %s157
      %p166 = scmp.eq.s32.totalorder %s18, 1
      %p167 = por %p165, %p166
      %p168 = scmp.ne.s32.totalorder %s157, %s158
      %p169 = scmp.eq.s32.totalorder %s18, 0
      %p170 = por %p168, %p169
      %p171 = scmp.ne.s32.totalorder %s157, %s158
      %p172 = scmp.eq.s32.totalorder %s19, 1
      %p173 = por %p171, %p172
      %p175 = scmp.ne.s32.totalorder %s158, %s174
      %p176 = scmp.eq.s32.totalorder %s19, 0
      %p177 = por %p175, %p176
      %p178 = scmp.le.s32.totalorder 1, %s13
      %p179 = scmp.lt.s32.totalorder %s13, 3
      %p180 = pnand %p178, %p179
      %p181 = pneg %p180
      // Predicated region
      $region9: #{tpu_custom_call.1} parent=5 // pred_check
        _
      $region10: #{tpu_custom_call.1} parent=5 // pred_check_branch
        %183 = sbr.rel (%p180) target = $region12
      $region11: #{tpu_custom_call.1} parent=5 // pred_region
        %s184 = ssub.s32 %s13, 1
        // Predicated region
        $region13: #{tpu_custom_call.1} parent=11 // pred_check
          %p185 = pneg %p60
        $region14: #{tpu_custom_call.1} parent=11 // pred_check_branch
          %187 = sbr.rel (%p185) target = $region16
        $region15: #{tpu_custom_call.1} parent=11 // pred_region
          _
        $region16: #{tpu_custom_call.1} parent=11 // pred_fallthru
          _
        // Predicated region
        $region17: #{tpu_custom_call.1} parent=11 // pred_check
          %p188 = pneg %p81
        $region18: #{tpu_custom_call.1} parent=11 // pred_check_branch
          %190 = sbr.rel (%p188) target = $region20
        $region19: #{tpu_custom_call.1} parent=11 // pred_region
          %s192 = ssub.s32 28672, 28672
          %193 = vsyncadd [#allocation3], %s192
          %s194 = sshll.u32 [#allocation2], 4
          %s195 = int_to_ptr.vmem [resolvable:$true] %s194
          %200 = dma.hbm_to_vmem [thread:$0]  %s2, 28672, %s195, [#allocation3], 128, 128, 8
        $region20: #{tpu_custom_call.1} parent=11 // pred_fallthru
          _
        // Predicated region
        $region21: #{tpu_custom_call.1} parent=11 // pred_check
          %p201 = pneg %p102
        $region22: #{tpu_custom_call.1} parent=11 // pred_check_branch
          %203 = sbr.rel (%p201) target = $region24
        $region23: #{tpu_custom_call.1} parent=11 // pred_region
          _
        $region24: #{tpu_custom_call.1} parent=11 // pred_fallthru
          _
        // Predicated region
        $region25: #{tpu_custom_call.1} parent=11 // pred_check
          %p204 = pneg %p123
        $region26: #{tpu_custom_call.1} parent=11 // pred_check_branch
          %206 = sbr.rel (%p204) target = $region28
        $region27: #{tpu_custom_call.1} parent=11 // pred_region
          _
        $region28: #{tpu_custom_call.1} parent=11 // pred_fallthru
          _
        // Predicated region
        $region29: #{tpu_custom_call.1} parent=11 // pred_check
          %p207 = pneg %p144
        $region30: #{tpu_custom_call.1} parent=11 // pred_check_branch
          %209 = sbr.rel (%p207) target = $region32
        $region31: #{tpu_custom_call.1} parent=11 // pred_region
          _
        $region32: #{tpu_custom_call.1} parent=11 // pred_fallthru
          _
      $region12: #{tpu_custom_call.1} parent=5 // pred_fallthru
        _
      %p210 = scmp.lt.s32.totalorder %s13, 2
      // Predicated region
      $region33: #{tpu_custom_call.1} parent=5 // pred_check
        %p211 = pneg %p210
      $region34: #{tpu_custom_call.1} parent=5 // pred_check_branch
        %213 = sbr.rel (%p211) target = $region36
      $region35: #{tpu_custom_call.1} parent=5 // pred_region
        // Predicated region
        $region37: #{tpu_custom_call.1} parent=35 // pred_check
          %p214 = pneg %p33
        $region38: #{tpu_custom_call.1} parent=35 // pred_check_branch
          %216 = sbr.rel (%p214) target = $region40
        $region39: #{tpu_custom_call.1} parent=35 // pred_region
          %s217 = smul.u32 32, %s13
          %p218 = scmp.lt.s32.totalorder %s217, 63
          %s219 = scalar_select %p218, %s217, 63
          %s220 = smul.addr %s219, 8
          %s221 = scalar_lea.vmem %s0, %s220
          %s222 = smul.u32 32, %s13
        $region40: #{tpu_custom_call.1} parent=35 // pred_fallthru
          _
      $region36: #{tpu_custom_call.1} parent=5 // pred_fallthru
        _
      %p223 = scmp.le.s32.totalorder 1, %s13
      %p224 = scmp.lt.s32.totalorder %s13, 3
      %p225 = pnand %p223, %p224
      %p226 = pneg %p225
      // Predicated region
      $region41: #{tpu_custom_call.1} parent=5 // pred_check
        _
      $region42: #{tpu_custom_call.1} parent=5 // pred_check_branch
        %228 = sbr.rel (%p225) target = $region44
      $region43: #{tpu_custom_call.1} parent=5 // pred_region
        %s229 = ssub.s32 %s13, 1
        // Predicated region
        $region45: #{tpu_custom_call.1} parent=43 // pred_check
          %p230 = pneg %p81
        $region46: #{tpu_custom_call.1} parent=43 // pred_check_branch
          %232 = sbr.rel (%p230) target = $region48
        $region47: #{tpu_custom_call.1} parent=43 // pred_region
          %233 = dma.done [#allocation3], 28672
        $region48: #{tpu_custom_call.1} parent=43 // pred_fallthru
          _
        %s234 = smul.u32 32, %s18
        %p235 = scmp.lt.s32.totalorder %s234, 63
        %s236 = scalar_select %p235, %s234, 63
        %s237 = smul.addr %s236, 8
        %s238 = scalar_lea.vmem %s0, %s237
        %p239 = pneg %p39
        %p240 = pneg %p36
        %p241 = pneg %p60
        %p242 = pneg %p57
        %p243 = pneg %p81
        %p244 = pneg %p78
        %p245 = pneg %p102
        %p246 = pneg %p99
        %p247 = pneg %p123
        %p248 = pneg %p120
        %p249 = pneg %p144
        %p250 = pneg %p141
        %p251 = pneg %p170
        %p252 = pneg %p167
        %s253 = smul.u32 32, %s18
        %p254 = scmp.lt.s32.totalorder %s253, 63
        %s255 = scalar_select %p254, %s253, 63
        %s256 = smul.addr %s255, 8
        %s257 = scalar_lea.vmem %s6, %s256
        %s258 = smul.u32 32, %s18
        %p259 = scmp.lt.s32.totalorder %s258, 63
        %s260 = scalar_select %p259, %s258, 63
        %s261 = smul.addr %s260, 8
        %s262 = scalar_lea.vmem %s0, %s261
        %s263 = smul.u32 32, %s18
        %s264 = smul.u32 32, %s18
        %p265 = scmp.lt.s32.totalorder %s264, 63
        %s266 = scalar_select %p265, %s264, 63
        %s267 = smul.addr %s266, 8
        %s268 = scalar_lea.vmem %s6, %s267
        %s269 = smul.u32 32, %s18
        %v271 = vld [vmem:[%s262] sm:$0xff]
        %v272 = vld [vmem:[%s262 + $0x8] sm:$0xff]
        %v273 = vld [vmem:[%s262 + $0x10] sm:$0xff]
        %v274 = vld [vmem:[%s262 + $0x18] sm:$0xff]
        %v275 = vld [vmem:[%s262 + $0x20] sm:$0xff]
        %v276 = vld [vmem:[%s262 + $0x28] sm:$0xff]
        %v277 = vld [vmem:[%s262 + $0x30] sm:$0xff]
        %v278 = vld [vmem:[%s262 + $0x38] sm:$0xff]
        %v279 = vld [vmem:[%s262 + $0x40] sm:$0xff]
        %v280 = vld [vmem:[%s262 + $0x48] sm:$0xff]
        %v281 = vld [vmem:[%s262 + $0x50] sm:$0xff]
        %v282 = vld [vmem:[%s262 + $0x58] sm:$0xff]
        %v283 = vld [vmem:[%s262 + $0x60] sm:$0xff]
        %v284 = vld [vmem:[%s262 + $0x68] sm:$0xff]
        %v285 = vld [vmem:[%s262 + $0x70] sm:$0xff]
        %v286 = vld [vmem:[%s262 + $0x78] sm:$0xff]
        %v287 = vld [vmem:[%s262 + $0x80] sm:$0xff]
        %v288 = vld [vmem:[%s262 + $0x88] sm:$0xff]
        %v289 = vld [vmem:[%s262 + $0x90] sm:$0xff]
        %v290 = vld [vmem:[%s262 + $0x98] sm:$0xff]
        %v291 = vld [vmem:[%s262 + $0xa0] sm:$0xff]
        %v292 = vld [vmem:[%s262 + $0xa8] sm:$0xff]
        %v293 = vld [vmem:[%s262 + $0xb0] sm:$0xff]
        %v294 = vld [vmem:[%s262 + $0xb8] sm:$0xff]
        %v295 = vld [vmem:[%s262 + $0xc0] sm:$0xff]
        %v296 = vld [vmem:[%s262 + $0xc8] sm:$0xff]
        %v297 = vld [vmem:[%s262 + $0xd0] sm:$0xff]
        %v298 = vld [vmem:[%s262 + $0xd8] sm:$0xff]
        %v299 = vld [vmem:[%s262 + $0xe0] sm:$0xff]
        %v300 = vld [vmem:[%s262 + $0xe8] sm:$0xff]
        %v301 = vld [vmem:[%s262 + $0xf0] sm:$0xff]
        %v302 = vld [vmem:[%s262 + $0xf8] sm:$0xff]
        %v303 = vld [vmem:[%s1] sm:$0xff]
        %v304 = vld [vmem:[%s1 + $0x8] sm:$0xff]
        %306 = vset.pattern.permute.xlu0 0
        %307 = vperm.xlu0 %306, %v271
        %v308 = vpop.permute.xlu0 %307
        %311 = vset.pattern.permute.xlu0 0
        %312 = vperm.xlu0 %311, %v272
        %v313 = vpop.permute.xlu0 %312
        %316 = vset.pattern.permute.xlu0 0
        %317 = vperm.xlu0 %316, %v273
        %v318 = vpop.permute.xlu0 %317
        %321 = vset.pattern.permute.xlu0 0
        %322 = vperm.xlu0 %321, %v274
        %v323 = vpop.permute.xlu0 %322
        %326 = vset.pattern.permute.xlu0 0
        %327 = vperm.xlu0 %326, %v275
        %v328 = vpop.permute.xlu0 %327
        %331 = vset.pattern.permute.xlu0 0
        %332 = vperm.xlu0 %331, %v276
        %v333 = vpop.permute.xlu0 %332
        %336 = vset.pattern.permute.xlu0 0
        %337 = vperm.xlu0 %336, %v277
        %v338 = vpop.permute.xlu0 %337
        %341 = vset.pattern.permute.xlu0 0
        %342 = vperm.xlu0 %341, %v278
        %v343 = vpop.permute.xlu0 %342
        %346 = vset.pattern.permute.xlu0 0
        %347 = vperm.xlu0 %346, %v279
        %v348 = vpop.permute.xlu0 %347
        %351 = vset.pattern.permute.xlu0 0
        %352 = vperm.xlu0 %351, %v280
        %v353 = vpop.permute.xlu0 %352
        %356 = vset.pattern.permute.xlu0 0
        %357 = vperm.xlu0 %356, %v281
        %v358 = vpop.permute.xlu0 %357
        %361 = vset.pattern.permute.xlu0 0
        %362 = vperm.xlu0 %361, %v282
        %v363 = vpop.permute.xlu0 %362
        %366 = vset.pattern.permute.xlu0 0
        %367 = vperm.xlu0 %366, %v283
        %v368 = vpop.permute.xlu0 %367
        %371 = vset.pattern.permute.xlu0 0
        %372 = vperm.xlu0 %371, %v284
        %v373 = vpop.permute.xlu0 %372
        %376 = vset.pattern.permute.xlu0 0
        %377 = vperm.xlu0 %376, %v285
        %v378 = vpop.permute.xlu0 %377
        %381 = vset.pattern.permute.xlu0 0
        %382 = vperm.xlu0 %381, %v286
        %v383 = vpop.permute.xlu0 %382
        %386 = vset.pattern.permute.xlu0 0
        %387 = vperm.xlu0 %386, %v287
        %v388 = vpop.permute.xlu0 %387
        %391 = vset.pattern.permute.xlu0 0
        %392 = vperm.xlu0 %391, %v288
        %v393 = vpop.permute.xlu0 %392
        %396 = vset.pattern.permute.xlu0 0
        %397 = vperm.xlu0 %396, %v289
        %v398 = vpop.permute.xlu0 %397
        %401 = vset.pattern.permute.xlu0 0
        %402 = vperm.xlu0 %401, %v290
        %v403 = vpop.permute.xlu0 %402
        %406 = vset.pattern.permute.xlu0 0
        %407 = vperm.xlu0 %406, %v291
        %v408 = vpop.permute.xlu0 %407
        %411 = vset.pattern.permute.xlu0 0
        %412 = vperm.xlu0 %411, %v292
        %v413 = vpop.permute.xlu0 %412
        %416 = vset.pattern.permute.xlu0 0
        %417 = vperm.xlu0 %416, %v293
        %v418 = vpop.permute.xlu0 %417
        %421 = vset.pattern.permute.xlu0 0
        %422 = vperm.xlu0 %421, %v294
        %v423 = vpop.permute.xlu0 %422
        %426 = vset.pattern.permute.xlu0 0
        %427 = vperm.xlu0 %426, %v295
        %v428 = vpop.permute.xlu0 %427
        %431 = vset.pattern.permute.xlu0 0
        %432 = vperm.xlu0 %431, %v296
        %v433 = vpop.permute.xlu0 %432
        %436 = vset.pattern.permute.xlu0 0
        %437 = vperm.xlu0 %436, %v297
        %v438 = vpop.permute.xlu0 %437
        %441 = vset.pattern.permute.xlu0 0
        %442 = vperm.xlu0 %441, %v298
        %v443 = vpop.permute.xlu0 %442
        %446 = vset.pattern.permute.xlu0 0
        %447 = vperm.xlu0 %446, %v299
        %v448 = vpop.permute.xlu0 %447
        %451 = vset.pattern.permute.xlu0 0
        %452 = vperm.xlu0 %451, %v300
        %v453 = vpop.permute.xlu0 %452
        %456 = vset.pattern.permute.xlu0 0
        %457 = vperm.xlu0 %456, %v301
        %v458 = vpop.permute.xlu0 %457
        %461 = vset.pattern.permute.xlu0 0
        %462 = vperm.xlu0 %461, %v302
        %v463 = vpop.permute.xlu0 %462
        %v465 = vlaneseq
        %v466 = vshrl.u32 %v465, 7
        %v467 = vsub.s32 0, %v466
        %v468 = vrot.slane %v303, %v467
        %v469 = vlaneseq
        %v470 = vshrl.u32 %v469, 7
        %v471 = vsub.s32 0, %v470
        %v472 = vrot.slane %v304, %v471
        %v473 = vmul.f32 %v308, %v468
        %v474 = vmul.f32 %v308, %v472
        %v475 = vmul.f32 %v313, %v468
        %v476 = vmul.f32 %v313, %v472
        %v477 = vmul.f32 %v318, %v468
        %v478 = vmul.f32 %v318, %v472
        %v479 = vmul.f32 %v323, %v468
        %v480 = vmul.f32 %v323, %v472
        %v481 = vmul.f32 %v328, %v468
        %v482 = vmul.f32 %v328, %v472
        %v483 = vmul.f32 %v333, %v468
        %v484 = vmul.f32 %v333, %v472
        %v485 = vmul.f32 %v338, %v468
        %v486 = vmul.f32 %v338, %v472
        %v487 = vmul.f32 %v343, %v468
        %v488 = vmul.f32 %v343, %v472
        %v489 = vmul.f32 %v348, %v468
        %v490 = vmul.f32 %v348, %v472
        %v491 = vmul.f32 %v353, %v468
        %v492 = vmul.f32 %v353, %v472
        %v493 = vmul.f32 %v358, %v468
        %v494 = vmul.f32 %v358, %v472
        %v495 = vmul.f32 %v363, %v468
        %v496 = vmul.f32 %v363, %v472
        %v497 = vmul.f32 %v368, %v468
        %v498 = vmul.f32 %v368, %v472
        %v499 = vmul.f32 %v373, %v468
        %v500 = vmul.f32 %v373, %v472
        %v501 = vmul.f32 %v378, %v468
        %v502 = vmul.f32 %v378, %v472
        %v503 = vmul.f32 %v383, %v468
        %v504 = vmul.f32 %v383, %v472
        %v505 = vmul.f32 %v388, %v468
        %v506 = vmul.f32 %v388, %v472
        %v507 = vmul.f32 %v393, %v468
        %v508 = vmul.f32 %v393, %v472
        %v509 = vmul.f32 %v398, %v468
        %v510 = vmul.f32 %v398, %v472
        %v511 = vmul.f32 %v403, %v468
        %v512 = vmul.f32 %v403, %v472
        %v513 = vmul.f32 %v408, %v468
        %v514 = vmul.f32 %v408, %v472
        %v515 = vmul.f32 %v413, %v468
        %v516 = vmul.f32 %v413, %v472
        %v517 = vmul.f32 %v418, %v468
        %v518 = vmul.f32 %v418, %v472
        %v519 = vmul.f32 %v423, %v468
        %v520 = vmul.f32 %v423, %v472
        %v521 = vmul.f32 %v428, %v468
        %v522 = vmul.f32 %v428, %v472
        %v523 = vmul.f32 %v433, %v468
        %v524 = vmul.f32 %v433, %v472
        %v525 = vmul.f32 %v438, %v468
        %v526 = vmul.f32 %v438, %v472
        %v527 = vmul.f32 %v443, %v468
        %v528 = vmul.f32 %v443, %v472
        %v529 = vmul.f32 %v448, %v468
        %v530 = vmul.f32 %v448, %v472
        %v531 = vmul.f32 %v453, %v468
        %v532 = vmul.f32 %v453, %v472
        %v533 = vmul.f32 %v458, %v468
        %v534 = vmul.f32 %v458, %v472
        %v535 = vmul.f32 %v463, %v468
        %v536 = vmul.f32 %v463, %v472
        %537 = vset.pattern.permute.xlu0 1
        %538 = vperm.xlu0 %537, %v271
        %v539 = vpop.permute.xlu0 %538
        %541 = vset.pattern.permute.xlu0 1
        %542 = vperm.xlu0 %541, %v272
        %v543 = vpop.permute.xlu0 %542
        %545 = vset.pattern.permute.xlu0 1
        %546 = vperm.xlu0 %545, %v273
        %v547 = vpop.permute.xlu0 %546
        %549 = vset.pattern.permute.xlu0 1
        %550 = vperm.xlu0 %549, %v274
        %v551 = vpop.permute.xlu0 %550
        %553 = vset.pattern.permute.xlu0 1
        %554 = vperm.xlu0 %553, %v275
        %v555 = vpop.permute.xlu0 %554
        %557 = vset.pattern.permute.xlu0 1
        %558 = vperm.xlu0 %557, %v276
        %v559 = vpop.permute.xlu0 %558
        %561 = vset.pattern.permute.xlu0 1
        %562 = vperm.xlu0 %561, %v277
        %v563 = vpop.permute.xlu0 %562
        %565 = vset.pattern.permute.xlu0 1
        %566 = vperm.xlu0 %565, %v278
        %v567 = vpop.permute.xlu0 %566
        %569 = vset.pattern.permute.xlu0 1
        %570 = vperm.xlu0 %569, %v279
        %v571 = vpop.permute.xlu0 %570
        %573 = vset.pattern.permute.xlu0 1
        %574 = vperm.xlu0 %573, %v280
        %v575 = vpop.permute.xlu0 %574
        %577 = vset.pattern.permute.xlu0 1
        %578 = vperm.xlu0 %577, %v281
        %v579 = vpop.permute.xlu0 %578
        %581 = vset.pattern.permute.xlu0 1
        %582 = vperm.xlu0 %581, %v282
        %v583 = vpop.permute.xlu0 %582
        %585 = vset.pattern.permute.xlu0 1
        %586 = vperm.xlu0 %585, %v283
        %v587 = vpop.permute.xlu0 %586
        %589 = vset.pattern.permute.xlu0 1
        %590 = vperm.xlu0 %589, %v284
        %v591 = vpop.permute.xlu0 %590
        %593 = vset.pattern.permute.xlu0 1
        %594 = vperm.xlu0 %593, %v285
        %v595 = vpop.permute.xlu0 %594
        %597 = vset.pattern.permute.xlu0 1
        %598 = vperm.xlu0 %597, %v286
        %v599 = vpop.permute.xlu0 %598
        %601 = vset.pattern.permute.xlu0 1
        %602 = vperm.xlu0 %601, %v287
        %v603 = vpop.permute.xlu0 %602
        %605 = vset.pattern.permute.xlu0 1
        %606 = vperm.xlu0 %605, %v288
        %v607 = vpop.permute.xlu0 %606
        %609 = vset.pattern.permute.xlu0 1
        %610 = vperm.xlu0 %609, %v289
        %v611 = vpop.permute.xlu0 %610
        %613 = vset.pattern.permute.xlu0 1
        %614 = vperm.xlu0 %613, %v290
        %v615 = vpop.permute.xlu0 %614
        %617 = vset.pattern.permute.xlu0 1
        %618 = vperm.xlu0 %617, %v291
        %v619 = vpop.permute.xlu0 %618
        %621 = vset.pattern.permute.xlu0 1
        %622 = vperm.xlu0 %621, %v292
        %v623 = vpop.permute.xlu0 %622
        %625 = vset.pattern.permute.xlu0 1
        %626 = vperm.xlu0 %625, %v293
        %v627 = vpop.permute.xlu0 %626
        %629 = vset.pattern.permute.xlu0 1
        %630 = vperm.xlu0 %629, %v294
        %v631 = vpop.permute.xlu0 %630
        %633 = vset.pattern.permute.xlu0 1
        %634 = vperm.xlu0 %633, %v295
        %v635 = vpop.permute.xlu0 %634
        %637 = vset.pattern.permute.xlu0 1
        %638 = vperm.xlu0 %637, %v296
        %v639 = vpop.permute.xlu0 %638
        %641 = vset.pattern.permute.xlu0 1
        %642 = vperm.xlu0 %641, %v297
        %v643 = vpop.permute.xlu0 %642
        %645 = vset.pattern.permute.xlu0 1
        %646 = vperm.xlu0 %645, %v298
        %v647 = vpop.permute.xlu0 %646
        %649 = vset.pattern.permute.xlu0 1
        %650 = vperm.xlu0 %649, %v299
        %v651 = vpop.permute.xlu0 %650
        %653 = vset.pattern.permute.xlu0 1
        %654 = vperm.xlu0 %653, %v300
        %v655 = vpop.permute.xlu0 %654
        %657 = vset.pattern.permute.xlu0 1
        %658 = vperm.xlu0 %657, %v301
        %v659 = vpop.permute.xlu0 %658
        %661 = vset.pattern.permute.xlu0 1
        %662 = vperm.xlu0 %661, %v302
        %v663 = vpop.permute.xlu0 %662
        %v665 = vlaneseq
        %v666 = vshrl.u32 %v665, 7
        %v667 = vsub.s32 1, %v666
        %v668 = vrot.slane %v303, %v667
        %v669 = vlaneseq
        %v670 = vshrl.u32 %v669, 7
        %v671 = vsub.s32 1, %v670
        %v672 = vrot.slane %v304, %v671
        %v673 = vmul.f32 %v539, %v668
        %v674 = vmul.f32 %v539, %v672
        %v675 = vmul.f32 %v543, %v668
        %v676 = vmul.f32 %v543, %v672
        %v677 = vmul.f32 %v547, %v668
        %v678 = vmul.f32 %v547, %v672
        %v679 = vmul.f32 %v551, %v668
        %v680 = vmul.f32 %v551, %v672
        %v681 = vmul.f32 %v555, %v668
        %v682 = vmul.f32 %v555, %v672
        %v683 = vmul.f32 %v559, %v668
        %v684 = vmul.f32 %v559, %v672
        %v685 = vmul.f32 %v563, %v668
        %v686 = vmul.f32 %v563, %v672
        %v687 = vmul.f32 %v567, %v668
        %v688 = vmul.f32 %v567, %v672
        %v689 = vmul.f32 %v571, %v668
        %v690 = vmul.f32 %v571, %v672
        %v691 = vmul.f32 %v575, %v668
        %v692 = vmul.f32 %v575, %v672
        %v693 = vmul.f32 %v579, %v668
        %v694 = vmul.f32 %v579, %v672
        %v695 = vmul.f32 %v583, %v668
        %v696 = vmul.f32 %v583, %v672
        %v697 = vmul.f32 %v587, %v668
        %v698 = vmul.f32 %v587, %v672
        %v699 = vmul.f32 %v591, %v668
        %v700 = vmul.f32 %v591, %v672
        %v701 = vmul.f32 %v595, %v668
        %v702 = vmul.f32 %v595, %v672
        %v703 = vmul.f32 %v599, %v668
        %v704 = vmul.f32 %v599, %v672
        %v705 = vmul.f32 %v603, %v668
        %v706 = vmul.f32 %v603, %v672
        %v707 = vmul.f32 %v607, %v668
        %v708 = vmul.f32 %v607, %v672
        %v709 = vmul.f32 %v611, %v668
        %v710 = vmul.f32 %v611, %v672
        %v711 = vmul.f32 %v615, %v668
        %v712 = vmul.f32 %v615, %v672
        %v713 = vmul.f32 %v619, %v668
        %v714 = vmul.f32 %v619, %v672
        %v715 = vmul.f32 %v623, %v668
        %v716 = vmul.f32 %v623, %v672
        %v717 = vmul.f32 %v627, %v668
        %v718 = vmul.f32 %v627, %v672
        %v719 = vmul.f32 %v631, %v668
        %v720 = vmul.f32 %v631, %v672
        %v721 = vmul.f32 %v635, %v668
        %v722 = vmul.f32 %v635, %v672
        %v723 = vmul.f32 %v639, %v668
        %v724 = vmul.f32 %v639, %v672
        %v725 = vmul.f32 %v643, %v668
        %v726 = vmul.f32 %v643, %v672
        %v727 = vmul.f32 %v647, %v668
        %v728 = vmul.f32 %v647, %v672
        %v729 = vmul.f32 %v651, %v668
        %v730 = vmul.f32 %v651, %v672
        %v731 = vmul.f32 %v655, %v668
        %v732 = vmul.f32 %v655, %v672
        %v733 = vmul.f32 %v659, %v668
        %v734 = vmul.f32 %v659, %v672
        %v735 = vmul.f32 %v663, %v668
        %v736 = vmul.f32 %v663, %v672
        %v737 = vadd.f32 %v473, %v673
        %v738 = vadd.f32 %v474, %v674
        %v739 = vadd.f32 %v475, %v675
        %v740 = vadd.f32 %v476, %v676
        %v741 = vadd.f32 %v477, %v677
        %v742 = vadd.f32 %v478, %v678
        %v743 = vadd.f32 %v479, %v679
        %v744 = vadd.f32 %v480, %v680
        %v745 = vadd.f32 %v481, %v681
        %v746 = vadd.f32 %v482, %v682
        %v747 = vadd.f32 %v483, %v683
        %v748 = vadd.f32 %v484, %v684
        %v749 = vadd.f32 %v485, %v685
        %v750 = vadd.f32 %v486, %v686
        %v751 = vadd.f32 %v487, %v687
        %v752 = vadd.f32 %v488, %v688
        %v753 = vadd.f32 %v489, %v689
        %v754 = vadd.f32 %v490, %v690
        %v755 = vadd.f32 %v491, %v691
        %v756 = vadd.f32 %v492, %v692
        %v757 = vadd.f32 %v493, %v693
        %v758 = vadd.f32 %v494, %v694
        %v759 = vadd.f32 %v495, %v695
        %v760 = vadd.f32 %v496, %v696
        %v761 = vadd.f32 %v497, %v697
        %v762 = vadd.f32 %v498, %v698
        %v763 = vadd.f32 %v499, %v699
        %v764 = vadd.f32 %v500, %v700
        %v765 = vadd.f32 %v501, %v701
        %v766 = vadd.f32 %v502, %v702
        %v767 = vadd.f32 %v503, %v703
        %v768 = vadd.f32 %v504, %v704
        %v769 = vadd.f32 %v505, %v705
        %v770 = vadd.f32 %v506, %v706
        %v771 = vadd.f32 %v507, %v707
        %v772 = vadd.f32 %v508, %v708
        %v773 = vadd.f32 %v509, %v709
        %v774 = vadd.f32 %v510, %v710
        %v775 = vadd.f32 %v511, %v711
        %v776 = vadd.f32 %v512, %v712
        %v777 = vadd.f32 %v513, %v713
        %v778 = vadd.f32 %v514, %v714
        %v779 = vadd.f32 %v515, %v715
        %v780 = vadd.f32 %v516, %v716
        %v781 = vadd.f32 %v517, %v717
        %v782 = vadd.f32 %v518, %v718
        %v783 = vadd.f32 %v519, %v719
        %v784 = vadd.f32 %v520, %v720
        %v785 = vadd.f32 %v521, %v721
        %v786 = vadd.f32 %v522, %v722
        %v787 = vadd.f32 %v523, %v723
        %v788 = vadd.f32 %v524, %v724
        %v789 = vadd.f32 %v525, %v725
        %v790 = vadd.f32 %v526, %v726
        %v791 = vadd.f32 %v527, %v727
        %v792 = vadd.f32 %v528, %v728
        %v793 = vadd.f32 %v529, %v729
        %v794 = vadd.f32 %v530, %v730
        %v795 = vadd.f32 %v531, %v731
        %v796 = vadd.f32 %v532, %v732
        %v797 = vadd.f32 %v533, %v733
        %v798 = vadd.f32 %v534, %v734
        %v799 = vadd.f32 %v535, %v735
        %v800 = vadd.f32 %v536, %v736
        %801 = vset.pattern.permute.xlu0 2
        %802 = vperm.xlu0 %801, %v271
        %v803 = vpop.permute.xlu0 %802
        %805 = vset.pattern.permute.xlu0 2
        %806 = vperm.xlu0 %805, %v272
        %v807 = vpop.permute.xlu0 %806
        %809 = vset.pattern.permute.xlu0 2
        %810 = vperm.xlu0 %809, %v273
        %v811 = vpop.permute.xlu0 %810
        %813 = vset.pattern.permute.xlu0 2
        %814 = vperm.xlu0 %813, %v274
        %v815 = vpop.permute.xlu0 %814
        %817 = vset.pattern.permute.xlu0 2
        %818 = vperm.xlu0 %817, %v275
        %v819 = vpop.permute.xlu0 %818
        %821 = vset.pattern.permute.xlu0 2
        %822 = vperm.xlu0 %821, %v276
        %v823 = vpop.permute.xlu0 %822
        %825 = vset.pattern.permute.xlu0 2
        %826 = vperm.xlu0 %825, %v277
        %v827 = vpop.permute.xlu0 %826
        %829 = vset.pattern.permute.xlu0 2
        %830 = vperm.xlu0 %829, %v278
        %v831 = vpop.permute.xlu0 %830
        %833 = vset.pattern.permute.xlu0 2
        %834 = vperm.xlu0 %833, %v279
        %v835 = vpop.permute.xlu0 %834
        %837 = vset.pattern.permute.xlu0 2
        %838 = vperm.xlu0 %837, %v280
        %v839 = vpop.permute.xlu0 %838
        %841 = vset.pattern.permute.xlu0 2
        %842 = vperm.xlu0 %841, %v281
        %v843 = vpop.permute.xlu0 %842
        %845 = vset.pattern.permute.xlu0 2
        %846 = vperm.xlu0 %845, %v282
        %v847 = vpop.permute.xlu0 %846
        %849 = vset.pattern.permute.xlu0 2
        %850 = vperm.xlu0 %849, %v283
        %v851 = vpop.permute.xlu0 %850
        %853 = vset.pattern.permute.xlu0 2
        %854 = vperm.xlu0 %853, %v284
        %v855 = vpop.permute.xlu0 %854
        %857 = vset.pattern.permute.xlu0 2
        %858 = vperm.xlu0 %857, %v285
        %v859 = vpop.permute.xlu0 %858
        %861 = vset.pattern.permute.xlu0 2
        %862 = vperm.xlu0 %861, %v286
        %v863 = vpop.permute.xlu0 %862
        %865 = vset.pattern.permute.xlu0 2
        %866 = vperm.xlu0 %865, %v287
        %v867 = vpop.permute.xlu0 %866
        %869 = vset.pattern.permute.xlu0 2
        %870 = vperm.xlu0 %869, %v288
        %v871 = vpop.permute.xlu0 %870
        %873 = vset.pattern.permute.xlu0 2
        %874 = vperm.xlu0 %873, %v289
        %v875 = vpop.permute.xlu0 %874
        %877 = vset.pattern.permute.xlu0 2
        %878 = vperm.xlu0 %877, %v290
        %v879 = vpop.permute.xlu0 %878
        %881 = vset.pattern.permute.xlu0 2
        %882 = vperm.xlu0 %881, %v291
        %v883 = vpop.permute.xlu0 %882
        %885 = vset.pattern.permute.xlu0 2
        %886 = vperm.xlu0 %885, %v292
        %v887 = vpop.permute.xlu0 %886
        %889 = vset.pattern.permute.xlu0 2
        %890 = vperm.xlu0 %889, %v293
        %v891 = vpop.permute.xlu0 %890
        %893 = vset.pattern.permute.xlu0 2
        %894 = vperm.xlu0 %893, %v294
        %v895 = vpop.permute.xlu0 %894
        %897 = vset.pattern.permute.xlu0 2
        %898 = vperm.xlu0 %897, %v295
        %v899 = vpop.permute.xlu0 %898
        %901 = vset.pattern.permute.xlu0 2
        %902 = vperm.xlu0 %901, %v296
        %v903 = vpop.permute.xlu0 %902
        %905 = vset.pattern.permute.xlu0 2
        %906 = vperm.xlu0 %905, %v297
        %v907 = vpop.permute.xlu0 %906
        %909 = vset.pattern.permute.xlu0 2
        %910 = vperm.xlu0 %909, %v298
        %v911 = vpop.permute.xlu0 %910
        %913 = vset.pattern.permute.xlu0 2
        %914 = vperm.xlu0 %913, %v299
        %v915 = vpop.permute.xlu0 %914
        %917 = vset.pattern.permute.xlu0 2
        %918 = vperm.xlu0 %917, %v300
        %v919 = vpop.permute.xlu0 %918
        %921 = vset.pattern.permute.xlu0 2
        %922 = vperm.xlu0 %921, %v301
        %v923 = vpop.permute.xlu0 %922
        %925 = vset.pattern.permute.xlu0 2
        %926 = vperm.xlu0 %925, %v302
        %v927 = vpop.permute.xlu0 %926
        %v929 = vlaneseq
        %v930 = vshrl.u32 %v929, 7
        %v931 = vsub.s32 2, %v930
        %v932 = vrot.slane %v303, %v931
        %v933 = vlaneseq
        %v934 = vshrl.u32 %v933, 7
        %v935 = vsub.s32 2, %v934
        %v936 = vrot.slane %v304, %v935
        %v937 = vmul.f32 %v803, %v932
        %v938 = vmul.f32 %v803, %v936
        %v939 = vmul.f32 %v807, %v932
        %v940 = vmul.f32 %v807, %v936
        %v941 = vmul.f32 %v811, %v932
        %v942 = vmul.f32 %v811, %v936
        %v943 = vmul.f32 %v815, %v932
        %v944 = vmul.f32 %v815, %v936
        %v945 = vmul.f32 %v819, %v932
        %v946 = vmul.f32 %v819, %v936
        %v947 = vmul.f32 %v823, %v932
        %v948 = vmul.f32 %v823, %v936
        %v949 = vmul.f32 %v827, %v932
        %v950 = vmul.f32 %v827, %v936
        %v951 = vmul.f32 %v831, %v932
        %v952 = vmul.f32 %v831, %v936
        %v953 = vmul.f32 %v835, %v932
        %v954 = vmul.f32 %v835, %v936
        %v955 = vmul.f32 %v839, %v932
        %v956 = vmul.f32 %v839, %v936
        %v957 = vmul.f32 %v843, %v932
        %v958 = vmul.f32 %v843, %v936
        %v959 = vmul.f32 %v847, %v932
        %v960 = vmul.f32 %v847, %v936
        %v961 = vmul.f32 %v851, %v932
        %v962 = vmul.f32 %v851, %v936
        %v963 = vmul.f32 %v855, %v932
        %v964 = vmul.f32 %v855, %v936
        %v965 = vmul.f32 %v859, %v932
        %v966 = vmul.f32 %v859, %v936
        %v967 = vmul.f32 %v863, %v932
        %v968 = vmul.f32 %v863, %v936
        %v969 = vmul.f32 %v867, %v932
        %v970 = vmul.f32 %v867, %v936
        %v971 = vmul.f32 %v871, %v932
        %v972 = vmul.f32 %v871, %v936
        %v973 = vmul.f32 %v875, %v932
        %v974 = vmul.f32 %v875, %v936
        %v975 = vmul.f32 %v879, %v932
        %v976 = vmul.f32 %v879, %v936
        %v977 = vmul.f32 %v883, %v932
        %v978 = vmul.f32 %v883, %v936
        %v979 = vmul.f32 %v887, %v932
        %v980 = vmul.f32 %v887, %v936
        %v981 = vmul.f32 %v891, %v932
        %v982 = vmul.f32 %v891, %v936
        %v983 = vmul.f32 %v895, %v932
        %v984 = vmul.f32 %v895, %v936
        %v985 = vmul.f32 %v899, %v932
        %v986 = vmul.f32 %v899, %v936
        %v987 = vmul.f32 %v903, %v932
        %v988 = vmul.f32 %v903, %v936
        %v989 = vmul.f32 %v907, %v932
        %v990 = vmul.f32 %v907, %v936
        %v991 = vmul.f32 %v911, %v932
        %v992 = vmul.f32 %v911, %v936
        %v993 = vmul.f32 %v915, %v932
        %v994 = vmul.f32 %v915, %v936
        %v995 = vmul.f32 %v919, %v932
        %v996 = vmul.f32 %v919, %v936
        %v997 = vmul.f32 %v923, %v932
        %v998 = vmul.f32 %v923, %v936
        %v999 = vmul.f32 %v927, %v932
        %v1000 = vmul.f32 %v927, %v936
        %v1001 = vadd.f32 %v737, %v937
        %v1002 = vadd.f32 %v738, %v938
        %v1003 = vadd.f32 %v739, %v939
        %v1004 = vadd.f32 %v740, %v940
        %v1005 = vadd.f32 %v741, %v941
        %v1006 = vadd.f32 %v742, %v942
        %v1007 = vadd.f32 %v743, %v943
        %v1008 = vadd.f32 %v744, %v944
        %v1009 = vadd.f32 %v745, %v945
        %v1010 = vadd.f32 %v746, %v946
        %v1011 = vadd.f32 %v747, %v947
        %v1012 = vadd.f32 %v748, %v948
        %v1013 = vadd.f32 %v749, %v949
        %v1014 = vadd.f32 %v750, %v950
        %v1015 = vadd.f32 %v751, %v951
        %v1016 = vadd.f32 %v752, %v952
        %v1017 = vadd.f32 %v753, %v953
        %v1018 = vadd.f32 %v754, %v954
        %v1019 = vadd.f32 %v755, %v955
        %v1020 = vadd.f32 %v756, %v956
        %v1021 = vadd.f32 %v757, %v957
        %v1022 = vadd.f32 %v758, %v958
        %v1023 = vadd.f32 %v759, %v959
        %v1024 = vadd.f32 %v760, %v960
        %v1025 = vadd.f32 %v761, %v961
        %v1026 = vadd.f32 %v762, %v962
        %v1027 = vadd.f32 %v763, %v963
        %v1028 = vadd.f32 %v764, %v964
        %v1029 = vadd.f32 %v765, %v965
        %v1030 = vadd.f32 %v766, %v966
        %v1031 = vadd.f32 %v767, %v967
        %v1032 = vadd.f32 %v768, %v968
        %v1033 = vadd.f32 %v769, %v969
        %v1034 = vadd.f32 %v770, %v970
        %v1035 = vadd.f32 %v771, %v971
        %v1036 = vadd.f32 %v772, %v972
        %v1037 = vadd.f32 %v773, %v973
        %v1038 = vadd.f32 %v774, %v974
        %v1039 = vadd.f32 %v775, %v975
        %v1040 = vadd.f32 %v776, %v976
        %v1041 = vadd.f32 %v777, %v977
        %v1042 = vadd.f32 %v778, %v978
        %v1043 = vadd.f32 %v779, %v979
        %v1044 = vadd.f32 %v780, %v980
        %v1045 = vadd.f32 %v781, %v981
        %v1046 = vadd.f32 %v782, %v982
        %v1047 = vadd.f32 %v783, %v983
        %v1048 = vadd.f32 %v784, %v984
        %v1049 = vadd.f32 %v785, %v985
        %v1050 = vadd.f32 %v786, %v986
        %v1051 = vadd.f32 %v787, %v987
        %v1052 = vadd.f32 %v788, %v988
        %v1053 = vadd.f32 %v789, %v989
        %v1054 = vadd.f32 %v790, %v990
        %v1055 = vadd.f32 %v791, %v991
        %v1056 = vadd.f32 %v792, %v992
        %v1057 = vadd.f32 %v793, %v993
        %v1058 = vadd.f32 %v794, %v994
        %v1059 = vadd.f32 %v795, %v995
        %v1060 = vadd.f32 %v796, %v996
        %v1061 = vadd.f32 %v797, %v997
        %v1062 = vadd.f32 %v798, %v998
        %v1063 = vadd.f32 %v799, %v999
        %v1064 = vadd.f32 %v800, %v1000
        %v1065 = vld [vmem:[%s3] ss:$8 sm:$0x3]
        %v1067 = vlaneseq
        %v1068 = vshrl.u32 %v1067, 7
        %v1069 = vsub.s32 0, %v1068
        %v1070 = vrot.slane %v1065, %v1069
        %v1071 = vlaneseq
        %v1072 = vshrl.u32 %v1071, 7
        %v1073 = vsub.s32 1, %v1072
        %v1074 = vrot.slane %v1065, %v1073
        %v1077 = vadd.f32 %v1001, %v1070
        %v1078 = vadd.f32 %v1002, %v1074
        %v1079 = vadd.f32 %v1003, %v1070
        %v1080 = vadd.f32 %v1004, %v1074
        %v1081 = vadd.f32 %v1005, %v1070
        %v1082 = vadd.f32 %v1006, %v1074
        %v1083 = vadd.f32 %v1007, %v1070
        %v1084 = vadd.f32 %v1008, %v1074
        %v1085 = vadd.f32 %v1009, %v1070
        %v1086 = vadd.f32 %v1010, %v1074
        %v1087 = vadd.f32 %v1011, %v1070
        %v1088 = vadd.f32 %v1012, %v1074
        %v1089 = vadd.f32 %v1013, %v1070
        %v1090 = vadd.f32 %v1014, %v1074
        %v1091 = vadd.f32 %v1015, %v1070
        %v1092 = vadd.f32 %v1016, %v1074
        %v1093 = vadd.f32 %v1017, %v1070
        %v1094 = vadd.f32 %v1018, %v1074
        %v1095 = vadd.f32 %v1019, %v1070
        %v1096 = vadd.f32 %v1020, %v1074
        %v1097 = vadd.f32 %v1021, %v1070
        %v1098 = vadd.f32 %v1022, %v1074
        %v1099 = vadd.f32 %v1023, %v1070
        %v1100 = vadd.f32 %v1024, %v1074
        %v1101 = vadd.f32 %v1025, %v1070
        %v1102 = vadd.f32 %v1026, %v1074
        %v1103 = vadd.f32 %v1027, %v1070
        %v1104 = vadd.f32 %v1028, %v1074
        %v1105 = vadd.f32 %v1029, %v1070
        %v1106 = vadd.f32 %v1030, %v1074
        %v1107 = vadd.f32 %v1031, %v1070
        %v1108 = vadd.f32 %v1032, %v1074
        %v1109 = vadd.f32 %v1033, %v1070
        %v1110 = vadd.f32 %v1034, %v1074
        %v1111 = vadd.f32 %v1035, %v1070
        %v1112 = vadd.f32 %v1036, %v1074
        %v1113 = vadd.f32 %v1037, %v1070
        %v1114 = vadd.f32 %v1038, %v1074
        %v1115 = vadd.f32 %v1039, %v1070
        %v1116 = vadd.f32 %v1040, %v1074
        %v1117 = vadd.f32 %v1041, %v1070
        %v1118 = vadd.f32 %v1042, %v1074
        %v1119 = vadd.f32 %v1043, %v1070
        %v1120 = vadd.f32 %v1044, %v1074
        %v1121 = vadd.f32 %v1045, %v1070
        %v1122 = vadd.f32 %v1046, %v1074
        %v1123 = vadd.f32 %v1047, %v1070
        %v1124 = vadd.f32 %v1048, %v1074
        %v1125 = vadd.f32 %v1049, %v1070
        %v1126 = vadd.f32 %v1050, %v1074
        %v1127 = vadd.f32 %v1051, %v1070
        %v1128 = vadd.f32 %v1052, %v1074
        %v1129 = vadd.f32 %v1053, %v1070
        %v1130 = vadd.f32 %v1054, %v1074
        %v1131 = vadd.f32 %v1055, %v1070
        %v1132 = vadd.f32 %v1056, %v1074
        %v1133 = vadd.f32 %v1057, %v1070
        %v1134 = vadd.f32 %v1058, %v1074
        %v1135 = vadd.f32 %v1059, %v1070
        %v1136 = vadd.f32 %v1060, %v1074
        %v1137 = vadd.f32 %v1061, %v1070
        %v1138 = vadd.f32 %v1062, %v1074
        %v1139 = vadd.f32 %v1063, %v1070
        %v1140 = vadd.f32 %v1064, %v1074
        %v1141 = vmax.f32 %v1077, 0.0
        %v1142 = vmax.f32 %v1078, 0.0
        %v1143 = vmax.f32 %v1079, 0.0
        %v1144 = vmax.f32 %v1080, 0.0
        %v1145 = vmax.f32 %v1081, 0.0
        %v1146 = vmax.f32 %v1082, 0.0
        %v1147 = vmax.f32 %v1083, 0.0
        %v1148 = vmax.f32 %v1084, 0.0
        %v1149 = vmax.f32 %v1085, 0.0
        %v1150 = vmax.f32 %v1086, 0.0
        %v1151 = vmax.f32 %v1087, 0.0
        %v1152 = vmax.f32 %v1088, 0.0
        %v1153 = vmax.f32 %v1089, 0.0
        %v1154 = vmax.f32 %v1090, 0.0
        %v1155 = vmax.f32 %v1091, 0.0
        %v1156 = vmax.f32 %v1092, 0.0
        %v1157 = vmax.f32 %v1093, 0.0
        %v1158 = vmax.f32 %v1094, 0.0
        %v1159 = vmax.f32 %v1095, 0.0
        %v1160 = vmax.f32 %v1096, 0.0
        %v1161 = vmax.f32 %v1097, 0.0
        %v1162 = vmax.f32 %v1098, 0.0
        %v1163 = vmax.f32 %v1099, 0.0
        %v1164 = vmax.f32 %v1100, 0.0
        %v1165 = vmax.f32 %v1101, 0.0
        %v1166 = vmax.f32 %v1102, 0.0
        %v1167 = vmax.f32 %v1103, 0.0
        %v1168 = vmax.f32 %v1104, 0.0
        %v1169 = vmax.f32 %v1105, 0.0
        %v1170 = vmax.f32 %v1106, 0.0
        %v1171 = vmax.f32 %v1107, 0.0
        %v1172 = vmax.f32 %v1108, 0.0
        %v1173 = vmax.f32 %v1109, 0.0
        %v1174 = vmax.f32 %v1110, 0.0
        %v1175 = vmax.f32 %v1111, 0.0
        %v1176 = vmax.f32 %v1112, 0.0
        %v1177 = vmax.f32 %v1113, 0.0
        %v1178 = vmax.f32 %v1114, 0.0
        %v1179 = vmax.f32 %v1115, 0.0
        %v1180 = vmax.f32 %v1116, 0.0
        %v1181 = vmax.f32 %v1117, 0.0
        %v1182 = vmax.f32 %v1118, 0.0
        %v1183 = vmax.f32 %v1119, 0.0
        %v1184 = vmax.f32 %v1120, 0.0
        %v1185 = vmax.f32 %v1121, 0.0
        %v1186 = vmax.f32 %v1122, 0.0
        %v1187 = vmax.f32 %v1123, 0.0
        %v1188 = vmax.f32 %v1124, 0.0
        %v1189 = vmax.f32 %v1125, 0.0
        %v1190 = vmax.f32 %v1126, 0.0
        %v1191 = vmax.f32 %v1127, 0.0
        %v1192 = vmax.f32 %v1128, 0.0
        %v1193 = vmax.f32 %v1129, 0.0
        %v1194 = vmax.f32 %v1130, 0.0
        %v1195 = vmax.f32 %v1131, 0.0
        %v1196 = vmax.f32 %v1132, 0.0
        %v1197 = vmax.f32 %v1133, 0.0
        %v1198 = vmax.f32 %v1134, 0.0
        %v1199 = vmax.f32 %v1135, 0.0
        %v1200 = vmax.f32 %v1136, 0.0
        %v1201 = vmax.f32 %v1137, 0.0
        %v1202 = vmax.f32 %v1138, 0.0
        %v1203 = vmax.f32 %v1139, 0.0
        %v1204 = vmax.f32 %v1140, 0.0
        %v1205 = vpack.c.bf16 %v1143, %v1141
        %v1206 = vpack.c.bf16 %v1144, %v1142
        %v1207 = vpack.c.bf16 %v1147, %v1145
        %v1208 = vpack.c.bf16 %v1148, %v1146
        %v1209 = vpack.c.bf16 %v1151, %v1149
        %v1210 = vpack.c.bf16 %v1152, %v1150
        %v1211 = vpack.c.bf16 %v1155, %v1153
        %v1212 = vpack.c.bf16 %v1156, %v1154
        %v1213 = vpack.c.bf16 %v1159, %v1157
        %v1214 = vpack.c.bf16 %v1160, %v1158
        %v1215 = vpack.c.bf16 %v1163, %v1161
        %v1216 = vpack.c.bf16 %v1164, %v1162
        %v1217 = vpack.c.bf16 %v1167, %v1165
        %v1218 = vpack.c.bf16 %v1168, %v1166
        %v1219 = vpack.c.bf16 %v1171, %v1169
        %v1220 = vpack.c.bf16 %v1172, %v1170
        %v1221 = vpack.c.bf16 %v1175, %v1173
        %v1222 = vpack.c.bf16 %v1176, %v1174
        %v1223 = vpack.c.bf16 %v1179, %v1177
        %v1224 = vpack.c.bf16 %v1180, %v1178
        %v1225 = vpack.c.bf16 %v1183, %v1181
        %v1226 = vpack.c.bf16 %v1184, %v1182
        %v1227 = vpack.c.bf16 %v1187, %v1185
        %v1228 = vpack.c.bf16 %v1188, %v1186
        %v1229 = vpack.c.bf16 %v1191, %v1189
        %v1230 = vpack.c.bf16 %v1192, %v1190
        %v1231 = vpack.c.bf16 %v1195, %v1193
        %v1232 = vpack.c.bf16 %v1196, %v1194
        %v1233 = vpack.c.bf16 %v1199, %v1197
        %v1234 = vpack.c.bf16 %v1200, %v1198
        %v1235 = vpack.c.bf16 %v1203, %v1201
        %v1236 = vpack.c.bf16 %v1204, %v1202
        %v1237 = vld [vmem:[#allocation2] sm:$0xff]
        %v1238 = vld [vmem:[#allocation2 + $0x8] sm:$0xff]
        %v1239 = vld [vmem:[#allocation2 + $0x10] sm:$0xff]
        %v1240 = vld [vmem:[#allocation2 + $0x18] sm:$0xff]
        %v1241 = vld [vmem:[#allocation2 + $0x20] sm:$0xff]
        %v1242 = vld [vmem:[#allocation2 + $0x28] sm:$0xff]
        %v1243 = vld [vmem:[#allocation2 + $0x30] sm:$0xff]
        %v1244 = vld [vmem:[#allocation2 + $0x38] sm:$0xff]
        %v1245 = vld [vmem:[#allocation2 + $0x40] sm:$0xff]
        %v1246 = vld [vmem:[#allocation2 + $0x48] sm:$0xff]
        %v1247 = vld [vmem:[#allocation2 + $0x50] sm:$0xff]
        %v1248 = vld [vmem:[#allocation2 + $0x58] sm:$0xff]
        %v1249 = vld [vmem:[#allocation2 + $0x60] sm:$0xff]
        %v1250 = vld [vmem:[#allocation2 + $0x68] sm:$0xff]
        %v1251 = vld [vmem:[#allocation2 + $0x70] sm:$0xff]
        %v1252 = vld [vmem:[#allocation2 + $0x78] sm:$0xff]
        %v1253 = vld [vmem:[#allocation2 + $0x80] sm:$0xff]
        %v1254 = vld [vmem:[#allocation2 + $0x88] sm:$0xff]
        %v1255 = vld [vmem:[#allocation2 + $0x90] sm:$0xff]
        %v1256 = vld [vmem:[#allocation2 + $0x98] sm:$0xff]
        %v1257 = vld [vmem:[#allocation2 + $0xa0] sm:$0xff]
        %v1258 = vld [vmem:[#allocation2 + $0xa8] sm:$0xff]
        %v1259 = vld [vmem:[#allocation2 + $0xb0] sm:$0xff]
        %v1260 = vld [vmem:[#allocation2 + $0xb8] sm:$0xff]
        %v1261 = vld [vmem:[#allocation2 + $0xc0] sm:$0xff]
        %v1262 = vld [vmem:[#allocation2 + $0xc8] sm:$0xff]
        %v1263 = vld [vmem:[#allocation2 + $0xd0] sm:$0xff]
        %v1264 = vld [vmem:[#allocation2 + $0xd8] sm:$0xff]
        %v1265 = vld [vmem:[#allocation2 + $0xe0] sm:$0xff]
        %v1266 = vld [vmem:[#allocation2 + $0xe8] sm:$0xff]
        %v1267 = vld [vmem:[#allocation2 + $0xf0] sm:$0xff]
        %v1268 = vld [vmem:[#allocation2 + $0xf8] sm:$0xff]
        %s1269 = scalar_lea.vmem %s3, 1
        %v1270 = vld [vmem:[%s1269] ss:$8 sm:$0x3]
        %v1272 = vlaneseq
        %v1273 = vshrl.u32 %v1272, 7
        %v1274 = vsub.s32 0, %v1273
        %v1275 = vrot.slane %v1270, %v1274
        %v1276 = vlaneseq
        %v1277 = vshrl.u32 %v1276, 7
        %v1278 = vsub.s32 1, %v1277
        %v1279 = vrot.slane %v1270, %v1278
        %v1314 = vunpack.c.l.b16 %v1237
        %v1315 = vunpack.c.h.b16 %v1237
        %v1316 = vunpack.c.l.b16 %v1238
        %v1317 = vunpack.c.h.b16 %v1238
        %v1318 = vunpack.c.l.b16 %v1239
        %v1319 = vunpack.c.h.b16 %v1239
        %v1320 = vunpack.c.l.b16 %v1240
        %v1321 = vunpack.c.h.b16 %v1240
        %v1322 = vunpack.c.l.b16 %v1241
        %v1323 = vunpack.c.h.b16 %v1241
        %v1324 = vunpack.c.l.b16 %v1242
        %v1325 = vunpack.c.h.b16 %v1242
        %v1326 = vunpack.c.l.b16 %v1243
        %v1327 = vunpack.c.h.b16 %v1243
        %v1328 = vunpack.c.l.b16 %v1244
        %v1329 = vunpack.c.h.b16 %v1244
        %v1330 = vunpack.c.l.b16 %v1245
        %v1331 = vunpack.c.h.b16 %v1245
        %v1332 = vunpack.c.l.b16 %v1246
        %v1333 = vunpack.c.h.b16 %v1246
        %v1334 = vunpack.c.l.b16 %v1247
        %v1335 = vunpack.c.h.b16 %v1247
        %v1336 = vunpack.c.l.b16 %v1248
        %v1337 = vunpack.c.h.b16 %v1248
        %v1338 = vunpack.c.l.b16 %v1249
        %v1339 = vunpack.c.h.b16 %v1249
        %v1340 = vunpack.c.l.b16 %v1250
        %v1341 = vunpack.c.h.b16 %v1250
        %v1342 = vunpack.c.l.b16 %v1251
        %v1343 = vunpack.c.h.b16 %v1251
        %v1344 = vunpack.c.l.b16 %v1252
        %v1345 = vunpack.c.h.b16 %v1252
        %v1346 = vunpack.c.l.b16 %v1253
        %v1347 = vunpack.c.h.b16 %v1253
        %v1348 = vunpack.c.l.b16 %v1254
        %v1349 = vunpack.c.h.b16 %v1254
        %v1350 = vunpack.c.l.b16 %v1255
        %v1351 = vunpack.c.h.b16 %v1255
        %v1352 = vunpack.c.l.b16 %v1256
        %v1353 = vunpack.c.h.b16 %v1256
        %v1354 = vunpack.c.l.b16 %v1257
        %v1355 = vunpack.c.h.b16 %v1257
        %v1356 = vunpack.c.l.b16 %v1258
        %v1357 = vunpack.c.h.b16 %v1258
        %v1358 = vunpack.c.l.b16 %v1259
        %v1359 = vunpack.c.h.b16 %v1259
        %v1360 = vunpack.c.l.b16 %v1260
        %v1361 = vunpack.c.h.b16 %v1260
        %v1362 = vunpack.c.l.b16 %v1261
        %v1363 = vunpack.c.h.b16 %v1261
        %v1364 = vunpack.c.l.b16 %v1262
        %v1365 = vunpack.c.h.b16 %v1262
        %v1366 = vunpack.c.l.b16 %v1263
        %v1367 = vunpack.c.h.b16 %v1263
        %v1368 = vunpack.c.l.b16 %v1264
        %v1369 = vunpack.c.h.b16 %v1264
        %v1370 = vunpack.c.l.b16 %v1265
        %v1371 = vunpack.c.h.b16 %v1265
        %v1372 = vunpack.c.l.b16 %v1266
        %v1373 = vunpack.c.h.b16 %v1266
        %v1374 = vunpack.c.l.b16 %v1267
        %v1375 = vunpack.c.h.b16 %v1267
        %v1376 = vunpack.c.l.b16 %v1268
        %v1377 = vunpack.c.h.b16 %v1268
        %v1378 = vpack.c.b16 %v1316, %v1314
        %v1379 = vpack.c.b16 %v1317, %v1315
        %v1380 = vpack.c.b16 %v1320, %v1318
        %v1381 = vpack.c.b16 %v1321, %v1319
        %v1382 = vpack.c.b16 %v1324, %v1322
        %v1383 = vpack.c.b16 %v1325, %v1323
        %v1384 = vpack.c.b16 %v1328, %v1326
        %v1385 = vpack.c.b16 %v1329, %v1327
        %v1386 = vpack.c.b16 %v1332, %v1330
        %v1387 = vpack.c.b16 %v1333, %v1331
        %v1388 = vpack.c.b16 %v1336, %v1334
        %v1389 = vpack.c.b16 %v1337, %v1335
        %v1390 = vpack.c.b16 %v1340, %v1338
        %v1391 = vpack.c.b16 %v1341, %v1339
        %v1392 = vpack.c.b16 %v1344, %v1342
        %v1393 = vpack.c.b16 %v1345, %v1343
        %v1394 = vpack.c.b16 %v1348, %v1346
        %v1395 = vpack.c.b16 %v1349, %v1347
        %v1396 = vpack.c.b16 %v1352, %v1350
        %v1397 = vpack.c.b16 %v1353, %v1351
        %v1398 = vpack.c.b16 %v1356, %v1354
        %v1399 = vpack.c.b16 %v1357, %v1355
        %v1400 = vpack.c.b16 %v1360, %v1358
        %v1401 = vpack.c.b16 %v1361, %v1359
        %v1402 = vpack.c.b16 %v1364, %v1362
        %v1403 = vpack.c.b16 %v1365, %v1363
        %v1404 = vpack.c.b16 %v1368, %v1366
        %v1405 = vpack.c.b16 %v1369, %v1367
        %v1406 = vpack.c.b16 %v1372, %v1370
        %v1407 = vpack.c.b16 %v1373, %v1371
        %v1408 = vpack.c.b16 %v1376, %v1374
        %v1409 = vpack.c.b16 %v1377, %v1375
        %1442 = vmatprep.subr.bf16.mxu0 %v1379
        %1443 = vmatpush1.bf16.msra.mxu0 %v1378
        %1444 = vmatprep.subr.bf16.mxu0 %v1381
        %1445 = vmatpush1.bf16.msra.mxu0 %v1380
        %1446 = vmatprep.subr.bf16.mxu0 %v1383
        %1447 = vmatpush1.bf16.msra.mxu0 %v1382
        %1448 = vmatprep.subr.bf16.mxu0 %v1385
        %1449 = vmatpush1.bf16.msra.mxu0 %v1384
        %1450 = vmatprep.subr.bf16.mxu0 %v1387
        %1451 = vmatpush1.bf16.msra.mxu0 %v1386
        %1452 = vmatprep.subr.bf16.mxu0 %v1389
        %1453 = vmatpush1.bf16.msra.mxu0 %v1388
        %1454 = vmatprep.subr.bf16.mxu0 %v1391
        %1455 = vmatpush1.bf16.msra.mxu0 %v1390
        %1456 = vmatprep.subr.bf16.mxu0 %v1393
        %1457 = vmatpush1.bf16.msra.mxu0 %v1392
        %1458 = vmatprep.subr.bf16.mxu0 %v1395
        %1459 = vmatpush1.bf16.msra.mxu0 %v1394
        %1460 = vmatprep.subr.bf16.mxu0 %v1397
        %1461 = vmatpush1.bf16.msra.mxu0 %v1396
        %1462 = vmatprep.subr.bf16.mxu0 %v1399
        %1463 = vmatpush1.bf16.msra.mxu0 %v1398
        %1464 = vmatprep.subr.bf16.mxu0 %v1401
        %1465 = vmatpush1.bf16.msra.mxu0 %v1400
        %1466 = vmatprep.subr.bf16.mxu0 %v1403
        %1467 = vmatpush1.bf16.msra.mxu0 %v1402
        %1468 = vmatprep.subr.bf16.mxu0 %v1405
        %1469 = vmatpush1.bf16.msra.mxu0 %v1404
        %1470 = vmatprep.subr.bf16.mxu0 %v1407
        %1471 = vmatpush1.bf16.msra.mxu0 %v1406
        %1472 = vmatprep.subr.bf16.mxu0 %v1409
        %1473 = vmatpush1.bf16.msra.mxu0 %v1408
        %1474 = vmatprep.mubr.bf16.mxu0 %v1206
        %1475 = vmatmul.mubr.bf16.gmra.mrb[0].mxu0 %v1205
        %v1476 = vpop.f32.mrb[0].mxu0
        %v1477 = vadd.f32 %v1275, %v1476
        %v1478 = vpop.f32.mrb[0].mxu0
        %v1479 = vadd.f32 %v1279, %v1478
        %v1480 = vpop.f32.mrb[0].mxu0
        %v1481 = vadd.f32 %v1275, %v1480
        %v1482 = vpop.f32.mrb[0].mxu0
        %v1483 = vadd.f32 %v1279, %v1482
        %1484 = vmatprep.mubr.bf16.mxu0 %v1208
        %1485 = vmatmul.mubr.bf16.gmra.mrb[0].mxu0 %v1207
        %v1486 = vpop.f32.mrb[0].mxu0
        %v1487 = vadd.f32 %v1275, %v1486
        %v1488 = vpop.f32.mrb[0].mxu0
        %v1489 = vadd.f32 %v1279, %v1488
        %v1490 = vpop.f32.mrb[0].mxu0
        %v1491 = vadd.f32 %v1275, %v1490
        %v1492 = vpop.f32.mrb[0].mxu0
        %v1493 = vadd.f32 %v1279, %v1492
        %1494 = vmatprep.mubr.bf16.mxu0 %v1210
        %1495 = vmatmul.mubr.bf16.gmra.mrb[0].mxu0 %v1209
        %v1496 = vpop.f32.mrb[0].mxu0
        %v1497 = vadd.f32 %v1275, %v1496
        %v1498 = vpop.f32.mrb[0].mxu0
        %v1499 = vadd.f32 %v1279, %v1498
        %v1500 = vpop.f32.mrb[0].mxu0
        %v1501 = vadd.f32 %v1275, %v1500
        %v1502 = vpop.f32.mrb[0].mxu0
        %v1503 = vadd.f32 %v1279, %v1502
        %1504 = vmatprep.mubr.bf16.mxu0 %v1212
        %1505 = vmatmul.mubr.bf16.gmra.mrb[0].mxu0 %v1211
        %v1506 = vpop.f32.mrb[0].mxu0
        %v1507 = vadd.f32 %v1275, %v1506
        %v1508 = vpop.f32.mrb[0].mxu0
        %v1509 = vadd.f32 %v1279, %v1508
        %v1510 = vpop.f32.mrb[0].mxu0
        %v1511 = vadd.f32 %v1275, %v1510
        %v1512 = vpop.f32.mrb[0].mxu0
        %v1513 = vadd.f32 %v1279, %v1512
        %1514 = vmatprep.mubr.bf16.mxu0 %v1214
        %1515 = vmatmul.mubr.bf16.gmra.mrb[0].mxu0 %v1213
        %v1516 = vpop.f32.mrb[0].mxu0
        %v1517 = vadd.f32 %v1275, %v1516
        %v1518 = vpop.f32.mrb[0].mxu0
        %v1519 = vadd.f32 %v1279, %v1518
        %v1520 = vpop.f32.mrb[0].mxu0
        %v1521 = vadd.f32 %v1275, %v1520
        %v1522 = vpop.f32.mrb[0].mxu0
        %v1523 = vadd.f32 %v1279, %v1522
        %1524 = vmatprep.mubr.bf16.mxu0 %v1216
        %1525 = vmatmul.mubr.bf16.gmra.mrb[0].mxu0 %v1215
        %v1526 = vpop.f32.mrb[0].mxu0
        %v1527 = vadd.f32 %v1275, %v1526
        %v1528 = vpop.f32.mrb[0].mxu0
        %v1529 = vadd.f32 %v1279, %v1528
        %v1530 = vpop.f32.mrb[0].mxu0
        %v1531 = vadd.f32 %v1275, %v1530
        %v1532 = vpop.f32.mrb[0].mxu0
        %v1533 = vadd.f32 %v1279, %v1532
        %1534 = vmatprep.mubr.bf16.mxu0 %v1218
        %1535 = vmatmul.mubr.bf16.gmra.mrb[0].mxu0 %v1217
        %v1536 = vpop.f32.mrb[0].mxu0
        %v1537 = vadd.f32 %v1275, %v1536
        %v1538 = vpop.f32.mrb[0].mxu0
        %v1539 = vadd.f32 %v1279, %v1538
        %v1540 = vpop.f32.mrb[0].mxu0
        %v1541 = vadd.f32 %v1275, %v1540
        %v1542 = vpop.f32.mrb[0].mxu0
        %v1543 = vadd.f32 %v1279, %v1542
        %1544 = vmatprep.mubr.bf16.mxu0 %v1220
        %1545 = vmatmul.mubr.bf16.gmra.mrb[0].mxu0 %v1219
        %v1546 = vpop.f32.mrb[0].mxu0
        %v1547 = vadd.f32 %v1275, %v1546
        %v1548 = vpop.f32.mrb[0].mxu0
        %v1549 = vadd.f32 %v1279, %v1548
        %v1550 = vpop.f32.mrb[0].mxu0
        %v1551 = vadd.f32 %v1275, %v1550
        %v1552 = vpop.f32.mrb[0].mxu0
        %v1553 = vadd.f32 %v1279, %v1552
        %1554 = vmatprep.mubr.bf16.mxu0 %v1222
        %1555 = vmatmul.mubr.bf16.gmra.mrb[0].mxu0 %v1221
        %v1556 = vpop.f32.mrb[0].mxu0
        %v1557 = vadd.f32 %v1275, %v1556
        %v1558 = vpop.f32.mrb[0].mxu0
        %v1559 = vadd.f32 %v1279, %v1558
        %v1560 = vpop.f32.mrb[0].mxu0
        %v1561 = vadd.f32 %v1275, %v1560
        %v1562 = vpop.f32.mrb[0].mxu0
        %v1563 = vadd.f32 %v1279, %v1562
        %1564 = vmatprep.mubr.bf16.mxu0 %v1224
        %1565 = vmatmul.mubr.bf16.gmra.mrb[0].mxu0 %v1223
        %v1566 = vpop.f32.mrb[0].mxu0
        %v1567 = vadd.f32 %v1275, %v1566
        %v1568 = vpop.f32.mrb[0].mxu0
        %v1569 = vadd.f32 %v1279, %v1568
        %v1570 = vpop.f32.mrb[0].mxu0
        %v1571 = vadd.f32 %v1275, %v1570
        %v1572 = vpop.f32.mrb[0].mxu0
        %v1573 = vadd.f32 %v1279, %v1572
        %1574 = vmatprep.mubr.bf16.mxu0 %v1226
        %1575 = vmatmul.mubr.bf16.gmra.mrb[0].mxu0 %v1225
        %v1576 = vpop.f32.mrb[0].mxu0
        %v1577 = vadd.f32 %v1275, %v1576
        %v1578 = vpop.f32.mrb[0].mxu0
        %v1579 = vadd.f32 %v1279, %v1578
        %v1580 = vpop.f32.mrb[0].mxu0
        %v1581 = vadd.f32 %v1275, %v1580
        %v1582 = vpop.f32.mrb[0].mxu0
        %v1583 = vadd.f32 %v1279, %v1582
        %1584 = vmatprep.mubr.bf16.mxu0 %v1228
        %1585 = vmatmul.mubr.bf16.gmra.mrb[0].mxu0 %v1227
        %v1586 = vpop.f32.mrb[0].mxu0
        %v1587 = vadd.f32 %v1275, %v1586
        %v1588 = vpop.f32.mrb[0].mxu0
        %v1589 = vadd.f32 %v1279, %v1588
        %v1590 = vpop.f32.mrb[0].mxu0
        %v1591 = vadd.f32 %v1275, %v1590
        %v1592 = vpop.f32.mrb[0].mxu0
        %v1593 = vadd.f32 %v1279, %v1592
        %1594 = vmatprep.mubr.bf16.mxu0 %v1230
        %1595 = vmatmul.mubr.bf16.gmra.mrb[0].mxu0 %v1229
        %v1596 = vpop.f32.mrb[0].mxu0
        %v1597 = vadd.f32 %v1275, %v1596
        %v1598 = vpop.f32.mrb[0].mxu0
        %v1599 = vadd.f32 %v1279, %v1598
        %v1600 = vpop.f32.mrb[0].mxu0
        %v1601 = vadd.f32 %v1275, %v1600
        %v1602 = vpop.f32.mrb[0].mxu0
        %v1603 = vadd.f32 %v1279, %v1602
        %1604 = vmatprep.mubr.bf16.mxu0 %v1232
        %1605 = vmatmul.mubr.bf16.gmra.mrb[0].mxu0 %v1231
        %v1606 = vpop.f32.mrb[0].mxu0
        %v1607 = vadd.f32 %v1275, %v1606
        %v1608 = vpop.f32.mrb[0].mxu0
        %v1609 = vadd.f32 %v1279, %v1608
        %v1610 = vpop.f32.mrb[0].mxu0
        %v1611 = vadd.f32 %v1275, %v1610
        %v1612 = vpop.f32.mrb[0].mxu0
        %v1613 = vadd.f32 %v1279, %v1612
        %1614 = vmatprep.mubr.bf16.mxu0 %v1234
        %1615 = vmatmul.mubr.bf16.gmra.mrb[0].mxu0 %v1233
        %v1616 = vpop.f32.mrb[0].mxu0
        %v1617 = vadd.f32 %v1275, %v1616
        %v1618 = vpop.f32.mrb[0].mxu0
        %v1619 = vadd.f32 %v1279, %v1618
        %v1620 = vpop.f32.mrb[0].mxu0
        %v1621 = vadd.f32 %v1275, %v1620
        %v1622 = vpop.f32.mrb[0].mxu0
        %v1623 = vadd.f32 %v1279, %v1622
        %1624 = vmatprep.mubr.bf16.mxu0 %v1236
        %1625 = vmatmul.mubr.bf16.gmra.mrb[0].mxu0 %v1235
        %v1626 = vpop.f32.mrb[0].mxu0
        %v1627 = vadd.f32 %v1275, %v1626
        %v1628 = vpop.f32.mrb[0].mxu0
        %v1629 = vadd.f32 %v1279, %v1628
        %v1630 = vpop.f32.mrb[0].mxu0
        %v1631 = vadd.f32 %v1275, %v1630
        %v1632 = vpop.f32.mrb[0].mxu0
        %v1633 = vadd.f32 %v1279, %v1632
        %1634 = vdwg.mxu0
        %v1635 = vmax.f32 %v1477, 0.0
        %v1636 = vmax.f32 %v1479, 0.0
        %v1637 = vmax.f32 %v1481, 0.0
        %v1638 = vmax.f32 %v1483, 0.0
        %v1639 = vmax.f32 %v1487, 0.0
        %v1640 = vmax.f32 %v1489, 0.0
        %v1641 = vmax.f32 %v1491, 0.0
        %v1642 = vmax.f32 %v1493, 0.0
        %v1643 = vmax.f32 %v1497, 0.0
        %v1644 = vmax.f32 %v1499, 0.0
        %v1645 = vmax.f32 %v1501, 0.0
        %v1646 = vmax.f32 %v1503, 0.0
        %v1647 = vmax.f32 %v1507, 0.0
        %v1648 = vmax.f32 %v1509, 0.0
        %v1649 = vmax.f32 %v1511, 0.0
        %v1650 = vmax.f32 %v1513, 0.0
        %v1651 = vmax.f32 %v1517, 0.0
        %v1652 = vmax.f32 %v1519, 0.0
        %v1653 = vmax.f32 %v1521, 0.0
        %v1654 = vmax.f32 %v1523, 0.0
        %v1655 = vmax.f32 %v1527, 0.0
        %v1656 = vmax.f32 %v1529, 0.0
        %v1657 = vmax.f32 %v1531, 0.0
        %v1658 = vmax.f32 %v1533, 0.0
        %v1659 = vmax.f32 %v1537, 0.0
        %v1660 = vmax.f32 %v1539, 0.0
        %v1661 = vmax.f32 %v1541, 0.0
        %v1662 = vmax.f32 %v1543, 0.0
        %v1663 = vmax.f32 %v1547, 0.0
        %v1664 = vmax.f32 %v1549, 0.0
        %v1665 = vmax.f32 %v1551, 0.0
        %v1666 = vmax.f32 %v1553, 0.0
        %v1667 = vmax.f32 %v1557, 0.0
        %v1668 = vmax.f32 %v1559, 0.0
        %v1669 = vmax.f32 %v1561, 0.0
        %v1670 = vmax.f32 %v1563, 0.0
        %v1671 = vmax.f32 %v1567, 0.0
        %v1672 = vmax.f32 %v1569, 0.0
        %v1673 = vmax.f32 %v1571, 0.0
        %v1674 = vmax.f32 %v1573, 0.0
        %v1675 = vmax.f32 %v1577, 0.0
        %v1676 = vmax.f32 %v1579, 0.0
        %v1677 = vmax.f32 %v1581, 0.0
        %v1678 = vmax.f32 %v1583, 0.0
        %v1679 = vmax.f32 %v1587, 0.0
        %v1680 = vmax.f32 %v1589, 0.0
        %v1681 = vmax.f32 %v1591, 0.0
        %v1682 = vmax.f32 %v1593, 0.0
        %v1683 = vmax.f32 %v1597, 0.0
        %v1684 = vmax.f32 %v1599, 0.0
        %v1685 = vmax.f32 %v1601, 0.0
        %v1686 = vmax.f32 %v1603, 0.0
        %v1687 = vmax.f32 %v1607, 0.0
        %v1688 = vmax.f32 %v1609, 0.0
        %v1689 = vmax.f32 %v1611, 0.0
        %v1690 = vmax.f32 %v1613, 0.0
        %v1691 = vmax.f32 %v1617, 0.0
        %v1692 = vmax.f32 %v1619, 0.0
        %v1693 = vmax.f32 %v1621, 0.0
        %v1694 = vmax.f32 %v1623, 0.0
        %v1695 = vmax.f32 %v1627, 0.0
        %v1696 = vmax.f32 %v1629, 0.0
        %v1697 = vmax.f32 %v1631, 0.0
        %v1698 = vmax.f32 %v1633, 0.0
        %v1699 = vpack.c.bf16 %v1637, %v1635
        %v1700 = vpack.c.bf16 %v1638, %v1636
        %v1701 = vpack.c.bf16 %v1641, %v1639
        %v1702 = vpack.c.bf16 %v1642, %v1640
        %v1703 = vpack.c.bf16 %v1645, %v1643
        %v1704 = vpack.c.bf16 %v1646, %v1644
        %v1705 = vpack.c.bf16 %v1649, %v1647
        %v1706 = vpack.c.bf16 %v1650, %v1648
        %v1707 = vpack.c.bf16 %v1653, %v1651
        %v1708 = vpack.c.bf16 %v1654, %v1652
        %v1709 = vpack.c.bf16 %v1657, %v1655
        %v1710 = vpack.c.bf16 %v1658, %v1656
        %v1711 = vpack.c.bf16 %v1661, %v1659
        %v1712 = vpack.c.bf16 %v1662, %v1660
        %v1713 = vpack.c.bf16 %v1665, %v1663
        %v1714 = vpack.c.bf16 %v1666, %v1664
        %v1715 = vpack.c.bf16 %v1669, %v1667
        %v1716 = vpack.c.bf16 %v1670, %v1668
        %v1717 = vpack.c.bf16 %v1673, %v1671
        %v1718 = vpack.c.bf16 %v1674, %v1672
        %v1719 = vpack.c.bf16 %v1677, %v1675
        %v1720 = vpack.c.bf16 %v1678, %v1676
        %v1721 = vpack.c.bf16 %v1681, %v1679
        %v1722 = vpack.c.bf16 %v1682, %v1680
        %v1723 = vpack.c.bf16 %v1685, %v1683
        %v1724 = vpack.c.bf16 %v1686, %v1684
        %v1725 = vpack.c.bf16 %v1689, %v1687
        %v1726 = vpack.c.bf16 %v1690, %v1688
        %v1727 = vpack.c.bf16 %v1693, %v1691
        %v1728 = vpack.c.bf16 %v1694, %v1692
        %v1729 = vpack.c.bf16 %v1697, %v1695
        %v1730 = vpack.c.bf16 %v1698, %v1696
        %s1731 = scalar_lea.vmem [#allocation2], 256
        %v1732 = vld [vmem:[%s1731] sm:$0xff]
        %v1733 = vld [vmem:[%s1731 + $0x8] sm:$0xff]
        %v1734 = vld [vmem:[%s1731 + $0x10] sm:$0xff]
        %v1735 = vld [vmem:[%s1731 + $0x18] sm:$0xff]
        %v1736 = vld [vmem:[%s1731 + $0x20] sm:$0xff]
        %v1737 = vld [vmem:[%s1731 + $0x28] sm:$0xff]
        %v1738 = vld [vmem:[%s1731 + $0x30] sm:$0xff]
        %v1739 = vld [vmem:[%s1731 + $0x38] sm:$0xff]
        %v1740 = vld [vmem:[%s1731 + $0x40] sm:$0xff]
        %v1741 = vld [vmem:[%s1731 + $0x48] sm:$0xff]
        %v1742 = vld [vmem:[%s1731 + $0x50] sm:$0xff]
        %v1743 = vld [vmem:[%s1731 + $0x58] sm:$0xff]
        %v1744 = vld [vmem:[%s1731 + $0x60] sm:$0xff]
        %v1745 = vld [vmem:[%s1731 + $0x68] sm:$0xff]
        %v1746 = vld [vmem:[%s1731 + $0x70] sm:$0xff]
        %v1747 = vld [vmem:[%s1731 + $0x78] sm:$0xff]
        %v1748 = vld [vmem:[%s1731 + $0x80] sm:$0xff]
        %v1749 = vld [vmem:[%s1731 + $0x88] sm:$0xff]
        %v1750 = vld [vmem:[%s1731 + $0x90] sm:$0xff]
        %v1751 = vld [vmem:[%s1731 + $0x98] sm:$0xff]
        %v1752 = vld [vmem:[%s1731 + $0xa0] sm:$0xff]
        %v1753 = vld [vmem:[%s1731 + $0xa8] sm:$0xff]
        %v1754 = vld [vmem:[%s1731 + $0xb0] sm:$0xff]
        %v1755 = vld [vmem:[%s1731 + $0xb8] sm:$0xff]
        %v1756 = vld [vmem:[%s1731 + $0xc0] sm:$0xff]
        %v1757 = vld [vmem:[%s1731 + $0xc8] sm:$0xff]
        %v1758 = vld [vmem:[%s1731 + $0xd0] sm:$0xff]
        %v1759 = vld [vmem:[%s1731 + $0xd8] sm:$0xff]
        %v1760 = vld [vmem:[%s1731 + $0xe0] sm:$0xff]
        %v1761 = vld [vmem:[%s1731 + $0xe8] sm:$0xff]
        %v1762 = vld [vmem:[%s1731 + $0xf0] sm:$0xff]
        %v1763 = vld [vmem:[%s1731 + $0xf8] sm:$0xff]
        %s1764 = scalar_lea.vmem %s3, 2
        %v1765 = vld [vmem:[%s1764] ss:$8 sm:$0x3]
        %v1767 = vlaneseq
        %v1768 = vshrl.u32 %v1767, 7
        %v1769 = vsub.s32 0, %v1768
        %v1770 = vrot.slane %v1765, %v1769
        %v1771 = vlaneseq
        %v1772 = vshrl.u32 %v1771, 7
        %v1773 = vsub.s32 1, %v1772
        %v1774 = vrot.slane %v1765, %v1773
        %v1809 = vunpack.c.l.b16 %v1732
        %v1810 = vunpack.c.h.b16 %v1732
        %v1811 = vunpack.c.l.b16 %v1733
        %v1812 = vunpack.c.h.b16 %v1733
        %v1813 = vunpack.c.l.b16 %v1734
        %v1814 = vunpack.c.h.b16 %v1734
        %v1815 = vunpack.c.l.b16 %v1735
        %v1816 = vunpack.c.h.b16 %v1735
        %v1817 = vunpack.c.l.b16 %v1736
        %v1818 = vunpack.c.h.b16 %v1736
        %v1819 = vunpack.c.l.b16 %v1737
        %v1820 = vunpack.c.h.b16 %v1737
        %v1821 = vunpack.c.l.b16 %v1738
        %v1822 = vunpack.c.h.b16 %v1738
        %v1823 = vunpack.c.l.b16 %v1739
        %v1824 = vunpack.c.h.b16 %v1739
        %v1825 = vunpack.c.l.b16 %v1740
        %v1826 = vunpack.c.h.b16 %v1740
        %v1827 = vunpack.c.l.b16 %v1741
        %v1828 = vunpack.c.h.b16 %v1741
        %v1829 = vunpack.c.l.b16 %v1742
        %v1830 = vunpack.c.h.b16 %v1742
        %v1831 = vunpack.c.l.b16 %v1743
        %v1832 = vunpack.c.h.b16 %v1743
        %v1833 = vunpack.c.l.b16 %v1744
        %v1834 = vunpack.c.h.b16 %v1744
        %v1835 = vunpack.c.l.b16 %v1745
        %v1836 = vunpack.c.h.b16 %v1745
        %v1837 = vunpack.c.l.b16 %v1746
        %v1838 = vunpack.c.h.b16 %v1746
        %v1839 = vunpack.c.l.b16 %v1747
        %v1840 = vunpack.c.h.b16 %v1747
        %v1841 = vunpack.c.l.b16 %v1748
        %v1842 = vunpack.c.h.b16 %v1748
        %v1843 = vunpack.c.l.b16 %v1749
        %v1844 = vunpack.c.h.b16 %v1749
        %v1845 = vunpack.c.l.b16 %v1750
        %v1846 = vunpack.c.h.b16 %v1750
        %v1847 = vunpack.c.l.b16 %v1751
        %v1848 = vunpack.c.h.b16 %v1751
        %v1849 = vunpack.c.l.b16 %v1752
        %v1850 = vunpack.c.h.b16 %v1752
        %v1851 = vunpack.c.l.b16 %v1753
        %v1852 = vunpack.c.h.b16 %v1753
        %v1853 = vunpack.c.l.b16 %v1754
        %v1854 = vunpack.c.h.b16 %v1754
        %v1855 = vunpack.c.l.b16 %v1755
        %v1856 = vunpack.c.h.b16 %v1755
        %v1857 = vunpack.c.l.b16 %v1756
        %v1858 = vunpack.c.h.b16 %v1756
        %v1859 = vunpack.c.l.b16 %v1757
        %v1860 = vunpack.c.h.b16 %v1757
        %v1861 = vunpack.c.l.b16 %v1758
        %v1862 = vunpack.c.h.b16 %v1758
        %v1863 = vunpack.c.l.b16 %v1759
        %v1864 = vunpack.c.h.b16 %v1759
        %v1865 = vunpack.c.l.b16 %v1760
        %v1866 = vunpack.c.h.b16 %v1760
        %v1867 = vunpack.c.l.b16 %v1761
        %v1868 = vunpack.c.h.b16 %v1761
        %v1869 = vunpack.c.l.b16 %v1762
        %v1870 = vunpack.c.h.b16 %v1762
        %v1871 = vunpack.c.l.b16 %v1763
        %v1872 = vunpack.c.h.b16 %v1763
        %v1873 = vpack.c.b16 %v1811, %v1809
        %v1874 = vpack.c.b16 %v1812, %v1810
        %v1875 = vpack.c.b16 %v1815, %v1813
        %v1876 = vpack.c.b16 %v1816, %v1814
        %v1877 = vpack.c.b16 %v1819, %v1817
        %v1878 = vpack.c.b16 %v1820, %v1818
        %v1879 = vpack.c.b16 %v1823, %v1821
        %v1880 = vpack.c.b16 %v1824, %v1822
        %v1881 = vpack.c.b16 %v1827, %v1825
        %v1882 = vpack.c.b16 %v1828, %v1826
        %v1883 = vpack.c.b16 %v1831, %v1829
        %v1884 = vpack.c.b16 %v1832, %v1830
        %v1885 = vpack.c.b16 %v1835, %v1833
        %v1886 = vpack.c.b16 %v1836, %v1834
        %v1887 = vpack.c.b16 %v1839, %v1837
        %v1888 = vpack.c.b16 %v1840, %v1838
        %v1889 = vpack.c.b16 %v1843, %v1841
        %v1890 = vpack.c.b16 %v1844, %v1842
        %v1891 = vpack.c.b16 %v1847, %v1845
        %v1892 = vpack.c.b16 %v1848, %v1846
        %v1893 = vpack.c.b16 %v1851, %v1849
        %v1894 = vpack.c.b16 %v1852, %v1850
        %v1895 = vpack.c.b16 %v1855, %v1853
        %v1896 = vpack.c.b16 %v1856, %v1854
        %v1897 = vpack.c.b16 %v1859, %v1857
        %v1898 = vpack.c.b16 %v1860, %v1858
        %v1899 = vpack.c.b16 %v1863, %v1861
        %v1900 = vpack.c.b16 %v1864, %v1862
        %v1901 = vpack.c.b16 %v1867, %v1865
        %v1902 = vpack.c.b16 %v1868, %v1866
        %v1903 = vpack.c.b16 %v1871, %v1869
        %v1904 = vpack.c.b16 %v1872, %v1870
        %1937 = vmatprep.subr.bf16.mxu0 %v1874
        %1938 = vmatpush1.bf16.msra.mxu0 %v1873
        %1939 = vmatprep.subr.bf16.mxu0 %v1876
        %1940 = vmatpush1.bf16.msra.mxu0 %v1875
        %1941 = vmatprep.subr.bf16.mxu0 %v1878
        %1942 = vmatpush1.bf16.msra.mxu0 %v1877
        %1943 = vmatprep.subr.bf16.mxu0 %v1880
        %1944 = vmatpush1.bf16.msra.mxu0 %v1879
        %1945 = vmatprep.subr.bf16.mxu0 %v1882
        %1946 = vmatpush1.bf16.msra.mxu0 %v1881
        %1947 = vmatprep.subr.bf16.mxu0 %v1884
        %1948 = vmatpush1.bf16.msra.mxu0 %v1883
        %1949 = vmatprep.subr.bf16.mxu0 %v1886
        %1950 = vmatpush1.bf16.msra.mxu0 %v1885
        %1951 = vmatprep.subr.bf16.mxu0 %v1888
        %1952 = vmatpush1.bf16.msra.mxu0 %v1887
        %1953 = vmatprep.subr.bf16.mxu0 %v1890
        %1954 = vmatpush1.bf16.msra.mxu0 %v1889
        %1955 = vmatprep.subr.bf16.mxu0 %v1892
        %1956 = vmatpush1.bf16.msra.mxu0 %v1891
        %1957 = vmatprep.subr.bf16.mxu0 %v1894
        %1958 = vmatpush1.bf16.msra.mxu0 %v1893
        %1959 = vmatprep.subr.bf16.mxu0 %v1896
        %1960 = vmatpush1.bf16.msra.mxu0 %v1895
        %1961 = vmatprep.subr.bf16.mxu0 %v1898
        %1962 = vmatpush1.bf16.msra.mxu0 %v1897
        %1963 = vmatprep.subr.bf16.mxu0 %v1900
        %1964 = vmatpush1.bf16.msra.mxu0 %v1899
        %1965 = vmatprep.subr.bf16.mxu0 %v1902
        %1966 = vmatpush1.bf16.msra.mxu0 %v1901
        %1967 = vmatprep.subr.bf16.mxu0 %v1904
        %1968 = vmatpush1.bf16.msra.mxu0 %v1903
        %1969 = vmatprep.mubr.bf16.mxu0 %v1700
        %1970 = vmatmul.mubr.bf16.gmra.mrb[0].mxu0 %v1699
        %v1971 = vpop.f32.mrb[0].mxu0
        %v1972 = vadd.f32 %v1770, %v1971
        %v1973 = vpop.f32.mrb[0].mxu0
        %v1974 = vadd.f32 %v1774, %v1973
        %v1975 = vpop.f32.mrb[0].mxu0
        %v1976 = vadd.f32 %v1770, %v1975
        %v1977 = vpop.f32.mrb[0].mxu0
        %v1978 = vadd.f32 %v1774, %v1977
        %1979 = vmatprep.mubr.bf16.mxu0 %v1702
        %1980 = vmatmul.mubr.bf16.gmra.mrb[0].mxu0 %v1701
        %v1981 = vpop.f32.mrb[0].mxu0
        %v1982 = vadd.f32 %v1770, %v1981
        %v1983 = vpop.f32.mrb[0].mxu0
        %v1984 = vadd.f32 %v1774, %v1983
        %v1985 = vpop.f32.mrb[0].mxu0
        %v1986 = vadd.f32 %v1770, %v1985
        %v1987 = vpop.f32.mrb[0].mxu0
        %v1988 = vadd.f32 %v1774, %v1987
        %1989 = vmatprep.mubr.bf16.mxu0 %v1704
        %1990 = vmatmul.mubr.bf16.gmra.mrb[0].mxu0 %v1703
        %v1991 = vpop.f32.mrb[0].mxu0
        %v1992 = vadd.f32 %v1770, %v1991
        %v1993 = vpop.f32.mrb[0].mxu0
        %v1994 = vadd.f32 %v1774, %v1993
        %v1995 = vpop.f32.mrb[0].mxu0
        %v1996 = vadd.f32 %v1770, %v1995
        %v1997 = vpop.f32.mrb[0].mxu0
        %v1998 = vadd.f32 %v1774, %v1997
        %1999 = vmatprep.mubr.bf16.mxu0 %v1706
        %2000 = vmatmul.mubr.bf16.gmra.mrb[0].mxu0 %v1705
        %v2001 = vpop.f32.mrb[0].mxu0
        %v2002 = vadd.f32 %v1770, %v2001
        %v2003 = vpop.f32.mrb[0].mxu0
        %v2004 = vadd.f32 %v1774, %v2003
        %v2005 = vpop.f32.mrb[0].mxu0
        %v2006 = vadd.f32 %v1770, %v2005
        %v2007 = vpop.f32.mrb[0].mxu0
        %v2008 = vadd.f32 %v1774, %v2007
        %2009 = vmatprep.mubr.bf16.mxu0 %v1708
        %2010 = vmatmul.mubr.bf16.gmra.mrb[0].mxu0 %v1707
        %v2011 = vpop.f32.mrb[0].mxu0
        %v2012 = vadd.f32 %v1770, %v2011
        %v2013 = vpop.f32.mrb[0].mxu0
        %v2014 = vadd.f32 %v1774, %v2013
        %v2015 = vpop.f32.mrb[0].mxu0
        %v2016 = vadd.f32 %v1770, %v2015
        %v2017 = vpop.f32.mrb[0].mxu0
        %v2018 = vadd.f32 %v1774, %v2017
        %2019 = vmatprep.mubr.bf16.mxu0 %v1710
        %2020 = vmatmul.mubr.bf16.gmra.mrb[0].mxu0 %v1709
        %v2021 = vpop.f32.mrb[0].mxu0
        %v2022 = vadd.f32 %v1770, %v2021
        %v2023 = vpop.f32.mrb[0].mxu0
        %v2024 = vadd.f32 %v1774, %v2023
        %v2025 = vpop.f32.mrb[0].mxu0
        %v2026 = vadd.f32 %v1770, %v2025
        %v2027 = vpop.f32.mrb[0].mxu0
        %v2028 = vadd.f32 %v1774, %v2027
        %2029 = vmatprep.mubr.bf16.mxu0 %v1712
        %2030 = vmatmul.mubr.bf16.gmra.mrb[0].mxu0 %v1711
        %v2031 = vpop.f32.mrb[0].mxu0
        %v2032 = vadd.f32 %v1770, %v2031
        %v2033 = vpop.f32.mrb[0].mxu0
        %v2034 = vadd.f32 %v1774, %v2033
        %v2035 = vpop.f32.mrb[0].mxu0
        %v2036 = vadd.f32 %v1770, %v2035
        %v2037 = vpop.f32.mrb[0].mxu0
        %v2038 = vadd.f32 %v1774, %v2037
        %2039 = vmatprep.mubr.bf16.mxu0 %v1714
        %2040 = vmatmul.mubr.bf16.gmra.mrb[0].mxu0 %v1713
        %v2041 = vpop.f32.mrb[0].mxu0
        %v2042 = vadd.f32 %v1770, %v2041
        %v2043 = vpop.f32.mrb[0].mxu0
        %v2044 = vadd.f32 %v1774, %v2043
        %v2045 = vpop.f32.mrb[0].mxu0
        %v2046 = vadd.f32 %v1770, %v2045
        %v2047 = vpop.f32.mrb[0].mxu0
        %v2048 = vadd.f32 %v1774, %v2047
        %2049 = vmatprep.mubr.bf16.mxu0 %v1716
        %2050 = vmatmul.mubr.bf16.gmra.mrb[0].mxu0 %v1715
        %v2051 = vpop.f32.mrb[0].mxu0
        %v2052 = vadd.f32 %v1770, %v2051
        %v2053 = vpop.f32.mrb[0].mxu0
        %v2054 = vadd.f32 %v1774, %v2053
        %v2055 = vpop.f32.mrb[0].mxu0
        %v2056 = vadd.f32 %v1770, %v2055
        %v2057 = vpop.f32.mrb[0].mxu0
        %v2058 = vadd.f32 %v1774, %v2057
        %2059 = vmatprep.mubr.bf16.mxu0 %v1718
        %2060 = vmatmul.mubr.bf16.gmra.mrb[0].mxu0 %v1717
        %v2061 = vpop.f32.mrb[0].mxu0
        %v2062 = vadd.f32 %v1770, %v2061
        %v2063 = vpop.f32.mrb[0].mxu0
        %v2064 = vadd.f32 %v1774, %v2063
        %v2065 = vpop.f32.mrb[0].mxu0
        %v2066 = vadd.f32 %v1770, %v2065
        %v2067 = vpop.f32.mrb[0].mxu0
        %v2068 = vadd.f32 %v1774, %v2067
        %2069 = vmatprep.mubr.bf16.mxu0 %v1720
        %2070 = vmatmul.mubr.bf16.gmra.mrb[0].mxu0 %v1719
        %v2071 = vpop.f32.mrb[0].mxu0
        %v2072 = vadd.f32 %v1770, %v2071
        %v2073 = vpop.f32.mrb[0].mxu0
        %v2074 = vadd.f32 %v1774, %v2073
        %v2075 = vpop.f32.mrb[0].mxu0
        %v2076 = vadd.f32 %v1770, %v2075
        %v2077 = vpop.f32.mrb[0].mxu0
        %v2078 = vadd.f32 %v1774, %v2077
        %2079 = vmatprep.mubr.bf16.mxu0 %v1722
        %2080 = vmatmul.mubr.bf16.gmra.mrb[0].mxu0 %v1721
        %v2081 = vpop.f32.mrb[0].mxu0
        %v2082 = vadd.f32 %v1770, %v2081
        %v2083 = vpop.f32.mrb[0].mxu0
        %v2084 = vadd.f32 %v1774, %v2083
        %v2085 = vpop.f32.mrb[0].mxu0
        %v2086 = vadd.f32 %v1770, %v2085
        %v2087 = vpop.f32.mrb[0].mxu0
        %v2088 = vadd.f32 %v1774, %v2087
        %2089 = vmatprep.mubr.bf16.mxu0 %v1724
        %2090 = vmatmul.mubr.bf16.gmra.mrb[0].mxu0 %v1723
        %v2091 = vpop.f32.mrb[0].mxu0
        %v2092 = vadd.f32 %v1770, %v2091
        %v2093 = vpop.f32.mrb[0].mxu0
        %v2094 = vadd.f32 %v1774, %v2093
        %v2095 = vpop.f32.mrb[0].mxu0
        %v2096 = vadd.f32 %v1770, %v2095
        %v2097 = vpop.f32.mrb[0].mxu0
        %v2098 = vadd.f32 %v1774, %v2097
        %2099 = vmatprep.mubr.bf16.mxu0 %v1726
        %2100 = vmatmul.mubr.bf16.gmra.mrb[0].mxu0 %v1725
        %v2101 = vpop.f32.mrb[0].mxu0
        %v2102 = vadd.f32 %v1770, %v2101
        %v2103 = vpop.f32.mrb[0].mxu0
        %v2104 = vadd.f32 %v1774, %v2103
        %v2105 = vpop.f32.mrb[0].mxu0
        %v2106 = vadd.f32 %v1770, %v2105
        %v2107 = vpop.f32.mrb[0].mxu0
        %v2108 = vadd.f32 %v1774, %v2107
        %2109 = vmatprep.mubr.bf16.mxu0 %v1728
        %2110 = vmatmul.mubr.bf16.gmra.mrb[0].mxu0 %v1727
        %v2111 = vpop.f32.mrb[0].mxu0
        %v2112 = vadd.f32 %v1770, %v2111
        %v2113 = vpop.f32.mrb[0].mxu0
        %v2114 = vadd.f32 %v1774, %v2113
        %v2115 = vpop.f32.mrb[0].mxu0
        %v2116 = vadd.f32 %v1770, %v2115
        %v2117 = vpop.f32.mrb[0].mxu0
        %v2118 = vadd.f32 %v1774, %v2117
        %2119 = vmatprep.mubr.bf16.mxu0 %v1730
        %2120 = vmatmul.mubr.bf16.gmra.mrb[0].mxu0 %v1729
        %v2121 = vpop.f32.mrb[0].mxu0
        %v2122 = vadd.f32 %v1770, %v2121
        %v2123 = vpop.f32.mrb[0].mxu0
        %v2124 = vadd.f32 %v1774, %v2123
        %v2125 = vpop.f32.mrb[0].mxu0
        %v2126 = vadd.f32 %v1770, %v2125
        %v2127 = vpop.f32.mrb[0].mxu0
        %v2128 = vadd.f32 %v1774, %v2127
        %2129 = vdwg.mxu0
        %v2130 = vmax.f32 %v1972, 0.0
        %v2131 = vmax.f32 %v1974, 0.0
        %v2132 = vmax.f32 %v1976, 0.0
        %v2133 = vmax.f32 %v1978, 0.0
        %v2134 = vmax.f32 %v1982, 0.0
        %v2135 = vmax.f32 %v1984, 0.0
        %v2136 = vmax.f32 %v1986, 0.0
        %v2137 = vmax.f32 %v1988, 0.0
        %v2138 = vmax.f32 %v1992, 0.0
        %v2139 = vmax.f32 %v1994, 0.0
        %v2140 = vmax.f32 %v1996, 0.0
        %v2141 = vmax.f32 %v1998, 0.0
        %v2142 = vmax.f32 %v2002, 0.0
        %v2143 = vmax.f32 %v2004, 0.0
        %v2144 = vmax.f32 %v2006, 0.0
        %v2145 = vmax.f32 %v2008, 0.0
        %v2146 = vmax.f32 %v2012, 0.0
        %v2147 = vmax.f32 %v2014, 0.0
        %v2148 = vmax.f32 %v2016, 0.0
        %v2149 = vmax.f32 %v2018, 0.0
        %v2150 = vmax.f32 %v2022, 0.0
        %v2151 = vmax.f32 %v2024, 0.0
        %v2152 = vmax.f32 %v2026, 0.0
        %v2153 = vmax.f32 %v2028, 0.0
        %v2154 = vmax.f32 %v2032, 0.0
        %v2155 = vmax.f32 %v2034, 0.0
        %v2156 = vmax.f32 %v2036, 0.0
        %v2157 = vmax.f32 %v2038, 0.0
        %v2158 = vmax.f32 %v2042, 0.0
        %v2159 = vmax.f32 %v2044, 0.0
        %v2160 = vmax.f32 %v2046, 0.0
        %v2161 = vmax.f32 %v2048, 0.0
        %v2162 = vmax.f32 %v2052, 0.0
        %v2163 = vmax.f32 %v2054, 0.0
        %v2164 = vmax.f32 %v2056, 0.0
        %v2165 = vmax.f32 %v2058, 0.0
        %v2166 = vmax.f32 %v2062, 0.0
        %v2167 = vmax.f32 %v2064, 0.0
        %v2168 = vmax.f32 %v2066, 0.0
        %v2169 = vmax.f32 %v2068, 0.0
        %v2170 = vmax.f32 %v2072, 0.0
        %v2171 = vmax.f32 %v2074, 0.0
        %v2172 = vmax.f32 %v2076, 0.0
        %v2173 = vmax.f32 %v2078, 0.0
        %v2174 = vmax.f32 %v2082, 0.0
        %v2175 = vmax.f32 %v2084, 0.0
        %v2176 = vmax.f32 %v2086, 0.0
        %v2177 = vmax.f32 %v2088, 0.0
        %v2178 = vmax.f32 %v2092, 0.0
        %v2179 = vmax.f32 %v2094, 0.0
        %v2180 = vmax.f32 %v2096, 0.0
        %v2181 = vmax.f32 %v2098, 0.0
        %v2182 = vmax.f32 %v2102, 0.0
        %v2183 = vmax.f32 %v2104, 0.0
        %v2184 = vmax.f32 %v2106, 0.0
        %v2185 = vmax.f32 %v2108, 0.0
        %v2186 = vmax.f32 %v2112, 0.0
        %v2187 = vmax.f32 %v2114, 0.0
        %v2188 = vmax.f32 %v2116, 0.0
        %v2189 = vmax.f32 %v2118, 0.0
        %v2190 = vmax.f32 %v2122, 0.0
        %v2191 = vmax.f32 %v2124, 0.0
        %v2192 = vmax.f32 %v2126, 0.0
        %v2193 = vmax.f32 %v2128, 0.0
        %v2194 = vpack.c.bf16 %v2132, %v2130
        %v2195 = vpack.c.bf16 %v2133, %v2131
        %v2196 = vpack.c.bf16 %v2136, %v2134
        %v2197 = vpack.c.bf16 %v2137, %v2135
        %v2198 = vpack.c.bf16 %v2140, %v2138
        %v2199 = vpack.c.bf16 %v2141, %v2139
        %v2200 = vpack.c.bf16 %v2144, %v2142
        %v2201 = vpack.c.bf16 %v2145, %v2143
        %v2202 = vpack.c.bf16 %v2148, %v2146
        %v2203 = vpack.c.bf16 %v2149, %v2147
        %v2204 = vpack.c.bf16 %v2152, %v2150
        %v2205 = vpack.c.bf16 %v2153, %v2151
        %v2206 = vpack.c.bf16 %v2156, %v2154
        %v2207 = vpack.c.bf16 %v2157, %v2155
        %v2208 = vpack.c.bf16 %v2160, %v2158
        %v2209 = vpack.c.bf16 %v2161, %v2159
        %v2210 = vpack.c.bf16 %v2164, %v2162
        %v2211 = vpack.c.bf16 %v2165, %v2163
        %v2212 = vpack.c.bf16 %v2168, %v2166
        %v2213 = vpack.c.bf16 %v2169, %v2167
        %v2214 = vpack.c.bf16 %v2172, %v2170
        %v2215 = vpack.c.bf16 %v2173, %v2171
        %v2216 = vpack.c.bf16 %v2176, %v2174
        %v2217 = vpack.c.bf16 %v2177, %v2175
        %v2218 = vpack.c.bf16 %v2180, %v2178
        %v2219 = vpack.c.bf16 %v2181, %v2179
        %v2220 = vpack.c.bf16 %v2184, %v2182
        %v2221 = vpack.c.bf16 %v2185, %v2183
        %v2222 = vpack.c.bf16 %v2188, %v2186
        %v2223 = vpack.c.bf16 %v2189, %v2187
        %v2224 = vpack.c.bf16 %v2192, %v2190
        %v2225 = vpack.c.bf16 %v2193, %v2191
        %s2226 = scalar_lea.vmem [#allocation2], 512
        %v2227 = vld [vmem:[%s2226] sm:$0xff]
        %v2228 = vld [vmem:[%s2226 + $0x8] sm:$0xff]
        %v2229 = vld [vmem:[%s2226 + $0x10] sm:$0xff]
        %v2230 = vld [vmem:[%s2226 + $0x18] sm:$0xff]
        %v2231 = vld [vmem:[%s2226 + $0x20] sm:$0xff]
        %v2232 = vld [vmem:[%s2226 + $0x28] sm:$0xff]
        %v2233 = vld [vmem:[%s2226 + $0x30] sm:$0xff]
        %v2234 = vld [vmem:[%s2226 + $0x38] sm:$0xff]
        %v2235 = vld [vmem:[%s2226 + $0x40] sm:$0xff]
        %v2236 = vld [vmem:[%s2226 + $0x48] sm:$0xff]
        %v2237 = vld [vmem:[%s2226 + $0x50] sm:$0xff]
        %v2238 = vld [vmem:[%s2226 + $0x58] sm:$0xff]
        %v2239 = vld [vmem:[%s2226 + $0x60] sm:$0xff]
        %v2240 = vld [vmem:[%s2226 + $0x68] sm:$0xff]
        %v2241 = vld [vmem:[%s2226 + $0x70] sm:$0xff]
        %v2242 = vld [vmem:[%s2226 + $0x78] sm:$0xff]
        %v2243 = vld [vmem:[%s2226 + $0x80] sm:$0xff]
        %v2244 = vld [vmem:[%s2226 + $0x88] sm:$0xff]
        %v2245 = vld [vmem:[%s2226 + $0x90] sm:$0xff]
        %v2246 = vld [vmem:[%s2226 + $0x98] sm:$0xff]
        %v2247 = vld [vmem:[%s2226 + $0xa0] sm:$0xff]
        %v2248 = vld [vmem:[%s2226 + $0xa8] sm:$0xff]
        %v2249 = vld [vmem:[%s2226 + $0xb0] sm:$0xff]
        %v2250 = vld [vmem:[%s2226 + $0xb8] sm:$0xff]
        %v2251 = vld [vmem:[%s2226 + $0xc0] sm:$0xff]
        %v2252 = vld [vmem:[%s2226 + $0xc8] sm:$0xff]
        %v2253 = vld [vmem:[%s2226 + $0xd0] sm:$0xff]
        %v2254 = vld [vmem:[%s2226 + $0xd8] sm:$0xff]
        %v2255 = vld [vmem:[%s2226 + $0xe0] sm:$0xff]
        %v2256 = vld [vmem:[%s2226 + $0xe8] sm:$0xff]
        %v2257 = vld [vmem:[%s2226 + $0xf0] sm:$0xff]
        %v2258 = vld [vmem:[%s2226 + $0xf8] sm:$0xff]
        %s2259 = scalar_lea.vmem %s3, 3
        %v2260 = vld [vmem:[%s2259] ss:$8 sm:$0x3]
        %v2262 = vlaneseq
        %v2263 = vshrl.u32 %v2262, 7
        %v2264 = vsub.s32 0, %v2263
        %v2265 = vrot.slane %v2260, %v2264
        %v2266 = vlaneseq
        %v2267 = vshrl.u32 %v2266, 7
        %v2268 = vsub.s32 1, %v2267
        %v2269 = vrot.slane %v2260, %v2268
        %v2304 = vunpack.c.l.b16 %v2227
        %v2305 = vunpack.c.h.b16 %v2227
        %v2306 = vunpack.c.l.b16 %v2228
        %v2307 = vunpack.c.h.b16 %v2228
        %v2308 = vunpack.c.l.b16 %v2229
        %v2309 = vunpack.c.h.b16 %v2229
        %v2310 = vunpack.c.l.b16 %v2230
        %v2311 = vunpack.c.h.b16 %v2230
        %v2312 = vunpack.c.l.b16 %v2231
        %v2313 = vunpack.c.h.b16 %v2231
        %v2314 = vunpack.c.l.b16 %v2232
        %v2315 = vunpack.c.h.b16 %v2232
        %v2316 = vunpack.c.l.b16 %v2233
        %v2317 = vunpack.c.h.b16 %v2233
        %v2318 = vunpack.c.l.b16 %v2234
        %v2319 = vunpack.c.h.b16 %v2234
        %v2320 = vunpack.c.l.b16 %v2235
        %v2321 = vunpack.c.h.b16 %v2235
        %v2322 = vunpack.c.l.b16 %v2236
        %v2323 = vunpack.c.h.b16 %v2236
        %v2324 = vunpack.c.l.b16 %v2237
        %v2325 = vunpack.c.h.b16 %v2237
        %v2326 = vunpack.c.l.b16 %v2238
        %v2327 = vunpack.c.h.b16 %v2238
        %v2328 = vunpack.c.l.b16 %v2239
        %v2329 = vunpack.c.h.b16 %v2239
        %v2330 = vunpack.c.l.b16 %v2240
        %v2331 = vunpack.c.h.b16 %v2240
        %v2332 = vunpack.c.l.b16 %v2241
        %v2333 = vunpack.c.h.b16 %v2241
        %v2334 = vunpack.c.l.b16 %v2242
        %v2335 = vunpack.c.h.b16 %v2242
        %v2336 = vunpack.c.l.b16 %v2243
        %v2337 = vunpack.c.h.b16 %v2243
        %v2338 = vunpack.c.l.b16 %v2244
        %v2339 = vunpack.c.h.b16 %v2244
        %v2340 = vunpack.c.l.b16 %v2245
        %v2341 = vunpack.c.h.b16 %v2245
        %v2342 = vunpack.c.l.b16 %v2246
        %v2343 = vunpack.c.h.b16 %v2246
        %v2344 = vunpack.c.l.b16 %v2247
        %v2345 = vunpack.c.h.b16 %v2247
        %v2346 = vunpack.c.l.b16 %v2248
        %v2347 = vunpack.c.h.b16 %v2248
        %v2348 = vunpack.c.l.b16 %v2249
        %v2349 = vunpack.c.h.b16 %v2249
        %v2350 = vunpack.c.l.b16 %v2250
        %v2351 = vunpack.c.h.b16 %v2250
        %v2352 = vunpack.c.l.b16 %v2251
        %v2353 = vunpack.c.h.b16 %v2251
        %v2354 = vunpack.c.l.b16 %v2252
        %v2355 = vunpack.c.h.b16 %v2252
        %v2356 = vunpack.c.l.b16 %v2253
        %v2357 = vunpack.c.h.b16 %v2253
        %v2358 = vunpack.c.l.b16 %v2254
        %v2359 = vunpack.c.h.b16 %v2254
        %v2360 = vunpack.c.l.b16 %v2255
        %v2361 = vunpack.c.h.b16 %v2255
        %v2362 = vunpack.c.l.b16 %v2256
        %v2363 = vunpack.c.h.b16 %v2256
        %v2364 = vunpack.c.l.b16 %v2257
        %v2365 = vunpack.c.h.b16 %v2257
        %v2366 = vunpack.c.l.b16 %v2258
        %v2367 = vunpack.c.h.b16 %v2258
        %v2368 = vpack.c.b16 %v2306, %v2304
        %v2369 = vpack.c.b16 %v2307, %v2305
        %v2370 = vpack.c.b16 %v2310, %v2308
        %v2371 = vpack.c.b16 %v2311, %v2309
        %v2372 = vpack.c.b16 %v2314, %v2312
        %v2373 = vpack.c.b16 %v2315, %v2313
        %v2374 = vpack.c.b16 %v2318, %v2316
        %v2375 = vpack.c.b16 %v2319, %v2317
        %v2376 = vpack.c.b16 %v2322, %v2320
        %v2377 = vpack.c.b16 %v2323, %v2321
        %v2378 = vpack.c.b16 %v2326, %v2324
        %v2379 = vpack.c.b16 %v2327, %v2325
        %v2380 = vpack.c.b16 %v2330, %v2328
        %v2381 = vpack.c.b16 %v2331, %v2329
        %v2382 = vpack.c.b16 %v2334, %v2332
        %v2383 = vpack.c.b16 %v2335, %v2333
        %v2384 = vpack.c.b16 %v2338, %v2336
        %v2385 = vpack.c.b16 %v2339, %v2337
        %v2386 = vpack.c.b16 %v2342, %v2340
        %v2387 = vpack.c.b16 %v2343, %v2341
        %v2388 = vpack.c.b16 %v2346, %v2344
        %v2389 = vpack.c.b16 %v2347, %v2345
        %v2390 = vpack.c.b16 %v2350, %v2348
        %v2391 = vpack.c.b16 %v2351, %v2349
        %v2392 = vpack.c.b16 %v2354, %v2352
        %v2393 = vpack.c.b16 %v2355, %v2353
        %v2394 = vpack.c.b16 %v2358, %v2356
        %v2395 = vpack.c.b16 %v2359, %v2357
        %v2396 = vpack.c.b16 %v2362, %v2360
        %v2397 = vpack.c.b16 %v2363, %v2361
        %v2398 = vpack.c.b16 %v2366, %v2364
        %v2399 = vpack.c.b16 %v2367, %v2365
        %2432 = vmatprep.subr.bf16.mxu0 %v2369
        %2433 = vmatpush1.bf16.msra.mxu0 %v2368
        %2434 = vmatprep.subr.bf16.mxu0 %v2371
        %2435 = vmatpush1.bf16.msra.mxu0 %v2370
        %2436 = vmatprep.subr.bf16.mxu0 %v2373
        %2437 = vmatpush1.bf16.msra.mxu0 %v2372
        %2438 = vmatprep.subr.bf16.mxu0 %v2375
        %2439 = vmatpush1.bf16.msra.mxu0 %v2374
        %2440 = vmatprep.subr.bf16.mxu0 %v2377
        %2441 = vmatpush1.bf16.msra.mxu0 %v2376
        %2442 = vmatprep.subr.bf16.mxu0 %v2379
        %2443 = vmatpush1.bf16.msra.mxu0 %v2378
        %2444 = vmatprep.subr.bf16.mxu0 %v2381
        %2445 = vmatpush1.bf16.msra.mxu0 %v2380
        %2446 = vmatprep.subr.bf16.mxu0 %v2383
        %2447 = vmatpush1.bf16.msra.mxu0 %v2382
        %2448 = vmatprep.subr.bf16.mxu0 %v2385
        %2449 = vmatpush1.bf16.msra.mxu0 %v2384
        %2450 = vmatprep.subr.bf16.mxu0 %v2387
        %2451 = vmatpush1.bf16.msra.mxu0 %v2386
        %2452 = vmatprep.subr.bf16.mxu0 %v2389
        %2453 = vmatpush1.bf16.msra.mxu0 %v2388
        %2454 = vmatprep.subr.bf16.mxu0 %v2391
        %2455 = vmatpush1.bf16.msra.mxu0 %v2390
        %2456 = vmatprep.subr.bf16.mxu0 %v2393
        %2457 = vmatpush1.bf16.msra.mxu0 %v2392
        %2458 = vmatprep.subr.bf16.mxu0 %v2395
        %2459 = vmatpush1.bf16.msra.mxu0 %v2394
        %2460 = vmatprep.subr.bf16.mxu0 %v2397
        %2461 = vmatpush1.bf16.msra.mxu0 %v2396
        %2462 = vmatprep.subr.bf16.mxu0 %v2399
        %2463 = vmatpush1.bf16.msra.mxu0 %v2398
        %2464 = vmatprep.mubr.bf16.mxu0 %v2195
        %2465 = vmatmul.mubr.bf16.gmra.mrb[0].mxu0 %v2194
        %v2466 = vpop.f32.mrb[0].mxu0
        %v2467 = vadd.f32 %v2265, %v2466
        %v2468 = vpop.f32.mrb[0].mxu0
        %v2469 = vadd.f32 %v2269, %v2468
        %v2470 = vpop.f32.mrb[0].mxu0
        %v2471 = vadd.f32 %v2265, %v2470
        %v2472 = vpop.f32.mrb[0].mxu0
        %v2473 = vadd.f32 %v2269, %v2472
        %2474 = vmatprep.mubr.bf16.mxu0 %v2197
        %2475 = vmatmul.mubr.bf16.gmra.mrb[0].mxu0 %v2196
        %v2476 = vpop.f32.mrb[0].mxu0
        %v2477 = vadd.f32 %v2265, %v2476
        %v2478 = vpop.f32.mrb[0].mxu0
        %v2479 = vadd.f32 %v2269, %v2478
        %v2480 = vpop.f32.mrb[0].mxu0
        %v2481 = vadd.f32 %v2265, %v2480
        %v2482 = vpop.f32.mrb[0].mxu0
        %v2483 = vadd.f32 %v2269, %v2482
        %2484 = vmatprep.mubr.bf16.mxu0 %v2199
        %2485 = vmatmul.mubr.bf16.gmra.mrb[0].mxu0 %v2198
        %v2486 = vpop.f32.mrb[0].mxu0
        %v2487 = vadd.f32 %v2265, %v2486
        %v2488 = vpop.f32.mrb[0].mxu0
        %v2489 = vadd.f32 %v2269, %v2488
        %v2490 = vpop.f32.mrb[0].mxu0
        %v2491 = vadd.f32 %v2265, %v2490
        %v2492 = vpop.f32.mrb[0].mxu0
        %v2493 = vadd.f32 %v2269, %v2492
        %2494 = vmatprep.mubr.bf16.mxu0 %v2201
        %2495 = vmatmul.mubr.bf16.gmra.mrb[0].mxu0 %v2200
        %v2496 = vpop.f32.mrb[0].mxu0
        %v2497 = vadd.f32 %v2265, %v2496
        %v2498 = vpop.f32.mrb[0].mxu0
        %v2499 = vadd.f32 %v2269, %v2498
        %v2500 = vpop.f32.mrb[0].mxu0
        %v2501 = vadd.f32 %v2265, %v2500
        %v2502 = vpop.f32.mrb[0].mxu0
        %v2503 = vadd.f32 %v2269, %v2502
        %2504 = vmatprep.mubr.bf16.mxu0 %v2203
        %2505 = vmatmul.mubr.bf16.gmra.mrb[0].mxu0 %v2202
        %v2506 = vpop.f32.mrb[0].mxu0
        %v2507 = vadd.f32 %v2265, %v2506
        %v2508 = vpop.f32.mrb[0].mxu0
        %v2509 = vadd.f32 %v2269, %v2508
        %v2510 = vpop.f32.mrb[0].mxu0
        %v2511 = vadd.f32 %v2265, %v2510
        %v2512 = vpop.f32.mrb[0].mxu0
        %v2513 = vadd.f32 %v2269, %v2512
        %2514 = vmatprep.mubr.bf16.mxu0 %v2205
        %2515 = vmatmul.mubr.bf16.gmra.mrb[0].mxu0 %v2204
        %v2516 = vpop.f32.mrb[0].mxu0
        %v2517 = vadd.f32 %v2265, %v2516
        %v2518 = vpop.f32.mrb[0].mxu0
        %v2519 = vadd.f32 %v2269, %v2518
        %v2520 = vpop.f32.mrb[0].mxu0
        %v2521 = vadd.f32 %v2265, %v2520
        %v2522 = vpop.f32.mrb[0].mxu0
        %v2523 = vadd.f32 %v2269, %v2522
        %2524 = vmatprep.mubr.bf16.mxu0 %v2207
        %2525 = vmatmul.mubr.bf16.gmra.mrb[0].mxu0 %v2206
        %v2526 = vpop.f32.mrb[0].mxu0
        %v2527 = vadd.f32 %v2265, %v2526
        %v2528 = vpop.f32.mrb[0].mxu0
        %v2529 = vadd.f32 %v2269, %v2528
        %v2530 = vpop.f32.mrb[0].mxu0
        %v2531 = vadd.f32 %v2265, %v2530
        %v2532 = vpop.f32.mrb[0].mxu0
        %v2533 = vadd.f32 %v2269, %v2532
        %2534 = vmatprep.mubr.bf16.mxu0 %v2209
        %2535 = vmatmul.mubr.bf16.gmra.mrb[0].mxu0 %v2208
        %v2536 = vpop.f32.mrb[0].mxu0
        %v2537 = vadd.f32 %v2265, %v2536
        %v2538 = vpop.f32.mrb[0].mxu0
        %v2539 = vadd.f32 %v2269, %v2538
        %v2540 = vpop.f32.mrb[0].mxu0
        %v2541 = vadd.f32 %v2265, %v2540
        %v2542 = vpop.f32.mrb[0].mxu0
        %v2543 = vadd.f32 %v2269, %v2542
        %2544 = vmatprep.mubr.bf16.mxu0 %v2211
        %2545 = vmatmul.mubr.bf16.gmra.mrb[0].mxu0 %v2210
        %v2546 = vpop.f32.mrb[0].mxu0
        %v2547 = vadd.f32 %v2265, %v2546
        %v2548 = vpop.f32.mrb[0].mxu0
        %v2549 = vadd.f32 %v2269, %v2548
        %v2550 = vpop.f32.mrb[0].mxu0
        %v2551 = vadd.f32 %v2265, %v2550
        %v2552 = vpop.f32.mrb[0].mxu0
        %v2553 = vadd.f32 %v2269, %v2552
        %2554 = vmatprep.mubr.bf16.mxu0 %v2213
        %2555 = vmatmul.mubr.bf16.gmra.mrb[0].mxu0 %v2212
        %v2556 = vpop.f32.mrb[0].mxu0
        %v2557 = vadd.f32 %v2265, %v2556
        %v2558 = vpop.f32.mrb[0].mxu0
        %v2559 = vadd.f32 %v2269, %v2558
        %v2560 = vpop.f32.mrb[0].mxu0
        %v2561 = vadd.f32 %v2265, %v2560
        %v2562 = vpop.f32.mrb[0].mxu0
        %v2563 = vadd.f32 %v2269, %v2562
        %2564 = vmatprep.mubr.bf16.mxu0 %v2215
        %2565 = vmatmul.mubr.bf16.gmra.mrb[0].mxu0 %v2214
        %v2566 = vpop.f32.mrb[0].mxu0
        %v2567 = vadd.f32 %v2265, %v2566
        %v2568 = vpop.f32.mrb[0].mxu0
        %v2569 = vadd.f32 %v2269, %v2568
        %v2570 = vpop.f32.mrb[0].mxu0
        %v2571 = vadd.f32 %v2265, %v2570
        %v2572 = vpop.f32.mrb[0].mxu0
        %v2573 = vadd.f32 %v2269, %v2572
        %2574 = vmatprep.mubr.bf16.mxu0 %v2217
        %2575 = vmatmul.mubr.bf16.gmra.mrb[0].mxu0 %v2216
        %v2576 = vpop.f32.mrb[0].mxu0
        %v2577 = vadd.f32 %v2265, %v2576
        %v2578 = vpop.f32.mrb[0].mxu0
        %v2579 = vadd.f32 %v2269, %v2578
        %v2580 = vpop.f32.mrb[0].mxu0
        %v2581 = vadd.f32 %v2265, %v2580
        %v2582 = vpop.f32.mrb[0].mxu0
        %v2583 = vadd.f32 %v2269, %v2582
        %2584 = vmatprep.mubr.bf16.mxu0 %v2219
        %2585 = vmatmul.mubr.bf16.gmra.mrb[0].mxu0 %v2218
        %v2586 = vpop.f32.mrb[0].mxu0
        %v2587 = vadd.f32 %v2265, %v2586
        %v2588 = vpop.f32.mrb[0].mxu0
        %v2589 = vadd.f32 %v2269, %v2588
        %v2590 = vpop.f32.mrb[0].mxu0
        %v2591 = vadd.f32 %v2265, %v2590
        %v2592 = vpop.f32.mrb[0].mxu0
        %v2593 = vadd.f32 %v2269, %v2592
        %2594 = vmatprep.mubr.bf16.mxu0 %v2221
        %2595 = vmatmul.mubr.bf16.gmra.mrb[0].mxu0 %v2220
        %v2596 = vpop.f32.mrb[0].mxu0
        %v2597 = vadd.f32 %v2265, %v2596
        %v2598 = vpop.f32.mrb[0].mxu0
        %v2599 = vadd.f32 %v2269, %v2598
        %v2600 = vpop.f32.mrb[0].mxu0
        %v2601 = vadd.f32 %v2265, %v2600
        %v2602 = vpop.f32.mrb[0].mxu0
        %v2603 = vadd.f32 %v2269, %v2602
        %2604 = vmatprep.mubr.bf16.mxu0 %v2223
        %2605 = vmatmul.mubr.bf16.gmra.mrb[0].mxu0 %v2222
        %v2606 = vpop.f32.mrb[0].mxu0
        %v2607 = vadd.f32 %v2265, %v2606
        %v2608 = vpop.f32.mrb[0].mxu0
        %v2609 = vadd.f32 %v2269, %v2608
        %v2610 = vpop.f32.mrb[0].mxu0
        %v2611 = vadd.f32 %v2265, %v2610
        %v2612 = vpop.f32.mrb[0].mxu0
        %v2613 = vadd.f32 %v2269, %v2612
        %2614 = vmatprep.mubr.bf16.mxu0 %v2225
        %2615 = vmatmul.mubr.bf16.gmra.mrb[0].mxu0 %v2224
        %v2616 = vpop.f32.mrb[0].mxu0
        %v2617 = vadd.f32 %v2265, %v2616
        %v2618 = vpop.f32.mrb[0].mxu0
        %v2619 = vadd.f32 %v2269, %v2618
        %v2620 = vpop.f32.mrb[0].mxu0
        %v2621 = vadd.f32 %v2265, %v2620
        %v2622 = vpop.f32.mrb[0].mxu0
        %v2623 = vadd.f32 %v2269, %v2622
        %2624 = vdwg.mxu0
        %v2625 = vmax.f32 %v2467, 0.0
        %v2626 = vmax.f32 %v2469, 0.0
        %v2627 = vmax.f32 %v2471, 0.0
        %v2628 = vmax.f32 %v2473, 0.0
        %v2629 = vmax.f32 %v2477, 0.0
        %v2630 = vmax.f32 %v2479, 0.0
        %v2631 = vmax.f32 %v2481, 0.0
        %v2632 = vmax.f32 %v2483, 0.0
        %v2633 = vmax.f32 %v2487, 0.0
        %v2634 = vmax.f32 %v2489, 0.0
        %v2635 = vmax.f32 %v2491, 0.0
        %v2636 = vmax.f32 %v2493, 0.0
        %v2637 = vmax.f32 %v2497, 0.0
        %v2638 = vmax.f32 %v2499, 0.0
        %v2639 = vmax.f32 %v2501, 0.0
        %v2640 = vmax.f32 %v2503, 0.0
        %v2641 = vmax.f32 %v2507, 0.0
        %v2642 = vmax.f32 %v2509, 0.0
        %v2643 = vmax.f32 %v2511, 0.0
        %v2644 = vmax.f32 %v2513, 0.0
        %v2645 = vmax.f32 %v2517, 0.0
        %v2646 = vmax.f32 %v2519, 0.0
        %v2647 = vmax.f32 %v2521, 0.0
        %v2648 = vmax.f32 %v2523, 0.0
        %v2649 = vmax.f32 %v2527, 0.0
        %v2650 = vmax.f32 %v2529, 0.0
        %v2651 = vmax.f32 %v2531, 0.0
        %v2652 = vmax.f32 %v2533, 0.0
        %v2653 = vmax.f32 %v2537, 0.0
        %v2654 = vmax.f32 %v2539, 0.0
        %v2655 = vmax.f32 %v2541, 0.0
        %v2656 = vmax.f32 %v2543, 0.0
        %v2657 = vmax.f32 %v2547, 0.0
        %v2658 = vmax.f32 %v2549, 0.0
        %v2659 = vmax.f32 %v2551, 0.0
        %v2660 = vmax.f32 %v2553, 0.0
        %v2661 = vmax.f32 %v2557, 0.0
        %v2662 = vmax.f32 %v2559, 0.0
        %v2663 = vmax.f32 %v2561, 0.0
        %v2664 = vmax.f32 %v2563, 0.0
        %v2665 = vmax.f32 %v2567, 0.0
        %v2666 = vmax.f32 %v2569, 0.0
        %v2667 = vmax.f32 %v2571, 0.0
        %v2668 = vmax.f32 %v2573, 0.0
        %v2669 = vmax.f32 %v2577, 0.0
        %v2670 = vmax.f32 %v2579, 0.0
        %v2671 = vmax.f32 %v2581, 0.0
        %v2672 = vmax.f32 %v2583, 0.0
        %v2673 = vmax.f32 %v2587, 0.0
        %v2674 = vmax.f32 %v2589, 0.0
        %v2675 = vmax.f32 %v2591, 0.0
        %v2676 = vmax.f32 %v2593, 0.0
        %v2677 = vmax.f32 %v2597, 0.0
        %v2678 = vmax.f32 %v2599, 0.0
        %v2679 = vmax.f32 %v2601, 0.0
        %v2680 = vmax.f32 %v2603, 0.0
        %v2681 = vmax.f32 %v2607, 0.0
        %v2682 = vmax.f32 %v2609, 0.0
        %v2683 = vmax.f32 %v2611, 0.0
        %v2684 = vmax.f32 %v2613, 0.0
        %v2685 = vmax.f32 %v2617, 0.0
        %v2686 = vmax.f32 %v2619, 0.0
        %v2687 = vmax.f32 %v2621, 0.0
        %v2688 = vmax.f32 %v2623, 0.0
        %v2689 = vpack.c.bf16 %v2627, %v2625
        %v2690 = vpack.c.bf16 %v2628, %v2626
        %v2691 = vpack.c.bf16 %v2631, %v2629
        %v2692 = vpack.c.bf16 %v2632, %v2630
        %v2693 = vpack.c.bf16 %v2635, %v2633
        %v2694 = vpack.c.bf16 %v2636, %v2634
        %v2695 = vpack.c.bf16 %v2639, %v2637
        %v2696 = vpack.c.bf16 %v2640, %v2638
        %v2697 = vpack.c.bf16 %v2643, %v2641
        %v2698 = vpack.c.bf16 %v2644, %v2642
        %v2699 = vpack.c.bf16 %v2647, %v2645
        %v2700 = vpack.c.bf16 %v2648, %v2646
        %v2701 = vpack.c.bf16 %v2651, %v2649
        %v2702 = vpack.c.bf16 %v2652, %v2650
        %v2703 = vpack.c.bf16 %v2655, %v2653
        %v2704 = vpack.c.bf16 %v2656, %v2654
        %v2705 = vpack.c.bf16 %v2659, %v2657
        %v2706 = vpack.c.bf16 %v2660, %v2658
        %v2707 = vpack.c.bf16 %v2663, %v2661
        %v2708 = vpack.c.bf16 %v2664, %v2662
        %v2709 = vpack.c.bf16 %v2667, %v2665
        %v2710 = vpack.c.bf16 %v2668, %v2666
        %v2711 = vpack.c.bf16 %v2671, %v2669
        %v2712 = vpack.c.bf16 %v2672, %v2670
        %v2713 = vpack.c.bf16 %v2675, %v2673
        %v2714 = vpack.c.bf16 %v2676, %v2674
        %v2715 = vpack.c.bf16 %v2679, %v2677
        %v2716 = vpack.c.bf16 %v2680, %v2678
        %v2717 = vpack.c.bf16 %v2683, %v2681
        %v2718 = vpack.c.bf16 %v2684, %v2682
        %v2719 = vpack.c.bf16 %v2687, %v2685
        %v2720 = vpack.c.bf16 %v2688, %v2686
        %s2721 = scalar_lea.vmem [#allocation2], 768
        %v2722 = vld [vmem:[%s2721] sm:$0xff]
        %v2723 = vld [vmem:[%s2721 + $0x8] sm:$0xff]
        %v2724 = vld [vmem:[%s2721 + $0x10] sm:$0xff]
        %v2725 = vld [vmem:[%s2721 + $0x18] sm:$0xff]
        %v2726 = vld [vmem:[%s2721 + $0x20] sm:$0xff]
        %v2727 = vld [vmem:[%s2721 + $0x28] sm:$0xff]
        %v2728 = vld [vmem:[%s2721 + $0x30] sm:$0xff]
        %v2729 = vld [vmem:[%s2721 + $0x38] sm:$0xff]
        %v2730 = vld [vmem:[%s2721 + $0x40] sm:$0xff]
        %v2731 = vld [vmem:[%s2721 + $0x48] sm:$0xff]
        %v2732 = vld [vmem:[%s2721 + $0x50] sm:$0xff]
        %v2733 = vld [vmem:[%s2721 + $0x58] sm:$0xff]
        %v2734 = vld [vmem:[%s2721 + $0x60] sm:$0xff]
        %v2735 = vld [vmem:[%s2721 + $0x68] sm:$0xff]
        %v2736 = vld [vmem:[%s2721 + $0x70] sm:$0xff]
        %v2737 = vld [vmem:[%s2721 + $0x78] sm:$0xff]
        %v2738 = vld [vmem:[%s2721 + $0x80] sm:$0xff]
        %v2739 = vld [vmem:[%s2721 + $0x88] sm:$0xff]
        %v2740 = vld [vmem:[%s2721 + $0x90] sm:$0xff]
        %v2741 = vld [vmem:[%s2721 + $0x98] sm:$0xff]
        %v2742 = vld [vmem:[%s2721 + $0xa0] sm:$0xff]
        %v2743 = vld [vmem:[%s2721 + $0xa8] sm:$0xff]
        %v2744 = vld [vmem:[%s2721 + $0xb0] sm:$0xff]
        %v2745 = vld [vmem:[%s2721 + $0xb8] sm:$0xff]
        %v2746 = vld [vmem:[%s2721 + $0xc0] sm:$0xff]
        %v2747 = vld [vmem:[%s2721 + $0xc8] sm:$0xff]
        %v2748 = vld [vmem:[%s2721 + $0xd0] sm:$0xff]
        %v2749 = vld [vmem:[%s2721 + $0xd8] sm:$0xff]
        %v2750 = vld [vmem:[%s2721 + $0xe0] sm:$0xff]
        %v2751 = vld [vmem:[%s2721 + $0xe8] sm:$0xff]
        %v2752 = vld [vmem:[%s2721 + $0xf0] sm:$0xff]
        %v2753 = vld [vmem:[%s2721 + $0xf8] sm:$0xff]
        %s2754 = scalar_lea.vmem %s1, 16
        %v2755 = vld [vmem:[%s2754] sm:$0xff]
        %v2756 = vld [vmem:[%s2754 + $0x8] sm:$0xff]
        %v2757 = vlaneseq
        %v2758 = vshrl.u32 %v2757, 7
        %v2759 = vsub.s32 0, %v2758
        %v2760 = vrot.slane %v2755, %v2759
        %v2761 = vlaneseq
        %v2762 = vshrl.u32 %v2761, 7
        %v2763 = vsub.s32 0, %v2762
        %v2764 = vrot.slane %v2756, %v2763
        %v2765 = vmul.f32 %v308, %v2760
        %v2766 = vmul.f32 %v308, %v2764
        %v2767 = vmul.f32 %v313, %v2760
        %v2768 = vmul.f32 %v313, %v2764
        %v2769 = vmul.f32 %v318, %v2760
        %v2770 = vmul.f32 %v318, %v2764
        %v2771 = vmul.f32 %v323, %v2760
        %v2772 = vmul.f32 %v323, %v2764
        %v2773 = vmul.f32 %v328, %v2760
        %v2774 = vmul.f32 %v328, %v2764
        %v2775 = vmul.f32 %v333, %v2760
        %v2776 = vmul.f32 %v333, %v2764
        %v2777 = vmul.f32 %v338, %v2760
        %v2778 = vmul.f32 %v338, %v2764
        %v2779 = vmul.f32 %v343, %v2760
        %v2780 = vmul.f32 %v343, %v2764
        %v2781 = vmul.f32 %v348, %v2760
        %v2782 = vmul.f32 %v348, %v2764
        %v2783 = vmul.f32 %v353, %v2760
        %v2784 = vmul.f32 %v353, %v2764
        %v2785 = vmul.f32 %v358, %v2760
        %v2786 = vmul.f32 %v358, %v2764
        %v2787 = vmul.f32 %v363, %v2760
        %v2788 = vmul.f32 %v363, %v2764
        %v2789 = vmul.f32 %v368, %v2760
        %v2790 = vmul.f32 %v368, %v2764
        %v2791 = vmul.f32 %v373, %v2760
        %v2792 = vmul.f32 %v373, %v2764
        %v2793 = vmul.f32 %v378, %v2760
        %v2794 = vmul.f32 %v378, %v2764
        %v2795 = vmul.f32 %v383, %v2760
        %v2796 = vmul.f32 %v383, %v2764
        %v2797 = vmul.f32 %v388, %v2760
        %v2798 = vmul.f32 %v388, %v2764
        %v2799 = vmul.f32 %v393, %v2760
        %v2800 = vmul.f32 %v393, %v2764
        %v2801 = vmul.f32 %v398, %v2760
        %v2802 = vmul.f32 %v398, %v2764
        %v2803 = vmul.f32 %v403, %v2760
        %v2804 = vmul.f32 %v403, %v2764
        %v2805 = vmul.f32 %v408, %v2760
        %v2806 = vmul.f32 %v408, %v2764
        %v2807 = vmul.f32 %v413, %v2760
        %v2808 = vmul.f32 %v413, %v2764
        %v2809 = vmul.f32 %v418, %v2760
        %v2810 = vmul.f32 %v418, %v2764
        %v2811 = vmul.f32 %v423, %v2760
        %v2812 = vmul.f32 %v423, %v2764
        %v2813 = vmul.f32 %v428, %v2760
        %v2814 = vmul.f32 %v428, %v2764
        %v2815 = vmul.f32 %v433, %v2760
        %v2816 = vmul.f32 %v433, %v2764
        %v2817 = vmul.f32 %v438, %v2760
        %v2818 = vmul.f32 %v438, %v2764
        %v2819 = vmul.f32 %v443, %v2760
        %v2820 = vmul.f32 %v443, %v2764
        %v2821 = vmul.f32 %v448, %v2760
        %v2822 = vmul.f32 %v448, %v2764
        %v2823 = vmul.f32 %v453, %v2760
        %v2824 = vmul.f32 %v453, %v2764
        %v2825 = vmul.f32 %v458, %v2760
        %v2826 = vmul.f32 %v458, %v2764
        %v2827 = vmul.f32 %v463, %v2760
        %v2828 = vmul.f32 %v463, %v2764
        %v2829 = vlaneseq
        %v2830 = vshrl.u32 %v2829, 7
        %v2831 = vsub.s32 1, %v2830
        %v2832 = vrot.slane %v2755, %v2831
        %v2833 = vlaneseq
        %v2834 = vshrl.u32 %v2833, 7
        %v2835 = vsub.s32 1, %v2834
        %v2836 = vrot.slane %v2756, %v2835
        %v2837 = vmul.f32 %v539, %v2832
        %v2838 = vmul.f32 %v539, %v2836
        %v2839 = vmul.f32 %v543, %v2832
        %v2840 = vmul.f32 %v543, %v2836
        %v2841 = vmul.f32 %v547, %v2832
        %v2842 = vmul.f32 %v547, %v2836
        %v2843 = vmul.f32 %v551, %v2832
        %v2844 = vmul.f32 %v551, %v2836
        %v2845 = vmul.f32 %v555, %v2832
        %v2846 = vmul.f32 %v555, %v2836
        %v2847 = vmul.f32 %v559, %v2832
        %v2848 = vmul.f32 %v559, %v2836
        %v2849 = vmul.f32 %v563, %v2832
        %v2850 = vmul.f32 %v563, %v2836
        %v2851 = vmul.f32 %v567, %v2832
        %v2852 = vmul.f32 %v567, %v2836
        %v2853 = vmul.f32 %v571, %v2832
        %v2854 = vmul.f32 %v571, %v2836
        %v2855 = vmul.f32 %v575, %v2832
        %v2856 = vmul.f32 %v575, %v2836
        %v2857 = vmul.f32 %v579, %v2832
        %v2858 = vmul.f32 %v579, %v2836
        %v2859 = vmul.f32 %v583, %v2832
        %v2860 = vmul.f32 %v583, %v2836
        %v2861 = vmul.f32 %v587, %v2832
        %v2862 = vmul.f32 %v587, %v2836
        %v2863 = vmul.f32 %v591, %v2832
        %v2864 = vmul.f32 %v591, %v2836
        %v2865 = vmul.f32 %v595, %v2832
        %v2866 = vmul.f32 %v595, %v2836
        %v2867 = vmul.f32 %v599, %v2832
        %v2868 = vmul.f32 %v599, %v2836
        %v2869 = vmul.f32 %v603, %v2832
        %v2870 = vmul.f32 %v603, %v2836
        %v2871 = vmul.f32 %v607, %v2832
        %v2872 = vmul.f32 %v607, %v2836
        %v2873 = vmul.f32 %v611, %v2832
        %v2874 = vmul.f32 %v611, %v2836
        %v2875 = vmul.f32 %v615, %v2832
        %v2876 = vmul.f32 %v615, %v2836
        %v2877 = vmul.f32 %v619, %v2832
        %v2878 = vmul.f32 %v619, %v2836
        %v2879 = vmul.f32 %v623, %v2832
        %v2880 = vmul.f32 %v623, %v2836
        %v2881 = vmul.f32 %v627, %v2832
        %v2882 = vmul.f32 %v627, %v2836
        %v2883 = vmul.f32 %v631, %v2832
        %v2884 = vmul.f32 %v631, %v2836
        %v2885 = vmul.f32 %v635, %v2832
        %v2886 = vmul.f32 %v635, %v2836
        %v2887 = vmul.f32 %v639, %v2832
        %v2888 = vmul.f32 %v639, %v2836
        %v2889 = vmul.f32 %v643, %v2832
        %v2890 = vmul.f32 %v643, %v2836
        %v2891 = vmul.f32 %v647, %v2832
        %v2892 = vmul.f32 %v647, %v2836
        %v2893 = vmul.f32 %v651, %v2832
        %v2894 = vmul.f32 %v651, %v2836
        %v2895 = vmul.f32 %v655, %v2832
        %v2896 = vmul.f32 %v655, %v2836
        %v2897 = vmul.f32 %v659, %v2832
        %v2898 = vmul.f32 %v659, %v2836
        %v2899 = vmul.f32 %v663, %v2832
        %v2900 = vmul.f32 %v663, %v2836
        %v2901 = vadd.f32 %v2765, %v2837
        %v2902 = vadd.f32 %v2766, %v2838
        %v2903 = vadd.f32 %v2767, %v2839
        %v2904 = vadd.f32 %v2768, %v2840
        %v2905 = vadd.f32 %v2769, %v2841
        %v2906 = vadd.f32 %v2770, %v2842
        %v2907 = vadd.f32 %v2771, %v2843
        %v2908 = vadd.f32 %v2772, %v2844
        %v2909 = vadd.f32 %v2773, %v2845
        %v2910 = vadd.f32 %v2774, %v2846
        %v2911 = vadd.f32 %v2775, %v2847
        %v2912 = vadd.f32 %v2776, %v2848
        %v2913 = vadd.f32 %v2777, %v2849
        %v2914 = vadd.f32 %v2778, %v2850
        %v2915 = vadd.f32 %v2779, %v2851
        %v2916 = vadd.f32 %v2780, %v2852
        %v2917 = vadd.f32 %v2781, %v2853
        %v2918 = vadd.f32 %v2782, %v2854
        %v2919 = vadd.f32 %v2783, %v2855
        %v2920 = vadd.f32 %v2784, %v2856
        %v2921 = vadd.f32 %v2785, %v2857
        %v2922 = vadd.f32 %v2786, %v2858
        %v2923 = vadd.f32 %v2787, %v2859
        %v2924 = vadd.f32 %v2788, %v2860
        %v2925 = vadd.f32 %v2789, %v2861
        %v2926 = vadd.f32 %v2790, %v2862
        %v2927 = vadd.f32 %v2791, %v2863
        %v2928 = vadd.f32 %v2792, %v2864
        %v2929 = vadd.f32 %v2793, %v2865
        %v2930 = vadd.f32 %v2794, %v2866
        %v2931 = vadd.f32 %v2795, %v2867
        %v2932 = vadd.f32 %v2796, %v2868
        %v2933 = vadd.f32 %v2797, %v2869
        %v2934 = vadd.f32 %v2798, %v2870
        %v2935 = vadd.f32 %v2799, %v2871
        %v2936 = vadd.f32 %v2800, %v2872
        %v2937 = vadd.f32 %v2801, %v2873
        %v2938 = vadd.f32 %v2802, %v2874
        %v2939 = vadd.f32 %v2803, %v2875
        %v2940 = vadd.f32 %v2804, %v2876
        %v2941 = vadd.f32 %v2805, %v2877
        %v2942 = vadd.f32 %v2806, %v2878
        %v2943 = vadd.f32 %v2807, %v2879
        %v2944 = vadd.f32 %v2808, %v2880
        %v2945 = vadd.f32 %v2809, %v2881
        %v2946 = vadd.f32 %v2810, %v2882
        %v2947 = vadd.f32 %v2811, %v2883
        %v2948 = vadd.f32 %v2812, %v2884
        %v2949 = vadd.f32 %v2813, %v2885
        %v2950 = vadd.f32 %v2814, %v2886
        %v2951 = vadd.f32 %v2815, %v2887
        %v2952 = vadd.f32 %v2816, %v2888
        %v2953 = vadd.f32 %v2817, %v2889
        %v2954 = vadd.f32 %v2818, %v2890
        %v2955 = vadd.f32 %v2819, %v2891
        %v2956 = vadd.f32 %v2820, %v2892
        %v2957 = vadd.f32 %v2821, %v2893
        %v2958 = vadd.f32 %v2822, %v2894
        %v2959 = vadd.f32 %v2823, %v2895
        %v2960 = vadd.f32 %v2824, %v2896
        %v2961 = vadd.f32 %v2825, %v2897
        %v2962 = vadd.f32 %v2826, %v2898
        %v2963 = vadd.f32 %v2827, %v2899
        %v2964 = vadd.f32 %v2828, %v2900
        %v2965 = vlaneseq
        %v2966 = vshrl.u32 %v2965, 7
        %v2967 = vsub.s32 2, %v2966
        %v2968 = vrot.slane %v2755, %v2967
        %v2969 = vlaneseq
        %v2970 = vshrl.u32 %v2969, 7
        %v2971 = vsub.s32 2, %v2970
        %v2972 = vrot.slane %v2756, %v2971
        %v2973 = vmul.f32 %v803, %v2968
        %v2974 = vmul.f32 %v803, %v2972
        %v2975 = vmul.f32 %v807, %v2968
        %v2976 = vmul.f32 %v807, %v2972
        %v2977 = vmul.f32 %v811, %v2968
        %v2978 = vmul.f32 %v811, %v2972
        %v2979 = vmul.f32 %v815, %v2968
        %v2980 = vmul.f32 %v815, %v2972
        %v2981 = vmul.f32 %v819, %v2968
        %v2982 = vmul.f32 %v819, %v2972
        %v2983 = vmul.f32 %v823, %v2968
        %v2984 = vmul.f32 %v823, %v2972
        %v2985 = vmul.f32 %v827, %v2968
        %v2986 = vmul.f32 %v827, %v2972
        %v2987 = vmul.f32 %v831, %v2968
        %v2988 = vmul.f32 %v831, %v2972
        %v2989 = vmul.f32 %v835, %v2968
        %v2990 = vmul.f32 %v835, %v2972
        %v2991 = vmul.f32 %v839, %v2968
        %v2992 = vmul.f32 %v839, %v2972
        %v2993 = vmul.f32 %v843, %v2968
        %v2994 = vmul.f32 %v843, %v2972
        %v2995 = vmul.f32 %v847, %v2968
        %v2996 = vmul.f32 %v847, %v2972
        %v2997 = vmul.f32 %v851, %v2968
        %v2998 = vmul.f32 %v851, %v2972
        %v2999 = vmul.f32 %v855, %v2968
        %v3000 = vmul.f32 %v855, %v2972
        %v3001 = vmul.f32 %v859, %v2968
        %v3002 = vmul.f32 %v859, %v2972
        %v3003 = vmul.f32 %v863, %v2968
        %v3004 = vmul.f32 %v863, %v2972
        %v3005 = vmul.f32 %v867, %v2968
        %v3006 = vmul.f32 %v867, %v2972
        %v3007 = vmul.f32 %v871, %v2968
        %v3008 = vmul.f32 %v871, %v2972
        %v3009 = vmul.f32 %v875, %v2968
        %v3010 = vmul.f32 %v875, %v2972
        %v3011 = vmul.f32 %v879, %v2968
        %v3012 = vmul.f32 %v879, %v2972
        %v3013 = vmul.f32 %v883, %v2968
        %v3014 = vmul.f32 %v883, %v2972
        %v3015 = vmul.f32 %v887, %v2968
        %v3016 = vmul.f32 %v887, %v2972
        %v3017 = vmul.f32 %v891, %v2968
        %v3018 = vmul.f32 %v891, %v2972
        %v3019 = vmul.f32 %v895, %v2968
        %v3020 = vmul.f32 %v895, %v2972
        %v3021 = vmul.f32 %v899, %v2968
        %v3022 = vmul.f32 %v899, %v2972
        %v3023 = vmul.f32 %v903, %v2968
        %v3024 = vmul.f32 %v903, %v2972
        %v3025 = vmul.f32 %v907, %v2968
        %v3026 = vmul.f32 %v907, %v2972
        %v3027 = vmul.f32 %v911, %v2968
        %v3028 = vmul.f32 %v911, %v2972
        %v3029 = vmul.f32 %v915, %v2968
        %v3030 = vmul.f32 %v915, %v2972
        %v3031 = vmul.f32 %v919, %v2968
        %v3032 = vmul.f32 %v919, %v2972
        %v3033 = vmul.f32 %v923, %v2968
        %v3034 = vmul.f32 %v923, %v2972
        %v3035 = vmul.f32 %v927, %v2968
        %v3036 = vmul.f32 %v927, %v2972
        %v3037 = vadd.f32 %v2901, %v2973
        %v3038 = vadd.f32 %v2902, %v2974
        %v3039 = vadd.f32 %v2903, %v2975
        %v3040 = vadd.f32 %v2904, %v2976
        %v3041 = vadd.f32 %v2905, %v2977
        %v3042 = vadd.f32 %v2906, %v2978
        %v3043 = vadd.f32 %v2907, %v2979
        %v3044 = vadd.f32 %v2908, %v2980
        %v3045 = vadd.f32 %v2909, %v2981
        %v3046 = vadd.f32 %v2910, %v2982
        %v3047 = vadd.f32 %v2911, %v2983
        %v3048 = vadd.f32 %v2912, %v2984
        %v3049 = vadd.f32 %v2913, %v2985
        %v3050 = vadd.f32 %v2914, %v2986
        %v3051 = vadd.f32 %v2915, %v2987
        %v3052 = vadd.f32 %v2916, %v2988
        %v3053 = vadd.f32 %v2917, %v2989
        %v3054 = vadd.f32 %v2918, %v2990
        %v3055 = vadd.f32 %v2919, %v2991
        %v3056 = vadd.f32 %v2920, %v2992
        %v3057 = vadd.f32 %v2921, %v2993
        %v3058 = vadd.f32 %v2922, %v2994
        %v3059 = vadd.f32 %v2923, %v2995
        %v3060 = vadd.f32 %v2924, %v2996
        %v3061 = vadd.f32 %v2925, %v2997
        %v3062 = vadd.f32 %v2926, %v2998
        %v3063 = vadd.f32 %v2927, %v2999
        %v3064 = vadd.f32 %v2928, %v3000
        %v3065 = vadd.f32 %v2929, %v3001
        %v3066 = vadd.f32 %v2930, %v3002
        %v3067 = vadd.f32 %v2931, %v3003
        %v3068 = vadd.f32 %v2932, %v3004
        %v3069 = vadd.f32 %v2933, %v3005
        %v3070 = vadd.f32 %v2934, %v3006
        %v3071 = vadd.f32 %v2935, %v3007
        %v3072 = vadd.f32 %v2936, %v3008
        %v3073 = vadd.f32 %v2937, %v3009
        %v3074 = vadd.f32 %v2938, %v3010
        %v3075 = vadd.f32 %v2939, %v3011
        %v3076 = vadd.f32 %v2940, %v3012
        %v3077 = vadd.f32 %v2941, %v3013
        %v3078 = vadd.f32 %v2942, %v3014
        %v3079 = vadd.f32 %v2943, %v3015
        %v3080 = vadd.f32 %v2944, %v3016
        %v3081 = vadd.f32 %v2945, %v3017
        %v3082 = vadd.f32 %v2946, %v3018
        %v3083 = vadd.f32 %v2947, %v3019
        %v3084 = vadd.f32 %v2948, %v3020
        %v3085 = vadd.f32 %v2949, %v3021
        %v3086 = vadd.f32 %v2950, %v3022
        %v3087 = vadd.f32 %v2951, %v3023
        %v3088 = vadd.f32 %v2952, %v3024
        %v3089 = vadd.f32 %v2953, %v3025
        %v3090 = vadd.f32 %v2954, %v3026
        %v3091 = vadd.f32 %v2955, %v3027
        %v3092 = vadd.f32 %v2956, %v3028
        %v3093 = vadd.f32 %v2957, %v3029
        %v3094 = vadd.f32 %v2958, %v3030
        %v3095 = vadd.f32 %v2959, %v3031
        %v3096 = vadd.f32 %v2960, %v3032
        %v3097 = vadd.f32 %v2961, %v3033
        %v3098 = vadd.f32 %v2962, %v3034
        %v3099 = vadd.f32 %v2963, %v3035
        %v3100 = vadd.f32 %v2964, %v3036
        %v3133 = vunpack.c.l.b16 %v2722
        %v3134 = vunpack.c.h.b16 %v2722
        %v3135 = vunpack.c.l.b16 %v2723
        %v3136 = vunpack.c.h.b16 %v2723
        %v3137 = vunpack.c.l.b16 %v2724
        %v3138 = vunpack.c.h.b16 %v2724
        %v3139 = vunpack.c.l.b16 %v2725
        %v3140 = vunpack.c.h.b16 %v2725
        %v3141 = vunpack.c.l.b16 %v2726
        %v3142 = vunpack.c.h.b16 %v2726
        %v3143 = vunpack.c.l.b16 %v2727
        %v3144 = vunpack.c.h.b16 %v2727
        %v3145 = vunpack.c.l.b16 %v2728
        %v3146 = vunpack.c.h.b16 %v2728
        %v3147 = vunpack.c.l.b16 %v2729
        %v3148 = vunpack.c.h.b16 %v2729
        %v3149 = vunpack.c.l.b16 %v2730
        %v3150 = vunpack.c.h.b16 %v2730
        %v3151 = vunpack.c.l.b16 %v2731
        %v3152 = vunpack.c.h.b16 %v2731
        %v3153 = vunpack.c.l.b16 %v2732
        %v3154 = vunpack.c.h.b16 %v2732
        %v3155 = vunpack.c.l.b16 %v2733
        %v3156 = vunpack.c.h.b16 %v2733
        %v3157 = vunpack.c.l.b16 %v2734
        %v3158 = vunpack.c.h.b16 %v2734
        %v3159 = vunpack.c.l.b16 %v2735
        %v3160 = vunpack.c.h.b16 %v2735
        %v3161 = vunpack.c.l.b16 %v2736
        %v3162 = vunpack.c.h.b16 %v2736
        %v3163 = vunpack.c.l.b16 %v2737
        %v3164 = vunpack.c.h.b16 %v2737
        %v3165 = vunpack.c.l.b16 %v2738
        %v3166 = vunpack.c.h.b16 %v2738
        %v3167 = vunpack.c.l.b16 %v2739
        %v3168 = vunpack.c.h.b16 %v2739
        %v3169 = vunpack.c.l.b16 %v2740
        %v3170 = vunpack.c.h.b16 %v2740
        %v3171 = vunpack.c.l.b16 %v2741
        %v3172 = vunpack.c.h.b16 %v2741
        %v3173 = vunpack.c.l.b16 %v2742
        %v3174 = vunpack.c.h.b16 %v2742
        %v3175 = vunpack.c.l.b16 %v2743
        %v3176 = vunpack.c.h.b16 %v2743
        %v3177 = vunpack.c.l.b16 %v2744
        %v3178 = vunpack.c.h.b16 %v2744
        %v3179 = vunpack.c.l.b16 %v2745
        %v3180 = vunpack.c.h.b16 %v2745
        %v3181 = vunpack.c.l.b16 %v2746
        %v3182 = vunpack.c.h.b16 %v2746
        %v3183 = vunpack.c.l.b16 %v2747
        %v3184 = vunpack.c.h.b16 %v2747
        %v3185 = vunpack.c.l.b16 %v2748
        %v3186 = vunpack.c.h.b16 %v2748
        %v3187 = vunpack.c.l.b16 %v2749
        %v3188 = vunpack.c.h.b16 %v2749
        %v3189 = vunpack.c.l.b16 %v2750
        %v3190 = vunpack.c.h.b16 %v2750
        %v3191 = vunpack.c.l.b16 %v2751
        %v3192 = vunpack.c.h.b16 %v2751
        %v3193 = vunpack.c.l.b16 %v2752
        %v3194 = vunpack.c.h.b16 %v2752
        %v3195 = vunpack.c.l.b16 %v2753
        %v3196 = vunpack.c.h.b16 %v2753
        %v3197 = vpack.c.b16 %v3135, %v3133
        %v3198 = vpack.c.b16 %v3136, %v3134
        %v3199 = vpack.c.b16 %v3139, %v3137
        %v3200 = vpack.c.b16 %v3140, %v3138
        %v3201 = vpack.c.b16 %v3143, %v3141
        %v3202 = vpack.c.b16 %v3144, %v3142
        %v3203 = vpack.c.b16 %v3147, %v3145
        %v3204 = vpack.c.b16 %v3148, %v3146
        %v3205 = vpack.c.b16 %v3151, %v3149
        %v3206 = vpack.c.b16 %v3152, %v3150
        %v3207 = vpack.c.b16 %v3155, %v3153
        %v3208 = vpack.c.b16 %v3156, %v3154
        %v3209 = vpack.c.b16 %v3159, %v3157
        %v3210 = vpack.c.b16 %v3160, %v3158
        %v3211 = vpack.c.b16 %v3163, %v3161
        %v3212 = vpack.c.b16 %v3164, %v3162
        %v3213 = vpack.c.b16 %v3167, %v3165
        %v3214 = vpack.c.b16 %v3168, %v3166
        %v3215 = vpack.c.b16 %v3171, %v3169
        %v3216 = vpack.c.b16 %v3172, %v3170
        %v3217 = vpack.c.b16 %v3175, %v3173
        %v3218 = vpack.c.b16 %v3176, %v3174
        %v3219 = vpack.c.b16 %v3179, %v3177
        %v3220 = vpack.c.b16 %v3180, %v3178
        %v3221 = vpack.c.b16 %v3183, %v3181
        %v3222 = vpack.c.b16 %v3184, %v3182
        %v3223 = vpack.c.b16 %v3187, %v3185
        %v3224 = vpack.c.b16 %v3188, %v3186
        %v3225 = vpack.c.b16 %v3191, %v3189
        %v3226 = vpack.c.b16 %v3192, %v3190
        %v3227 = vpack.c.b16 %v3195, %v3193
        %v3228 = vpack.c.b16 %v3196, %v3194
        %3261 = vmatprep.subr.bf16.mxu0 %v3198
        %3262 = vmatpush1.bf16.msra.mxu0 %v3197
        %3263 = vmatprep.subr.bf16.mxu0 %v3200
        %3264 = vmatpush1.bf16.msra.mxu0 %v3199
        %3265 = vmatprep.subr.bf16.mxu0 %v3202
        %3266 = vmatpush1.bf16.msra.mxu0 %v3201
        %3267 = vmatprep.subr.bf16.mxu0 %v3204
        %3268 = vmatpush1.bf16.msra.mxu0 %v3203
        %3269 = vmatprep.subr.bf16.mxu0 %v3206
        %3270 = vmatpush1.bf16.msra.mxu0 %v3205
        %3271 = vmatprep.subr.bf16.mxu0 %v3208
        %3272 = vmatpush1.bf16.msra.mxu0 %v3207
        %3273 = vmatprep.subr.bf16.mxu0 %v3210
        %3274 = vmatpush1.bf16.msra.mxu0 %v3209
        %3275 = vmatprep.subr.bf16.mxu0 %v3212
        %3276 = vmatpush1.bf16.msra.mxu0 %v3211
        %3277 = vmatprep.subr.bf16.mxu0 %v3214
        %3278 = vmatpush1.bf16.msra.mxu0 %v3213
        %3279 = vmatprep.subr.bf16.mxu0 %v3216
        %3280 = vmatpush1.bf16.msra.mxu0 %v3215
        %3281 = vmatprep.subr.bf16.mxu0 %v3218
        %3282 = vmatpush1.bf16.msra.mxu0 %v3217
        %3283 = vmatprep.subr.bf16.mxu0 %v3220
        %3284 = vmatpush1.bf16.msra.mxu0 %v3219
        %3285 = vmatprep.subr.bf16.mxu0 %v3222
        %3286 = vmatpush1.bf16.msra.mxu0 %v3221
        %3287 = vmatprep.subr.bf16.mxu0 %v3224
        %3288 = vmatpush1.bf16.msra.mxu0 %v3223
        %3289 = vmatprep.subr.bf16.mxu0 %v3226
        %3290 = vmatpush1.bf16.msra.mxu0 %v3225
        %3291 = vmatprep.subr.bf16.mxu0 %v3228
        %3292 = vmatpush1.bf16.msra.mxu0 %v3227
        %3293 = vmatprep.mubr.bf16.mxu0 %v2690
        %3294 = vmatmul.mubr.bf16.gmra.mrb[0].mxu0 %v2689
        %v3295 = vpop.f32.mrb[0].mxu0
        %v3296 = vadd.f32 %v3037, %v3295
        %v3297 = vpop.f32.mrb[0].mxu0
        %v3298 = vadd.f32 %v3038, %v3297
        %v3299 = vpop.f32.mrb[0].mxu0
        %v3300 = vadd.f32 %v3039, %v3299
        %v3301 = vpop.f32.mrb[0].mxu0
        %v3302 = vadd.f32 %v3040, %v3301
        %3303 = vmatprep.mubr.bf16.mxu0 %v2692
        %3304 = vmatmul.mubr.bf16.gmra.mrb[0].mxu0 %v2691
        %v3305 = vpop.f32.mrb[0].mxu0
        %v3306 = vadd.f32 %v3041, %v3305
        %v3307 = vpop.f32.mrb[0].mxu0
        %v3308 = vadd.f32 %v3042, %v3307
        %v3309 = vpop.f32.mrb[0].mxu0
        %v3310 = vadd.f32 %v3043, %v3309
        %v3311 = vpop.f32.mrb[0].mxu0
        %v3312 = vadd.f32 %v3044, %v3311
        %3313 = vmatprep.mubr.bf16.mxu0 %v2694
        %3314 = vmatmul.mubr.bf16.gmra.mrb[0].mxu0 %v2693
        %v3315 = vpop.f32.mrb[0].mxu0
        %v3316 = vadd.f32 %v3045, %v3315
        %v3317 = vpop.f32.mrb[0].mxu0
        %v3318 = vadd.f32 %v3046, %v3317
        %v3319 = vpop.f32.mrb[0].mxu0
        %v3320 = vadd.f32 %v3047, %v3319
        %v3321 = vpop.f32.mrb[0].mxu0
        %v3322 = vadd.f32 %v3048, %v3321
        %3323 = vmatprep.mubr.bf16.mxu0 %v2696
        %3324 = vmatmul.mubr.bf16.gmra.mrb[0].mxu0 %v2695
        %v3325 = vpop.f32.mrb[0].mxu0
        %v3326 = vadd.f32 %v3049, %v3325
        %v3327 = vpop.f32.mrb[0].mxu0
        %v3328 = vadd.f32 %v3050, %v3327
        %v3329 = vpop.f32.mrb[0].mxu0
        %v3330 = vadd.f32 %v3051, %v3329
        %v3331 = vpop.f32.mrb[0].mxu0
        %v3332 = vadd.f32 %v3052, %v3331
        %3333 = vmatprep.mubr.bf16.mxu0 %v2698
        %3334 = vmatmul.mubr.bf16.gmra.mrb[0].mxu0 %v2697
        %v3335 = vpop.f32.mrb[0].mxu0
        %v3336 = vadd.f32 %v3053, %v3335
        %v3337 = vpop.f32.mrb[0].mxu0
        %v3338 = vadd.f32 %v3054, %v3337
        %v3339 = vpop.f32.mrb[0].mxu0
        %v3340 = vadd.f32 %v3055, %v3339
        %v3341 = vpop.f32.mrb[0].mxu0
        %v3342 = vadd.f32 %v3056, %v3341
        %3343 = vmatprep.mubr.bf16.mxu0 %v2700
        %3344 = vmatmul.mubr.bf16.gmra.mrb[0].mxu0 %v2699
        %v3345 = vpop.f32.mrb[0].mxu0
        %v3346 = vadd.f32 %v3057, %v3345
        %v3347 = vpop.f32.mrb[0].mxu0
        %v3348 = vadd.f32 %v3058, %v3347
        %v3349 = vpop.f32.mrb[0].mxu0
        %v3350 = vadd.f32 %v3059, %v3349
        %v3351 = vpop.f32.mrb[0].mxu0
        %v3352 = vadd.f32 %v3060, %v3351
        %3353 = vmatprep.mubr.bf16.mxu0 %v2702
        %3354 = vmatmul.mubr.bf16.gmra.mrb[0].mxu0 %v2701
        %v3355 = vpop.f32.mrb[0].mxu0
        %v3356 = vadd.f32 %v3061, %v3355
        %v3357 = vpop.f32.mrb[0].mxu0
        %v3358 = vadd.f32 %v3062, %v3357
        %v3359 = vpop.f32.mrb[0].mxu0
        %v3360 = vadd.f32 %v3063, %v3359
        %v3361 = vpop.f32.mrb[0].mxu0
        %v3362 = vadd.f32 %v3064, %v3361
        %3363 = vmatprep.mubr.bf16.mxu0 %v2704
        %3364 = vmatmul.mubr.bf16.gmra.mrb[0].mxu0 %v2703
        %v3365 = vpop.f32.mrb[0].mxu0
        %v3366 = vadd.f32 %v3065, %v3365
        %v3367 = vpop.f32.mrb[0].mxu0
        %v3368 = vadd.f32 %v3066, %v3367
        %v3369 = vpop.f32.mrb[0].mxu0
        %v3370 = vadd.f32 %v3067, %v3369
        %v3371 = vpop.f32.mrb[0].mxu0
        %v3372 = vadd.f32 %v3068, %v3371
        %3373 = vmatprep.mubr.bf16.mxu0 %v2706
        %3374 = vmatmul.mubr.bf16.gmra.mrb[0].mxu0 %v2705
        %v3375 = vpop.f32.mrb[0].mxu0
        %v3376 = vadd.f32 %v3069, %v3375
        %v3377 = vpop.f32.mrb[0].mxu0
        %v3378 = vadd.f32 %v3070, %v3377
        %v3379 = vpop.f32.mrb[0].mxu0
        %v3380 = vadd.f32 %v3071, %v3379
        %v3381 = vpop.f32.mrb[0].mxu0
        %v3382 = vadd.f32 %v3072, %v3381
        %3383 = vmatprep.mubr.bf16.mxu0 %v2708
        %3384 = vmatmul.mubr.bf16.gmra.mrb[0].mxu0 %v2707
        %v3385 = vpop.f32.mrb[0].mxu0
        %v3386 = vadd.f32 %v3073, %v3385
        %v3387 = vpop.f32.mrb[0].mxu0
        %v3388 = vadd.f32 %v3074, %v3387
        %v3389 = vpop.f32.mrb[0].mxu0
        %v3390 = vadd.f32 %v3075, %v3389
        %v3391 = vpop.f32.mrb[0].mxu0
        %v3392 = vadd.f32 %v3076, %v3391
        %3393 = vmatprep.mubr.bf16.mxu0 %v2710
        %3394 = vmatmul.mubr.bf16.gmra.mrb[0].mxu0 %v2709
        %v3395 = vpop.f32.mrb[0].mxu0
        %v3396 = vadd.f32 %v3077, %v3395
        %v3397 = vpop.f32.mrb[0].mxu0
        %v3398 = vadd.f32 %v3078, %v3397
        %v3399 = vpop.f32.mrb[0].mxu0
        %v3400 = vadd.f32 %v3079, %v3399
        %v3401 = vpop.f32.mrb[0].mxu0
        %v3402 = vadd.f32 %v3080, %v3401
        %3403 = vmatprep.mubr.bf16.mxu0 %v2712
        %3404 = vmatmul.mubr.bf16.gmra.mrb[0].mxu0 %v2711
        %v3405 = vpop.f32.mrb[0].mxu0
        %v3406 = vadd.f32 %v3081, %v3405
        %v3407 = vpop.f32.mrb[0].mxu0
        %v3408 = vadd.f32 %v3082, %v3407
        %v3409 = vpop.f32.mrb[0].mxu0
        %v3410 = vadd.f32 %v3083, %v3409
        %v3411 = vpop.f32.mrb[0].mxu0
        %v3412 = vadd.f32 %v3084, %v3411
        %3413 = vmatprep.mubr.bf16.mxu0 %v2714
        %3414 = vmatmul.mubr.bf16.gmra.mrb[0].mxu0 %v2713
        %v3415 = vpop.f32.mrb[0].mxu0
        %v3416 = vadd.f32 %v3085, %v3415
        %v3417 = vpop.f32.mrb[0].mxu0
        %v3418 = vadd.f32 %v3086, %v3417
        %v3419 = vpop.f32.mrb[0].mxu0
        %v3420 = vadd.f32 %v3087, %v3419
        %v3421 = vpop.f32.mrb[0].mxu0
        %v3422 = vadd.f32 %v3088, %v3421
        %3423 = vmatprep.mubr.bf16.mxu0 %v2716
        %3424 = vmatmul.mubr.bf16.gmra.mrb[0].mxu0 %v2715
        %v3425 = vpop.f32.mrb[0].mxu0
        %v3426 = vadd.f32 %v3089, %v3425
        %v3427 = vpop.f32.mrb[0].mxu0
        %v3428 = vadd.f32 %v3090, %v3427
        %v3429 = vpop.f32.mrb[0].mxu0
        %v3430 = vadd.f32 %v3091, %v3429
        %v3431 = vpop.f32.mrb[0].mxu0
        %v3432 = vadd.f32 %v3092, %v3431
        %3433 = vmatprep.mubr.bf16.mxu0 %v2718
        %3434 = vmatmul.mubr.bf16.gmra.mrb[0].mxu0 %v2717
        %v3435 = vpop.f32.mrb[0].mxu0
        %v3436 = vadd.f32 %v3093, %v3435
        %v3437 = vpop.f32.mrb[0].mxu0
        %v3438 = vadd.f32 %v3094, %v3437
        %v3439 = vpop.f32.mrb[0].mxu0
        %v3440 = vadd.f32 %v3095, %v3439
        %v3441 = vpop.f32.mrb[0].mxu0
        %v3442 = vadd.f32 %v3096, %v3441
        %3443 = vmatprep.mubr.bf16.mxu0 %v2720
        %3444 = vmatmul.mubr.bf16.gmra.mrb[0].mxu0 %v2719
        %v3445 = vpop.f32.mrb[0].mxu0
        %v3446 = vadd.f32 %v3097, %v3445
        %v3447 = vpop.f32.mrb[0].mxu0
        %v3448 = vadd.f32 %v3098, %v3447
        %v3449 = vpop.f32.mrb[0].mxu0
        %v3450 = vadd.f32 %v3099, %v3449
        %v3451 = vpop.f32.mrb[0].mxu0
        %v3452 = vadd.f32 %v3100, %v3451
        %3453 = vdwg.mxu0
        %s3454 = scalar_lea.vmem %s3, 4
        %v3455 = vld [vmem:[%s3454] ss:$8 sm:$0x3]
        %v3457 = vlaneseq
        %v3458 = vshrl.u32 %v3457, 7
        %v3459 = vsub.s32 0, %v3458
        %v3460 = vrot.slane %v3455, %v3459
        %v3461 = vlaneseq
        %v3462 = vshrl.u32 %v3461, 7
        %v3463 = vsub.s32 1, %v3462
        %v3464 = vrot.slane %v3455, %v3463
        %v3467 = vadd.f32 %v3296, %v3460
        %v3468 = vadd.f32 %v3298, %v3464
        %v3469 = vadd.f32 %v3300, %v3460
        %v3470 = vadd.f32 %v3302, %v3464
        %v3471 = vadd.f32 %v3306, %v3460
        %v3472 = vadd.f32 %v3308, %v3464
        %v3473 = vadd.f32 %v3310, %v3460
        %v3474 = vadd.f32 %v3312, %v3464
        %v3475 = vadd.f32 %v3316, %v3460
        %v3476 = vadd.f32 %v3318, %v3464
        %v3477 = vadd.f32 %v3320, %v3460
        %v3478 = vadd.f32 %v3322, %v3464
        %v3479 = vadd.f32 %v3326, %v3460
        %v3480 = vadd.f32 %v3328, %v3464
        %v3481 = vadd.f32 %v3330, %v3460
        %v3482 = vadd.f32 %v3332, %v3464
        %v3483 = vadd.f32 %v3336, %v3460
        %v3484 = vadd.f32 %v3338, %v3464
        %v3485 = vadd.f32 %v3340, %v3460
        %v3486 = vadd.f32 %v3342, %v3464
        %v3487 = vadd.f32 %v3346, %v3460
        %v3488 = vadd.f32 %v3348, %v3464
        %v3489 = vadd.f32 %v3350, %v3460
        %v3490 = vadd.f32 %v3352, %v3464
        %v3491 = vadd.f32 %v3356, %v3460
        %v3492 = vadd.f32 %v3358, %v3464
        %v3493 = vadd.f32 %v3360, %v3460
        %v3494 = vadd.f32 %v3362, %v3464
        %v3495 = vadd.f32 %v3366, %v3460
        %v3496 = vadd.f32 %v3368, %v3464
        %v3497 = vadd.f32 %v3370, %v3460
        %v3498 = vadd.f32 %v3372, %v3464
        %v3499 = vadd.f32 %v3376, %v3460
        %v3500 = vadd.f32 %v3378, %v3464
        %v3501 = vadd.f32 %v3380, %v3460
        %v3502 = vadd.f32 %v3382, %v3464
        %v3503 = vadd.f32 %v3386, %v3460
        %v3504 = vadd.f32 %v3388, %v3464
        %v3505 = vadd.f32 %v3390, %v3460
        %v3506 = vadd.f32 %v3392, %v3464
        %v3507 = vadd.f32 %v3396, %v3460
        %v3508 = vadd.f32 %v3398, %v3464
        %v3509 = vadd.f32 %v3400, %v3460
        %v3510 = vadd.f32 %v3402, %v3464
        %v3511 = vadd.f32 %v3406, %v3460
        %v3512 = vadd.f32 %v3408, %v3464
        %v3513 = vadd.f32 %v3410, %v3460
        %v3514 = vadd.f32 %v3412, %v3464
        %v3515 = vadd.f32 %v3416, %v3460
        %v3516 = vadd.f32 %v3418, %v3464
        %v3517 = vadd.f32 %v3420, %v3460
        %v3518 = vadd.f32 %v3422, %v3464
        %v3519 = vadd.f32 %v3426, %v3460
        %v3520 = vadd.f32 %v3428, %v3464
        %v3521 = vadd.f32 %v3430, %v3460
        %v3522 = vadd.f32 %v3432, %v3464
        %v3523 = vadd.f32 %v3436, %v3460
        %v3524 = vadd.f32 %v3438, %v3464
        %v3525 = vadd.f32 %v3440, %v3460
        %v3526 = vadd.f32 %v3442, %v3464
        %v3527 = vadd.f32 %v3446, %v3460
        %v3528 = vadd.f32 %v3448, %v3464
        %v3529 = vadd.f32 %v3450, %v3460
        %v3530 = vadd.f32 %v3452, %v3464
        %v3531 = vmax.f32 %v3467, 0.0
        %v3532 = vmax.f32 %v3468, 0.0
        %v3533 = vmax.f32 %v3469, 0.0
        %v3534 = vmax.f32 %v3470, 0.0
        %v3535 = vmax.f32 %v3471, 0.0
        %v3536 = vmax.f32 %v3472, 0.0
        %v3537 = vmax.f32 %v3473, 0.0
        %v3538 = vmax.f32 %v3474, 0.0
        %v3539 = vmax.f32 %v3475, 0.0
        %v3540 = vmax.f32 %v3476, 0.0
        %v3541 = vmax.f32 %v3477, 0.0
        %v3542 = vmax.f32 %v3478, 0.0
        %v3543 = vmax.f32 %v3479, 0.0
        %v3544 = vmax.f32 %v3480, 0.0
        %v3545 = vmax.f32 %v3481, 0.0
        %v3546 = vmax.f32 %v3482, 0.0
        %v3547 = vmax.f32 %v3483, 0.0
        %v3548 = vmax.f32 %v3484, 0.0
        %v3549 = vmax.f32 %v3485, 0.0
        %v3550 = vmax.f32 %v3486, 0.0
        %v3551 = vmax.f32 %v3487, 0.0
        %v3552 = vmax.f32 %v3488, 0.0
        %v3553 = vmax.f32 %v3489, 0.0
        %v3554 = vmax.f32 %v3490, 0.0
        %v3555 = vmax.f32 %v3491, 0.0
        %v3556 = vmax.f32 %v3492, 0.0
        %v3557 = vmax.f32 %v3493, 0.0
        %v3558 = vmax.f32 %v3494, 0.0
        %v3559 = vmax.f32 %v3495, 0.0
        %v3560 = vmax.f32 %v3496, 0.0
        %v3561 = vmax.f32 %v3497, 0.0
        %v3562 = vmax.f32 %v3498, 0.0
        %v3563 = vmax.f32 %v3499, 0.0
        %v3564 = vmax.f32 %v3500, 0.0
        %v3565 = vmax.f32 %v3501, 0.0
        %v3566 = vmax.f32 %v3502, 0.0
        %v3567 = vmax.f32 %v3503, 0.0
        %v3568 = vmax.f32 %v3504, 0.0
        %v3569 = vmax.f32 %v3505, 0.0
        %v3570 = vmax.f32 %v3506, 0.0
        %v3571 = vmax.f32 %v3507, 0.0
        %v3572 = vmax.f32 %v3508, 0.0
        %v3573 = vmax.f32 %v3509, 0.0
        %v3574 = vmax.f32 %v3510, 0.0
        %v3575 = vmax.f32 %v3511, 0.0
        %v3576 = vmax.f32 %v3512, 0.0
        %v3577 = vmax.f32 %v3513, 0.0
        %v3578 = vmax.f32 %v3514, 0.0
        %v3579 = vmax.f32 %v3515, 0.0
        %v3580 = vmax.f32 %v3516, 0.0
        %v3581 = vmax.f32 %v3517, 0.0
        %v3582 = vmax.f32 %v3518, 0.0
        %v3583 = vmax.f32 %v3519, 0.0
        %v3584 = vmax.f32 %v3520, 0.0
        %v3585 = vmax.f32 %v3521, 0.0
        %v3586 = vmax.f32 %v3522, 0.0
        %v3587 = vmax.f32 %v3523, 0.0
        %v3588 = vmax.f32 %v3524, 0.0
        %v3589 = vmax.f32 %v3525, 0.0
        %v3590 = vmax.f32 %v3526, 0.0
        %v3591 = vmax.f32 %v3527, 0.0
        %v3592 = vmax.f32 %v3528, 0.0
        %v3593 = vmax.f32 %v3529, 0.0
        %v3594 = vmax.f32 %v3530, 0.0
        %v3595 = vpack.c.bf16 %v3533, %v3531
        %v3596 = vpack.c.bf16 %v3534, %v3532
        %v3597 = vpack.c.bf16 %v3537, %v3535
        %v3598 = vpack.c.bf16 %v3538, %v3536
        %v3599 = vpack.c.bf16 %v3541, %v3539
        %v3600 = vpack.c.bf16 %v3542, %v3540
        %v3601 = vpack.c.bf16 %v3545, %v3543
        %v3602 = vpack.c.bf16 %v3546, %v3544
        %v3603 = vpack.c.bf16 %v3549, %v3547
        %v3604 = vpack.c.bf16 %v3550, %v3548
        %v3605 = vpack.c.bf16 %v3553, %v3551
        %v3606 = vpack.c.bf16 %v3554, %v3552
        %v3607 = vpack.c.bf16 %v3557, %v3555
        %v3608 = vpack.c.bf16 %v3558, %v3556
        %v3609 = vpack.c.bf16 %v3561, %v3559
        %v3610 = vpack.c.bf16 %v3562, %v3560
        %v3611 = vpack.c.bf16 %v3565, %v3563
        %v3612 = vpack.c.bf16 %v3566, %v3564
        %v3613 = vpack.c.bf16 %v3569, %v3567
        %v3614 = vpack.c.bf16 %v3570, %v3568
        %v3615 = vpack.c.bf16 %v3573, %v3571
        %v3616 = vpack.c.bf16 %v3574, %v3572
        %v3617 = vpack.c.bf16 %v3577, %v3575
        %v3618 = vpack.c.bf16 %v3578, %v3576
        %v3619 = vpack.c.bf16 %v3581, %v3579
        %v3620 = vpack.c.bf16 %v3582, %v3580
        %v3621 = vpack.c.bf16 %v3585, %v3583
        %v3622 = vpack.c.bf16 %v3586, %v3584
        %v3623 = vpack.c.bf16 %v3589, %v3587
        %v3624 = vpack.c.bf16 %v3590, %v3588
        %v3625 = vpack.c.bf16 %v3593, %v3591
        %v3626 = vpack.c.bf16 %v3594, %v3592
        %s3627 = scalar_lea.vmem [#allocation2], 1024
        %v3628 = vld [vmem:[%s3627] sm:$0xff]
        %v3629 = vld [vmem:[%s3627 + $0x8] sm:$0xff]
        %v3630 = vld [vmem:[%s3627 + $0x10] sm:$0xff]
        %v3631 = vld [vmem:[%s3627 + $0x18] sm:$0xff]
        %v3632 = vld [vmem:[%s3627 + $0x20] sm:$0xff]
        %v3633 = vld [vmem:[%s3627 + $0x28] sm:$0xff]
        %v3634 = vld [vmem:[%s3627 + $0x30] sm:$0xff]
        %v3635 = vld [vmem:[%s3627 + $0x38] sm:$0xff]
        %v3636 = vld [vmem:[%s3627 + $0x40] sm:$0xff]
        %v3637 = vld [vmem:[%s3627 + $0x48] sm:$0xff]
        %v3638 = vld [vmem:[%s3627 + $0x50] sm:$0xff]
        %v3639 = vld [vmem:[%s3627 + $0x58] sm:$0xff]
        %v3640 = vld [vmem:[%s3627 + $0x60] sm:$0xff]
        %v3641 = vld [vmem:[%s3627 + $0x68] sm:$0xff]
        %v3642 = vld [vmem:[%s3627 + $0x70] sm:$0xff]
        %v3643 = vld [vmem:[%s3627 + $0x78] sm:$0xff]
        %v3644 = vld [vmem:[%s3627 + $0x80] sm:$0xff]
        %v3645 = vld [vmem:[%s3627 + $0x88] sm:$0xff]
        %v3646 = vld [vmem:[%s3627 + $0x90] sm:$0xff]
        %v3647 = vld [vmem:[%s3627 + $0x98] sm:$0xff]
        %v3648 = vld [vmem:[%s3627 + $0xa0] sm:$0xff]
        %v3649 = vld [vmem:[%s3627 + $0xa8] sm:$0xff]
        %v3650 = vld [vmem:[%s3627 + $0xb0] sm:$0xff]
        %v3651 = vld [vmem:[%s3627 + $0xb8] sm:$0xff]
        %v3652 = vld [vmem:[%s3627 + $0xc0] sm:$0xff]
        %v3653 = vld [vmem:[%s3627 + $0xc8] sm:$0xff]
        %v3654 = vld [vmem:[%s3627 + $0xd0] sm:$0xff]
        %v3655 = vld [vmem:[%s3627 + $0xd8] sm:$0xff]
        %v3656 = vld [vmem:[%s3627 + $0xe0] sm:$0xff]
        %v3657 = vld [vmem:[%s3627 + $0xe8] sm:$0xff]
        %v3658 = vld [vmem:[%s3627 + $0xf0] sm:$0xff]
        %v3659 = vld [vmem:[%s3627 + $0xf8] sm:$0xff]
        %s3660 = scalar_lea.vmem %s3, 5
        %v3661 = vld [vmem:[%s3660] ss:$8 sm:$0x3]
        %v3663 = vlaneseq
        %v3664 = vshrl.u32 %v3663, 7
        %v3665 = vsub.s32 0, %v3664
        %v3666 = vrot.slane %v3661, %v3665
        %v3667 = vlaneseq
        %v3668 = vshrl.u32 %v3667, 7
        %v3669 = vsub.s32 1, %v3668
        %v3670 = vrot.slane %v3661, %v3669
        %v3705 = vunpack.c.l.b16 %v3628
        %v3706 = vunpack.c.h.b16 %v3628
        %v3707 = vunpack.c.l.b16 %v3629
        %v3708 = vunpack.c.h.b16 %v3629
        %v3709 = vunpack.c.l.b16 %v3630
        %v3710 = vunpack.c.h.b16 %v3630
        %v3711 = vunpack.c.l.b16 %v3631
        %v3712 = vunpack.c.h.b16 %v3631
        %v3713 = vunpack.c.l.b16 %v3632
        %v3714 = vunpack.c.h.b16 %v3632
        %v3715 = vunpack.c.l.b16 %v3633
        %v3716 = vunpack.c.h.b16 %v3633
        %v3717 = vunpack.c.l.b16 %v3634
        %v3718 = vunpack.c.h.b16 %v3634
        %v3719 = vunpack.c.l.b16 %v3635
        %v3720 = vunpack.c.h.b16 %v3635
        %v3721 = vunpack.c.l.b16 %v3636
        %v3722 = vunpack.c.h.b16 %v3636
        %v3723 = vunpack.c.l.b16 %v3637
        %v3724 = vunpack.c.h.b16 %v3637
        %v3725 = vunpack.c.l.b16 %v3638
        %v3726 = vunpack.c.h.b16 %v3638
        %v3727 = vunpack.c.l.b16 %v3639
        %v3728 = vunpack.c.h.b16 %v3639
        %v3729 = vunpack.c.l.b16 %v3640
        %v3730 = vunpack.c.h.b16 %v3640
        %v3731 = vunpack.c.l.b16 %v3641
        %v3732 = vunpack.c.h.b16 %v3641
        %v3733 = vunpack.c.l.b16 %v3642
        %v3734 = vunpack.c.h.b16 %v3642
        %v3735 = vunpack.c.l.b16 %v3643
        %v3736 = vunpack.c.h.b16 %v3643
        %v3737 = vunpack.c.l.b16 %v3644
        %v3738 = vunpack.c.h.b16 %v3644
        %v3739 = vunpack.c.l.b16 %v3645
        %v3740 = vunpack.c.h.b16 %v3645
        %v3741 = vunpack.c.l.b16 %v3646
        %v3742 = vunpack.c.h.b16 %v3646
        %v3743 = vunpack.c.l.b16 %v3647
        %v3744 = vunpack.c.h.b16 %v3647
        %v3745 = vunpack.c.l.b16 %v3648
        %v3746 = vunpack.c.h.b16 %v3648
        %v3747 = vunpack.c.l.b16 %v3649
        %v3748 = vunpack.c.h.b16 %v3649
        %v3749 = vunpack.c.l.b16 %v3650
        %v3750 = vunpack.c.h.b16 %v3650
        %v3751 = vunpack.c.l.b16 %v3651
        %v3752 = vunpack.c.h.b16 %v3651
        %v3753 = vunpack.c.l.b16 %v3652
        %v3754 = vunpack.c.h.b16 %v3652
        %v3755 = vunpack.c.l.b16 %v3653
        %v3756 = vunpack.c.h.b16 %v3653
        %v3757 = vunpack.c.l.b16 %v3654
        %v3758 = vunpack.c.h.b16 %v3654
        %v3759 = vunpack.c.l.b16 %v3655
        %v3760 = vunpack.c.h.b16 %v3655
        %v3761 = vunpack.c.l.b16 %v3656
        %v3762 = vunpack.c.h.b16 %v3656
        %v3763 = vunpack.c.l.b16 %v3657
        %v3764 = vunpack.c.h.b16 %v3657
        %v3765 = vunpack.c.l.b16 %v3658
        %v3766 = vunpack.c.h.b16 %v3658
        %v3767 = vunpack.c.l.b16 %v3659
        %v3768 = vunpack.c.h.b16 %v3659
        %v3769 = vpack.c.b16 %v3707, %v3705
        %v3770 = vpack.c.b16 %v3708, %v3706
        %v3771 = vpack.c.b16 %v3711, %v3709
        %v3772 = vpack.c.b16 %v3712, %v3710
        %v3773 = vpack.c.b16 %v3715, %v3713
        %v3774 = vpack.c.b16 %v3716, %v3714
        %v3775 = vpack.c.b16 %v3719, %v3717
        %v3776 = vpack.c.b16 %v3720, %v3718
        %v3777 = vpack.c.b16 %v3723, %v3721
        %v3778 = vpack.c.b16 %v3724, %v3722
        %v3779 = vpack.c.b16 %v3727, %v3725
        %v3780 = vpack.c.b16 %v3728, %v3726
        %v3781 = vpack.c.b16 %v3731, %v3729
        %v3782 = vpack.c.b16 %v3732, %v3730
        %v3783 = vpack.c.b16 %v3735, %v3733
        %v3784 = vpack.c.b16 %v3736, %v3734
        %v3785 = vpack.c.b16 %v3739, %v3737
        %v3786 = vpack.c.b16 %v3740, %v3738
        %v3787 = vpack.c.b16 %v3743, %v3741
        %v3788 = vpack.c.b16 %v3744, %v3742
        %v3789 = vpack.c.b16 %v3747, %v3745
        %v3790 = vpack.c.b16 %v3748, %v3746
        %v3791 = vpack.c.b16 %v3751, %v3749
        %v3792 = vpack.c.b16 %v3752, %v3750
        %v3793 = vpack.c.b16 %v3755, %v3753
        %v3794 = vpack.c.b16 %v3756, %v3754
        %v3795 = vpack.c.b16 %v3759, %v3757
        %v3796 = vpack.c.b16 %v3760, %v3758
        %v3797 = vpack.c.b16 %v3763, %v3761
        %v3798 = vpack.c.b16 %v3764, %v3762
        %v3799 = vpack.c.b16 %v3767, %v3765
        %v3800 = vpack.c.b16 %v3768, %v3766
        %3833 = vmatprep.subr.bf16.mxu0 %v3770
        %3834 = vmatpush1.bf16.msra.mxu0 %v3769
        %3835 = vmatprep.subr.bf16.mxu0 %v3772
        %3836 = vmatpush1.bf16.msra.mxu0 %v3771
        %3837 = vmatprep.subr.bf16.mxu0 %v3774
        %3838 = vmatpush1.bf16.msra.mxu0 %v3773
        %3839 = vmatprep.subr.bf16.mxu0 %v3776
        %3840 = vmatpush1.bf16.msra.mxu0 %v3775
        %3841 = vmatprep.subr.bf16.mxu0 %v3778
        %3842 = vmatpush1.bf16.msra.mxu0 %v3777
        %3843 = vmatprep.subr.bf16.mxu0 %v3780
        %3844 = vmatpush1.bf16.msra.mxu0 %v3779
        %3845 = vmatprep.subr.bf16.mxu0 %v3782
        %3846 = vmatpush1.bf16.msra.mxu0 %v3781
        %3847 = vmatprep.subr.bf16.mxu0 %v3784
        %3848 = vmatpush1.bf16.msra.mxu0 %v3783
        %3849 = vmatprep.subr.bf16.mxu0 %v3786
        %3850 = vmatpush1.bf16.msra.mxu0 %v3785
        %3851 = vmatprep.subr.bf16.mxu0 %v3788
        %3852 = vmatpush1.bf16.msra.mxu0 %v3787
        %3853 = vmatprep.subr.bf16.mxu0 %v3790
        %3854 = vmatpush1.bf16.msra.mxu0 %v3789
        %3855 = vmatprep.subr.bf16.mxu0 %v3792
        %3856 = vmatpush1.bf16.msra.mxu0 %v3791
        %3857 = vmatprep.subr.bf16.mxu0 %v3794
        %3858 = vmatpush1.bf16.msra.mxu0 %v3793
        %3859 = vmatprep.subr.bf16.mxu0 %v3796
        %3860 = vmatpush1.bf16.msra.mxu0 %v3795
        %3861 = vmatprep.subr.bf16.mxu0 %v3798
        %3862 = vmatpush1.bf16.msra.mxu0 %v3797
        %3863 = vmatprep.subr.bf16.mxu0 %v3800
        %3864 = vmatpush1.bf16.msra.mxu0 %v3799
        %3865 = vmatprep.mubr.bf16.mxu0 %v3596
        %3866 = vmatmul.mubr.bf16.gmra.mrb[0].mxu0 %v3595
        %v3867 = vpop.f32.mrb[0].mxu0
        %v3868 = vadd.f32 %v3666, %v3867
        %v3869 = vpop.f32.mrb[0].mxu0
        %v3870 = vadd.f32 %v3670, %v3869
        %v3871 = vpop.f32.mrb[0].mxu0
        %v3872 = vadd.f32 %v3666, %v3871
        %v3873 = vpop.f32.mrb[0].mxu0
        %v3874 = vadd.f32 %v3670, %v3873
        %3875 = vmatprep.mubr.bf16.mxu0 %v3598
        %3876 = vmatmul.mubr.bf16.gmra.mrb[0].mxu0 %v3597
        %v3877 = vpop.f32.mrb[0].mxu0
        %v3878 = vadd.f32 %v3666, %v3877
        %v3879 = vpop.f32.mrb[0].mxu0
        %v3880 = vadd.f32 %v3670, %v3879
        %v3881 = vpop.f32.mrb[0].mxu0
        %v3882 = vadd.f32 %v3666, %v3881
        %v3883 = vpop.f32.mrb[0].mxu0
        %v3884 = vadd.f32 %v3670, %v3883
        %3885 = vmatprep.mubr.bf16.mxu0 %v3600
        %3886 = vmatmul.mubr.bf16.gmra.mrb[0].mxu0 %v3599
        %v3887 = vpop.f32.mrb[0].mxu0
        %v3888 = vadd.f32 %v3666, %v3887
        %v3889 = vpop.f32.mrb[0].mxu0
        %v3890 = vadd.f32 %v3670, %v3889
        %v3891 = vpop.f32.mrb[0].mxu0
        %v3892 = vadd.f32 %v3666, %v3891
        %v3893 = vpop.f32.mrb[0].mxu0
        %v3894 = vadd.f32 %v3670, %v3893
        %3895 = vmatprep.mubr.bf16.mxu0 %v3602
        %3896 = vmatmul.mubr.bf16.gmra.mrb[0].mxu0 %v3601
        %v3897 = vpop.f32.mrb[0].mxu0
        %v3898 = vadd.f32 %v3666, %v3897
        %v3899 = vpop.f32.mrb[0].mxu0
        %v3900 = vadd.f32 %v3670, %v3899
        %v3901 = vpop.f32.mrb[0].mxu0
        %v3902 = vadd.f32 %v3666, %v3901
        %v3903 = vpop.f32.mrb[0].mxu0
        %v3904 = vadd.f32 %v3670, %v3903
        %3905 = vmatprep.mubr.bf16.mxu0 %v3604
        %3906 = vmatmul.mubr.bf16.gmra.mrb[0].mxu0 %v3603
        %v3907 = vpop.f32.mrb[0].mxu0
        %v3908 = vadd.f32 %v3666, %v3907
        %v3909 = vpop.f32.mrb[0].mxu0
        %v3910 = vadd.f32 %v3670, %v3909
        %v3911 = vpop.f32.mrb[0].mxu0
        %v3912 = vadd.f32 %v3666, %v3911
        %v3913 = vpop.f32.mrb[0].mxu0
        %v3914 = vadd.f32 %v3670, %v3913
        %3915 = vmatprep.mubr.bf16.mxu0 %v3606
        %3916 = vmatmul.mubr.bf16.gmra.mrb[0].mxu0 %v3605
        %v3917 = vpop.f32.mrb[0].mxu0
        %v3918 = vadd.f32 %v3666, %v3917
        %v3919 = vpop.f32.mrb[0].mxu0
        %v3920 = vadd.f32 %v3670, %v3919
        %v3921 = vpop.f32.mrb[0].mxu0
        %v3922 = vadd.f32 %v3666, %v3921
        %v3923 = vpop.f32.mrb[0].mxu0
        %v3924 = vadd.f32 %v3670, %v3923
        %3925 = vmatprep.mubr.bf16.mxu0 %v3608
        %3926 = vmatmul.mubr.bf16.gmra.mrb[0].mxu0 %v3607
        %v3927 = vpop.f32.mrb[0].mxu0
        %v3928 = vadd.f32 %v3666, %v3927
        %v3929 = vpop.f32.mrb[0].mxu0
        %v3930 = vadd.f32 %v3670, %v3929
        %v3931 = vpop.f32.mrb[0].mxu0
        %v3932 = vadd.f32 %v3666, %v3931
        %v3933 = vpop.f32.mrb[0].mxu0
        %v3934 = vadd.f32 %v3670, %v3933
        %3935 = vmatprep.mubr.bf16.mxu0 %v3610
        %3936 = vmatmul.mubr.bf16.gmra.mrb[0].mxu0 %v3609
        %v3937 = vpop.f32.mrb[0].mxu0
        %v3938 = vadd.f32 %v3666, %v3937
        %v3939 = vpop.f32.mrb[0].mxu0
        %v3940 = vadd.f32 %v3670, %v3939
        %v3941 = vpop.f32.mrb[0].mxu0
        %v3942 = vadd.f32 %v3666, %v3941
        %v3943 = vpop.f32.mrb[0].mxu0
        %v3944 = vadd.f32 %v3670, %v3943
        %3945 = vmatprep.mubr.bf16.mxu0 %v3612
        %3946 = vmatmul.mubr.bf16.gmra.mrb[0].mxu0 %v3611
        %v3947 = vpop.f32.mrb[0].mxu0
        %v3948 = vadd.f32 %v3666, %v3947
        %v3949 = vpop.f32.mrb[0].mxu0
        %v3950 = vadd.f32 %v3670, %v3949
        %v3951 = vpop.f32.mrb[0].mxu0
        %v3952 = vadd.f32 %v3666, %v3951
        %v3953 = vpop.f32.mrb[0].mxu0
        %v3954 = vadd.f32 %v3670, %v3953
        %3955 = vmatprep.mubr.bf16.mxu0 %v3614
        %3956 = vmatmul.mubr.bf16.gmra.mrb[0].mxu0 %v3613
        %v3957 = vpop.f32.mrb[0].mxu0
        %v3958 = vadd.f32 %v3666, %v3957
        %v3959 = vpop.f32.mrb[0].mxu0
        %v3960 = vadd.f32 %v3670, %v3959
        %v3961 = vpop.f32.mrb[0].mxu0
        %v3962 = vadd.f32 %v3666, %v3961
        %v3963 = vpop.f32.mrb[0].mxu0
        %v3964 = vadd.f32 %v3670, %v3963
        %3965 = vmatprep.mubr.bf16.mxu0 %v3616
        %3966 = vmatmul.mubr.bf16.gmra.mrb[0].mxu0 %v3615
        %v3967 = vpop.f32.mrb[0].mxu0
        %v3968 = vadd.f32 %v3666, %v3967
        %v3969 = vpop.f32.mrb[0].mxu0
        %v3970 = vadd.f32 %v3670, %v3969
        %v3971 = vpop.f32.mrb[0].mxu0
        %v3972 = vadd.f32 %v3666, %v3971
        %v3973 = vpop.f32.mrb[0].mxu0
        %v3974 = vadd.f32 %v3670, %v3973
        %3975 = vmatprep.mubr.bf16.mxu0 %v3618
        %3976 = vmatmul.mubr.bf16.gmra.mrb[0].mxu0 %v3617
        %v3977 = vpop.f32.mrb[0].mxu0
        %v3978 = vadd.f32 %v3666, %v3977
        %v3979 = vpop.f32.mrb[0].mxu0
        %v3980 = vadd.f32 %v3670, %v3979
        %v3981 = vpop.f32.mrb[0].mxu0
        %v3982 = vadd.f32 %v3666, %v3981
        %v3983 = vpop.f32.mrb[0].mxu0
        %v3984 = vadd.f32 %v3670, %v3983
        %3985 = vmatprep.mubr.bf16.mxu0 %v3620
        %3986 = vmatmul.mubr.bf16.gmra.mrb[0].mxu0 %v3619
        %v3987 = vpop.f32.mrb[0].mxu0
        %v3988 = vadd.f32 %v3666, %v3987
        %v3989 = vpop.f32.mrb[0].mxu0
        %v3990 = vadd.f32 %v3670, %v3989
        %v3991 = vpop.f32.mrb[0].mxu0
        %v3992 = vadd.f32 %v3666, %v3991
        %v3993 = vpop.f32.mrb[0].mxu0
        %v3994 = vadd.f32 %v3670, %v3993
        %3995 = vmatprep.mubr.bf16.mxu0 %v3622
        %3996 = vmatmul.mubr.bf16.gmra.mrb[0].mxu0 %v3621
        %v3997 = vpop.f32.mrb[0].mxu0
        %v3998 = vadd.f32 %v3666, %v3997
        %v3999 = vpop.f32.mrb[0].mxu0
        %v4000 = vadd.f32 %v3670, %v3999
        %v4001 = vpop.f32.mrb[0].mxu0
        %v4002 = vadd.f32 %v3666, %v4001
        %v4003 = vpop.f32.mrb[0].mxu0
        %v4004 = vadd.f32 %v3670, %v4003
        %4005 = vmatprep.mubr.bf16.mxu0 %v3624
        %4006 = vmatmul.mubr.bf16.gmra.mrb[0].mxu0 %v3623
        %v4007 = vpop.f32.mrb[0].mxu0
        %v4008 = vadd.f32 %v3666, %v4007
        %v4009 = vpop.f32.mrb[0].mxu0
        %v4010 = vadd.f32 %v3670, %v4009
        %v4011 = vpop.f32.mrb[0].mxu0
        %v4012 = vadd.f32 %v3666, %v4011
        %v4013 = vpop.f32.mrb[0].mxu0
        %v4014 = vadd.f32 %v3670, %v4013
        %4015 = vmatprep.mubr.bf16.mxu0 %v3626
        %4016 = vmatmul.mubr.bf16.gmra.mrb[0].mxu0 %v3625
        %v4017 = vpop.f32.mrb[0].mxu0
        %v4018 = vadd.f32 %v3666, %v4017
        %v4019 = vpop.f32.mrb[0].mxu0
        %v4020 = vadd.f32 %v3670, %v4019
        %v4021 = vpop.f32.mrb[0].mxu0
        %v4022 = vadd.f32 %v3666, %v4021
        %v4023 = vpop.f32.mrb[0].mxu0
        %v4024 = vadd.f32 %v3670, %v4023
        %4025 = vdwg.mxu0
        %v4026 = vmax.f32 %v3868, 0.0
        %v4027 = vmax.f32 %v3870, 0.0
        %v4028 = vmax.f32 %v3872, 0.0
        %v4029 = vmax.f32 %v3874, 0.0
        %v4030 = vmax.f32 %v3878, 0.0
        %v4031 = vmax.f32 %v3880, 0.0
        %v4032 = vmax.f32 %v3882, 0.0
        %v4033 = vmax.f32 %v3884, 0.0
        %v4034 = vmax.f32 %v3888, 0.0
        %v4035 = vmax.f32 %v3890, 0.0
        %v4036 = vmax.f32 %v3892, 0.0
        %v4037 = vmax.f32 %v3894, 0.0
        %v4038 = vmax.f32 %v3898, 0.0
        %v4039 = vmax.f32 %v3900, 0.0
        %v4040 = vmax.f32 %v3902, 0.0
        %v4041 = vmax.f32 %v3904, 0.0
        %v4042 = vmax.f32 %v3908, 0.0
        %v4043 = vmax.f32 %v3910, 0.0
        %v4044 = vmax.f32 %v3912, 0.0
        %v4045 = vmax.f32 %v3914, 0.0
        %v4046 = vmax.f32 %v3918, 0.0
        %v4047 = vmax.f32 %v3920, 0.0
        %v4048 = vmax.f32 %v3922, 0.0
        %v4049 = vmax.f32 %v3924, 0.0
        %v4050 = vmax.f32 %v3928, 0.0
        %v4051 = vmax.f32 %v3930, 0.0
        %v4052 = vmax.f32 %v3932, 0.0
        %v4053 = vmax.f32 %v3934, 0.0
        %v4054 = vmax.f32 %v3938, 0.0
        %v4055 = vmax.f32 %v3940, 0.0
        %v4056 = vmax.f32 %v3942, 0.0
        %v4057 = vmax.f32 %v3944, 0.0
        %v4058 = vmax.f32 %v3948, 0.0
        %v4059 = vmax.f32 %v3950, 0.0
        %v4060 = vmax.f32 %v3952, 0.0
        %v4061 = vmax.f32 %v3954, 0.0
        %v4062 = vmax.f32 %v3958, 0.0
        %v4063 = vmax.f32 %v3960, 0.0
        %v4064 = vmax.f32 %v3962, 0.0
        %v4065 = vmax.f32 %v3964, 0.0
        %v4066 = vmax.f32 %v3968, 0.0
        %v4067 = vmax.f32 %v3970, 0.0
        %v4068 = vmax.f32 %v3972, 0.0
        %v4069 = vmax.f32 %v3974, 0.0
        %v4070 = vmax.f32 %v3978, 0.0
        %v4071 = vmax.f32 %v3980, 0.0
        %v4072 = vmax.f32 %v3982, 0.0
        %v4073 = vmax.f32 %v3984, 0.0
        %v4074 = vmax.f32 %v3988, 0.0
        %v4075 = vmax.f32 %v3990, 0.0
        %v4076 = vmax.f32 %v3992, 0.0
        %v4077 = vmax.f32 %v3994, 0.0
        %v4078 = vmax.f32 %v3998, 0.0
        %v4079 = vmax.f32 %v4000, 0.0
        %v4080 = vmax.f32 %v4002, 0.0
        %v4081 = vmax.f32 %v4004, 0.0
        %v4082 = vmax.f32 %v4008, 0.0
        %v4083 = vmax.f32 %v4010, 0.0
        %v4084 = vmax.f32 %v4012, 0.0
        %v4085 = vmax.f32 %v4014, 0.0
        %v4086 = vmax.f32 %v4018, 0.0
        %v4087 = vmax.f32 %v4020, 0.0
        %v4088 = vmax.f32 %v4022, 0.0
        %v4089 = vmax.f32 %v4024, 0.0
        %v4090 = vpack.c.bf16 %v4028, %v4026
        %v4091 = vpack.c.bf16 %v4029, %v4027
        %v4092 = vpack.c.bf16 %v4032, %v4030
        %v4093 = vpack.c.bf16 %v4033, %v4031
        %v4094 = vpack.c.bf16 %v4036, %v4034
        %v4095 = vpack.c.bf16 %v4037, %v4035
        %v4096 = vpack.c.bf16 %v4040, %v4038
        %v4097 = vpack.c.bf16 %v4041, %v4039
        %v4098 = vpack.c.bf16 %v4044, %v4042
        %v4099 = vpack.c.bf16 %v4045, %v4043
        %v4100 = vpack.c.bf16 %v4048, %v4046
        %v4101 = vpack.c.bf16 %v4049, %v4047
        %v4102 = vpack.c.bf16 %v4052, %v4050
        %v4103 = vpack.c.bf16 %v4053, %v4051
        %v4104 = vpack.c.bf16 %v4056, %v4054
        %v4105 = vpack.c.bf16 %v4057, %v4055
        %v4106 = vpack.c.bf16 %v4060, %v4058
        %v4107 = vpack.c.bf16 %v4061, %v4059
        %v4108 = vpack.c.bf16 %v4064, %v4062
        %v4109 = vpack.c.bf16 %v4065, %v4063
        %v4110 = vpack.c.bf16 %v4068, %v4066
        %v4111 = vpack.c.bf16 %v4069, %v4067
        %v4112 = vpack.c.bf16 %v4072, %v4070
        %v4113 = vpack.c.bf16 %v4073, %v4071
        %v4114 = vpack.c.bf16 %v4076, %v4074
        %v4115 = vpack.c.bf16 %v4077, %v4075
        %v4116 = vpack.c.bf16 %v4080, %v4078
        %v4117 = vpack.c.bf16 %v4081, %v4079
        %v4118 = vpack.c.bf16 %v4084, %v4082
        %v4119 = vpack.c.bf16 %v4085, %v4083
        %v4120 = vpack.c.bf16 %v4088, %v4086
        %v4121 = vpack.c.bf16 %v4089, %v4087
        %s4122 = scalar_lea.vmem [#allocation2], 1280
        %v4123 = vld [vmem:[%s4122] sm:$0xff]
        %v4124 = vld [vmem:[%s4122 + $0x8] sm:$0xff]
        %v4125 = vld [vmem:[%s4122 + $0x10] sm:$0xff]
        %v4126 = vld [vmem:[%s4122 + $0x18] sm:$0xff]
        %v4127 = vld [vmem:[%s4122 + $0x20] sm:$0xff]
        %v4128 = vld [vmem:[%s4122 + $0x28] sm:$0xff]
        %v4129 = vld [vmem:[%s4122 + $0x30] sm:$0xff]
        %v4130 = vld [vmem:[%s4122 + $0x38] sm:$0xff]
        %v4131 = vld [vmem:[%s4122 + $0x40] sm:$0xff]
        %v4132 = vld [vmem:[%s4122 + $0x48] sm:$0xff]
        %v4133 = vld [vmem:[%s4122 + $0x50] sm:$0xff]
        %v4134 = vld [vmem:[%s4122 + $0x58] sm:$0xff]
        %v4135 = vld [vmem:[%s4122 + $0x60] sm:$0xff]
        %v4136 = vld [vmem:[%s4122 + $0x68] sm:$0xff]
        %v4137 = vld [vmem:[%s4122 + $0x70] sm:$0xff]
        %v4138 = vld [vmem:[%s4122 + $0x78] sm:$0xff]
        %v4139 = vld [vmem:[%s4122 + $0x80] sm:$0xff]
        %v4140 = vld [vmem:[%s4122 + $0x88] sm:$0xff]
        %v4141 = vld [vmem:[%s4122 + $0x90] sm:$0xff]
        %v4142 = vld [vmem:[%s4122 + $0x98] sm:$0xff]
        %v4143 = vld [vmem:[%s4122 + $0xa0] sm:$0xff]
        %v4144 = vld [vmem:[%s4122 + $0xa8] sm:$0xff]
        %v4145 = vld [vmem:[%s4122 + $0xb0] sm:$0xff]
        %v4146 = vld [vmem:[%s4122 + $0xb8] sm:$0xff]
        %v4147 = vld [vmem:[%s4122 + $0xc0] sm:$0xff]
        %v4148 = vld [vmem:[%s4122 + $0xc8] sm:$0xff]
        %v4149 = vld [vmem:[%s4122 + $0xd0] sm:$0xff]
        %v4150 = vld [vmem:[%s4122 + $0xd8] sm:$0xff]
        %v4151 = vld [vmem:[%s4122 + $0xe0] sm:$0xff]
        %v4152 = vld [vmem:[%s4122 + $0xe8] sm:$0xff]
        %v4153 = vld [vmem:[%s4122 + $0xf0] sm:$0xff]
        %v4154 = vld [vmem:[%s4122 + $0xf8] sm:$0xff]
        %s4155 = scalar_lea.vmem %s3, 6
        %v4156 = vld [vmem:[%s4155] ss:$8 sm:$0x3]
        %v4158 = vlaneseq
        %v4159 = vshrl.u32 %v4158, 7
        %v4160 = vsub.s32 0, %v4159
        %v4161 = vrot.slane %v4156, %v4160
        %v4162 = vlaneseq
        %v4163 = vshrl.u32 %v4162, 7
        %v4164 = vsub.s32 1, %v4163
        %v4165 = vrot.slane %v4156, %v4164
        %v4200 = vunpack.c.l.b16 %v4123
        %v4201 = vunpack.c.h.b16 %v4123
        %v4202 = vunpack.c.l.b16 %v4124
        %v4203 = vunpack.c.h.b16 %v4124
        %v4204 = vunpack.c.l.b16 %v4125
        %v4205 = vunpack.c.h.b16 %v4125
        %v4206 = vunpack.c.l.b16 %v4126
        %v4207 = vunpack.c.h.b16 %v4126
        %v4208 = vunpack.c.l.b16 %v4127
        %v4209 = vunpack.c.h.b16 %v4127
        %v4210 = vunpack.c.l.b16 %v4128
        %v4211 = vunpack.c.h.b16 %v4128
        %v4212 = vunpack.c.l.b16 %v4129
        %v4213 = vunpack.c.h.b16 %v4129
        %v4214 = vunpack.c.l.b16 %v4130
        %v4215 = vunpack.c.h.b16 %v4130
        %v4216 = vunpack.c.l.b16 %v4131
        %v4217 = vunpack.c.h.b16 %v4131
        %v4218 = vunpack.c.l.b16 %v4132
        %v4219 = vunpack.c.h.b16 %v4132
        %v4220 = vunpack.c.l.b16 %v4133
        %v4221 = vunpack.c.h.b16 %v4133
        %v4222 = vunpack.c.l.b16 %v4134
        %v4223 = vunpack.c.h.b16 %v4134
        %v4224 = vunpack.c.l.b16 %v4135
        %v4225 = vunpack.c.h.b16 %v4135
        %v4226 = vunpack.c.l.b16 %v4136
        %v4227 = vunpack.c.h.b16 %v4136
        %v4228 = vunpack.c.l.b16 %v4137
        %v4229 = vunpack.c.h.b16 %v4137
        %v4230 = vunpack.c.l.b16 %v4138
        %v4231 = vunpack.c.h.b16 %v4138
        %v4232 = vunpack.c.l.b16 %v4139
        %v4233 = vunpack.c.h.b16 %v4139
        %v4234 = vunpack.c.l.b16 %v4140
        %v4235 = vunpack.c.h.b16 %v4140
        %v4236 = vunpack.c.l.b16 %v4141
        %v4237 = vunpack.c.h.b16 %v4141
        %v4238 = vunpack.c.l.b16 %v4142
        %v4239 = vunpack.c.h.b16 %v4142
        %v4240 = vunpack.c.l.b16 %v4143
        %v4241 = vunpack.c.h.b16 %v4143
        %v4242 = vunpack.c.l.b16 %v4144
        %v4243 = vunpack.c.h.b16 %v4144
        %v4244 = vunpack.c.l.b16 %v4145
        %v4245 = vunpack.c.h.b16 %v4145
        %v4246 = vunpack.c.l.b16 %v4146
        %v4247 = vunpack.c.h.b16 %v4146
        %v4248 = vunpack.c.l.b16 %v4147
        %v4249 = vunpack.c.h.b16 %v4147
        %v4250 = vunpack.c.l.b16 %v4148
        %v4251 = vunpack.c.h.b16 %v4148
        %v4252 = vunpack.c.l.b16 %v4149
        %v4253 = vunpack.c.h.b16 %v4149
        %v4254 = vunpack.c.l.b16 %v4150
        %v4255 = vunpack.c.h.b16 %v4150
        %v4256 = vunpack.c.l.b16 %v4151
        %v4257 = vunpack.c.h.b16 %v4151
        %v4258 = vunpack.c.l.b16 %v4152
        %v4259 = vunpack.c.h.b16 %v4152
        %v4260 = vunpack.c.l.b16 %v4153
        %v4261 = vunpack.c.h.b16 %v4153
        %v4262 = vunpack.c.l.b16 %v4154
        %v4263 = vunpack.c.h.b16 %v4154
        %v4264 = vpack.c.b16 %v4202, %v4200
        %v4265 = vpack.c.b16 %v4203, %v4201
        %v4266 = vpack.c.b16 %v4206, %v4204
        %v4267 = vpack.c.b16 %v4207, %v4205
        %v4268 = vpack.c.b16 %v4210, %v4208
        %v4269 = vpack.c.b16 %v4211, %v4209
        %v4270 = vpack.c.b16 %v4214, %v4212
        %v4271 = vpack.c.b16 %v4215, %v4213
        %v4272 = vpack.c.b16 %v4218, %v4216
        %v4273 = vpack.c.b16 %v4219, %v4217
        %v4274 = vpack.c.b16 %v4222, %v4220
        %v4275 = vpack.c.b16 %v4223, %v4221
        %v4276 = vpack.c.b16 %v4226, %v4224
        %v4277 = vpack.c.b16 %v4227, %v4225
        %v4278 = vpack.c.b16 %v4230, %v4228
        %v4279 = vpack.c.b16 %v4231, %v4229
        %v4280 = vpack.c.b16 %v4234, %v4232
        %v4281 = vpack.c.b16 %v4235, %v4233
        %v4282 = vpack.c.b16 %v4238, %v4236
        %v4283 = vpack.c.b16 %v4239, %v4237
        %v4284 = vpack.c.b16 %v4242, %v4240
        %v4285 = vpack.c.b16 %v4243, %v4241
        %v4286 = vpack.c.b16 %v4246, %v4244
        %v4287 = vpack.c.b16 %v4247, %v4245
        %v4288 = vpack.c.b16 %v4250, %v4248
        %v4289 = vpack.c.b16 %v4251, %v4249
        %v4290 = vpack.c.b16 %v4254, %v4252
        %v4291 = vpack.c.b16 %v4255, %v4253
        %v4292 = vpack.c.b16 %v4258, %v4256
        %v4293 = vpack.c.b16 %v4259, %v4257
        %v4294 = vpack.c.b16 %v4262, %v4260
        %v4295 = vpack.c.b16 %v4263, %v4261
        %4328 = vmatprep.subr.bf16.mxu0 %v4265
        %4329 = vmatpush1.bf16.msra.mxu0 %v4264
        %4330 = vmatprep.subr.bf16.mxu0 %v4267
        %4331 = vmatpush1.bf16.msra.mxu0 %v4266
        %4332 = vmatprep.subr.bf16.mxu0 %v4269
        %4333 = vmatpush1.bf16.msra.mxu0 %v4268
        %4334 = vmatprep.subr.bf16.mxu0 %v4271
        %4335 = vmatpush1.bf16.msra.mxu0 %v4270
        %4336 = vmatprep.subr.bf16.mxu0 %v4273
        %4337 = vmatpush1.bf16.msra.mxu0 %v4272
        %4338 = vmatprep.subr.bf16.mxu0 %v4275
        %4339 = vmatpush1.bf16.msra.mxu0 %v4274
        %4340 = vmatprep.subr.bf16.mxu0 %v4277
        %4341 = vmatpush1.bf16.msra.mxu0 %v4276
        %4342 = vmatprep.subr.bf16.mxu0 %v4279
        %4343 = vmatpush1.bf16.msra.mxu0 %v4278
        %4344 = vmatprep.subr.bf16.mxu0 %v4281
        %4345 = vmatpush1.bf16.msra.mxu0 %v4280
        %4346 = vmatprep.subr.bf16.mxu0 %v4283
        %4347 = vmatpush1.bf16.msra.mxu0 %v4282
        %4348 = vmatprep.subr.bf16.mxu0 %v4285
        %4349 = vmatpush1.bf16.msra.mxu0 %v4284
        %4350 = vmatprep.subr.bf16.mxu0 %v4287
        %4351 = vmatpush1.bf16.msra.mxu0 %v4286
        %4352 = vmatprep.subr.bf16.mxu0 %v4289
        %4353 = vmatpush1.bf16.msra.mxu0 %v4288
        %4354 = vmatprep.subr.bf16.mxu0 %v4291
        %4355 = vmatpush1.bf16.msra.mxu0 %v4290
        %4356 = vmatprep.subr.bf16.mxu0 %v4293
        %4357 = vmatpush1.bf16.msra.mxu0 %v4292
        %4358 = vmatprep.subr.bf16.mxu0 %v4295
        %4359 = vmatpush1.bf16.msra.mxu0 %v4294
        %4360 = vmatprep.mubr.bf16.mxu0 %v4091
        %4361 = vmatmul.mubr.bf16.gmra.mrb[0].mxu0 %v4090
        %v4362 = vpop.f32.mrb[0].mxu0
        %v4363 = vadd.f32 %v4161, %v4362
        %v4364 = vpop.f32.mrb[0].mxu0
        %v4365 = vadd.f32 %v4165, %v4364
        %v4366 = vpop.f32.mrb[0].mxu0
        %v4367 = vadd.f32 %v4161, %v4366
        %v4368 = vpop.f32.mrb[0].mxu0
        %v4369 = vadd.f32 %v4165, %v4368
        %4370 = vmatprep.mubr.bf16.mxu0 %v4093
        %4371 = vmatmul.mubr.bf16.gmra.mrb[0].mxu0 %v4092
        %v4372 = vpop.f32.mrb[0].mxu0
        %v4373 = vadd.f32 %v4161, %v4372
        %v4374 = vpop.f32.mrb[0].mxu0
        %v4375 = vadd.f32 %v4165, %v4374
        %v4376 = vpop.f32.mrb[0].mxu0
        %v4377 = vadd.f32 %v4161, %v4376
        %v4378 = vpop.f32.mrb[0].mxu0
        %v4379 = vadd.f32 %v4165, %v4378
        %4380 = vmatprep.mubr.bf16.mxu0 %v4095
        %4381 = vmatmul.mubr.bf16.gmra.mrb[0].mxu0 %v4094
        %v4382 = vpop.f32.mrb[0].mxu0
        %v4383 = vadd.f32 %v4161, %v4382
        %v4384 = vpop.f32.mrb[0].mxu0
        %v4385 = vadd.f32 %v4165, %v4384
        %v4386 = vpop.f32.mrb[0].mxu0
        %v4387 = vadd.f32 %v4161, %v4386
        %v4388 = vpop.f32.mrb[0].mxu0
        %v4389 = vadd.f32 %v4165, %v4388
        %4390 = vmatprep.mubr.bf16.mxu0 %v4097
        %4391 = vmatmul.mubr.bf16.gmra.mrb[0].mxu0 %v4096
        %v4392 = vpop.f32.mrb[0].mxu0
        %v4393 = vadd.f32 %v4161, %v4392
        %v4394 = vpop.f32.mrb[0].mxu0
        %v4395 = vadd.f32 %v4165, %v4394
        %v4396 = vpop.f32.mrb[0].mxu0
        %v4397 = vadd.f32 %v4161, %v4396
        %v4398 = vpop.f32.mrb[0].mxu0
        %v4399 = vadd.f32 %v4165, %v4398
        %4400 = vmatprep.mubr.bf16.mxu0 %v4099
        %4401 = vmatmul.mubr.bf16.gmra.mrb[0].mxu0 %v4098
        %v4402 = vpop.f32.mrb[0].mxu0
        %v4403 = vadd.f32 %v4161, %v4402
        %v4404 = vpop.f32.mrb[0].mxu0
        %v4405 = vadd.f32 %v4165, %v4404
        %v4406 = vpop.f32.mrb[0].mxu0
        %v4407 = vadd.f32 %v4161, %v4406
        %v4408 = vpop.f32.mrb[0].mxu0
        %v4409 = vadd.f32 %v4165, %v4408
        %4410 = vmatprep.mubr.bf16.mxu0 %v4101
        %4411 = vmatmul.mubr.bf16.gmra.mrb[0].mxu0 %v4100
        %v4412 = vpop.f32.mrb[0].mxu0
        %v4413 = vadd.f32 %v4161, %v4412
        %v4414 = vpop.f32.mrb[0].mxu0
        %v4415 = vadd.f32 %v4165, %v4414
        %v4416 = vpop.f32.mrb[0].mxu0
        %v4417 = vadd.f32 %v4161, %v4416
        %v4418 = vpop.f32.mrb[0].mxu0
        %v4419 = vadd.f32 %v4165, %v4418
        %4420 = vmatprep.mubr.bf16.mxu0 %v4103
        %4421 = vmatmul.mubr.bf16.gmra.mrb[0].mxu0 %v4102
        %v4422 = vpop.f32.mrb[0].mxu0
        %v4423 = vadd.f32 %v4161, %v4422
        %v4424 = vpop.f32.mrb[0].mxu0
        %v4425 = vadd.f32 %v4165, %v4424
        %v4426 = vpop.f32.mrb[0].mxu0
        %v4427 = vadd.f32 %v4161, %v4426
        %v4428 = vpop.f32.mrb[0].mxu0
        %v4429 = vadd.f32 %v4165, %v4428
        %4430 = vmatprep.mubr.bf16.mxu0 %v4105
        %4431 = vmatmul.mubr.bf16.gmra.mrb[0].mxu0 %v4104
        %v4432 = vpop.f32.mrb[0].mxu0
        %v4433 = vadd.f32 %v4161, %v4432
        %v4434 = vpop.f32.mrb[0].mxu0
        %v4435 = vadd.f32 %v4165, %v4434
        %v4436 = vpop.f32.mrb[0].mxu0
        %v4437 = vadd.f32 %v4161, %v4436
        %v4438 = vpop.f32.mrb[0].mxu0
        %v4439 = vadd.f32 %v4165, %v4438
        %4440 = vmatprep.mubr.bf16.mxu0 %v4107
        %4441 = vmatmul.mubr.bf16.gmra.mrb[0].mxu0 %v4106
        %v4442 = vpop.f32.mrb[0].mxu0
        %v4443 = vadd.f32 %v4161, %v4442
        %v4444 = vpop.f32.mrb[0].mxu0
        %v4445 = vadd.f32 %v4165, %v4444
        %v4446 = vpop.f32.mrb[0].mxu0
        %v4447 = vadd.f32 %v4161, %v4446
        %v4448 = vpop.f32.mrb[0].mxu0
        %v4449 = vadd.f32 %v4165, %v4448
        %4450 = vmatprep.mubr.bf16.mxu0 %v4109
        %4451 = vmatmul.mubr.bf16.gmra.mrb[0].mxu0 %v4108
        %v4452 = vpop.f32.mrb[0].mxu0
        %v4453 = vadd.f32 %v4161, %v4452
        %v4454 = vpop.f32.mrb[0].mxu0
        %v4455 = vadd.f32 %v4165, %v4454
        %v4456 = vpop.f32.mrb[0].mxu0
        %v4457 = vadd.f32 %v4161, %v4456
        %v4458 = vpop.f32.mrb[0].mxu0
        %v4459 = vadd.f32 %v4165, %v4458
        %4460 = vmatprep.mubr.bf16.mxu0 %v4111
        %4461 = vmatmul.mubr.bf16.gmra.mrb[0].mxu0 %v4110
        %v4462 = vpop.f32.mrb[0].mxu0
        %v4463 = vadd.f32 %v4161, %v4462
        %v4464 = vpop.f32.mrb[0].mxu0
        %v4465 = vadd.f32 %v4165, %v4464
        %v4466 = vpop.f32.mrb[0].mxu0
        %v4467 = vadd.f32 %v4161, %v4466
        %v4468 = vpop.f32.mrb[0].mxu0
        %v4469 = vadd.f32 %v4165, %v4468
        %4470 = vmatprep.mubr.bf16.mxu0 %v4113
        %4471 = vmatmul.mubr.bf16.gmra.mrb[0].mxu0 %v4112
        %v4472 = vpop.f32.mrb[0].mxu0
        %v4473 = vadd.f32 %v4161, %v4472
        %v4474 = vpop.f32.mrb[0].mxu0
        %v4475 = vadd.f32 %v4165, %v4474
        %v4476 = vpop.f32.mrb[0].mxu0
        %v4477 = vadd.f32 %v4161, %v4476
        %v4478 = vpop.f32.mrb[0].mxu0
        %v4479 = vadd.f32 %v4165, %v4478
        %4480 = vmatprep.mubr.bf16.mxu0 %v4115
        %4481 = vmatmul.mubr.bf16.gmra.mrb[0].mxu0 %v4114
        %v4482 = vpop.f32.mrb[0].mxu0
        %v4483 = vadd.f32 %v4161, %v4482
        %v4484 = vpop.f32.mrb[0].mxu0
        %v4485 = vadd.f32 %v4165, %v4484
        %v4486 = vpop.f32.mrb[0].mxu0
        %v4487 = vadd.f32 %v4161, %v4486
        %v4488 = vpop.f32.mrb[0].mxu0
        %v4489 = vadd.f32 %v4165, %v4488
        %4490 = vmatprep.mubr.bf16.mxu0 %v4117
        %4491 = vmatmul.mubr.bf16.gmra.mrb[0].mxu0 %v4116
        %v4492 = vpop.f32.mrb[0].mxu0
        %v4493 = vadd.f32 %v4161, %v4492
        %v4494 = vpop.f32.mrb[0].mxu0
        %v4495 = vadd.f32 %v4165, %v4494
        %v4496 = vpop.f32.mrb[0].mxu0
        %v4497 = vadd.f32 %v4161, %v4496
        %v4498 = vpop.f32.mrb[0].mxu0
        %v4499 = vadd.f32 %v4165, %v4498
        %4500 = vmatprep.mubr.bf16.mxu0 %v4119
        %4501 = vmatmul.mubr.bf16.gmra.mrb[0].mxu0 %v4118
        %v4502 = vpop.f32.mrb[0].mxu0
        %v4503 = vadd.f32 %v4161, %v4502
        %v4504 = vpop.f32.mrb[0].mxu0
        %v4505 = vadd.f32 %v4165, %v4504
        %v4506 = vpop.f32.mrb[0].mxu0
        %v4507 = vadd.f32 %v4161, %v4506
        %v4508 = vpop.f32.mrb[0].mxu0
        %v4509 = vadd.f32 %v4165, %v4508
        %4510 = vmatprep.mubr.bf16.mxu0 %v4121
        %4511 = vmatmul.mubr.bf16.gmra.mrb[0].mxu0 %v4120
        %v4512 = vpop.f32.mrb[0].mxu0
        %v4513 = vadd.f32 %v4161, %v4512
        %v4514 = vpop.f32.mrb[0].mxu0
        %v4515 = vadd.f32 %v4165, %v4514
        %v4516 = vpop.f32.mrb[0].mxu0
        %v4517 = vadd.f32 %v4161, %v4516
        %v4518 = vpop.f32.mrb[0].mxu0
        %v4519 = vadd.f32 %v4165, %v4518
        %4520 = vdwg.mxu0
        %v4521 = vmax.f32 %v4363, 0.0
        %v4522 = vmax.f32 %v4365, 0.0
        %v4523 = vmax.f32 %v4367, 0.0
        %v4524 = vmax.f32 %v4369, 0.0
        %v4525 = vmax.f32 %v4373, 0.0
        %v4526 = vmax.f32 %v4375, 0.0
        %v4527 = vmax.f32 %v4377, 0.0
        %v4528 = vmax.f32 %v4379, 0.0
        %v4529 = vmax.f32 %v4383, 0.0
        %v4530 = vmax.f32 %v4385, 0.0
        %v4531 = vmax.f32 %v4387, 0.0
        %v4532 = vmax.f32 %v4389, 0.0
        %v4533 = vmax.f32 %v4393, 0.0
        %v4534 = vmax.f32 %v4395, 0.0
        %v4535 = vmax.f32 %v4397, 0.0
        %v4536 = vmax.f32 %v4399, 0.0
        %v4537 = vmax.f32 %v4403, 0.0
        %v4538 = vmax.f32 %v4405, 0.0
        %v4539 = vmax.f32 %v4407, 0.0
        %v4540 = vmax.f32 %v4409, 0.0
        %v4541 = vmax.f32 %v4413, 0.0
        %v4542 = vmax.f32 %v4415, 0.0
        %v4543 = vmax.f32 %v4417, 0.0
        %v4544 = vmax.f32 %v4419, 0.0
        %v4545 = vmax.f32 %v4423, 0.0
        %v4546 = vmax.f32 %v4425, 0.0
        %v4547 = vmax.f32 %v4427, 0.0
        %v4548 = vmax.f32 %v4429, 0.0
        %v4549 = vmax.f32 %v4433, 0.0
        %v4550 = vmax.f32 %v4435, 0.0
        %v4551 = vmax.f32 %v4437, 0.0
        %v4552 = vmax.f32 %v4439, 0.0
        %v4553 = vmax.f32 %v4443, 0.0
        %v4554 = vmax.f32 %v4445, 0.0
        %v4555 = vmax.f32 %v4447, 0.0
        %v4556 = vmax.f32 %v4449, 0.0
        %v4557 = vmax.f32 %v4453, 0.0
        %v4558 = vmax.f32 %v4455, 0.0
        %v4559 = vmax.f32 %v4457, 0.0
        %v4560 = vmax.f32 %v4459, 0.0
        %v4561 = vmax.f32 %v4463, 0.0
        %v4562 = vmax.f32 %v4465, 0.0
        %v4563 = vmax.f32 %v4467, 0.0
        %v4564 = vmax.f32 %v4469, 0.0
        %v4565 = vmax.f32 %v4473, 0.0
        %v4566 = vmax.f32 %v4475, 0.0
        %v4567 = vmax.f32 %v4477, 0.0
        %v4568 = vmax.f32 %v4479, 0.0
        %v4569 = vmax.f32 %v4483, 0.0
        %v4570 = vmax.f32 %v4485, 0.0
        %v4571 = vmax.f32 %v4487, 0.0
        %v4572 = vmax.f32 %v4489, 0.0
        %v4573 = vmax.f32 %v4493, 0.0
        %v4574 = vmax.f32 %v4495, 0.0
        %v4575 = vmax.f32 %v4497, 0.0
        %v4576 = vmax.f32 %v4499, 0.0
        %v4577 = vmax.f32 %v4503, 0.0
        %v4578 = vmax.f32 %v4505, 0.0
        %v4579 = vmax.f32 %v4507, 0.0
        %v4580 = vmax.f32 %v4509, 0.0
        %v4581 = vmax.f32 %v4513, 0.0
        %v4582 = vmax.f32 %v4515, 0.0
        %v4583 = vmax.f32 %v4517, 0.0
        %v4584 = vmax.f32 %v4519, 0.0
        %v4585 = vpack.c.bf16 %v4523, %v4521
        %v4586 = vpack.c.bf16 %v4524, %v4522
        %v4587 = vpack.c.bf16 %v4527, %v4525
        %v4588 = vpack.c.bf16 %v4528, %v4526
        %v4589 = vpack.c.bf16 %v4531, %v4529
        %v4590 = vpack.c.bf16 %v4532, %v4530
        %v4591 = vpack.c.bf16 %v4535, %v4533
        %v4592 = vpack.c.bf16 %v4536, %v4534
        %v4593 = vpack.c.bf16 %v4539, %v4537
        %v4594 = vpack.c.bf16 %v4540, %v4538
        %v4595 = vpack.c.bf16 %v4543, %v4541
        %v4596 = vpack.c.bf16 %v4544, %v4542
        %v4597 = vpack.c.bf16 %v4547, %v4545
        %v4598 = vpack.c.bf16 %v4548, %v4546
        %v4599 = vpack.c.bf16 %v4551, %v4549
        %v4600 = vpack.c.bf16 %v4552, %v4550
        %v4601 = vpack.c.bf16 %v4555, %v4553
        %v4602 = vpack.c.bf16 %v4556, %v4554
        %v4603 = vpack.c.bf16 %v4559, %v4557
        %v4604 = vpack.c.bf16 %v4560, %v4558
        %v4605 = vpack.c.bf16 %v4563, %v4561
        %v4606 = vpack.c.bf16 %v4564, %v4562
        %v4607 = vpack.c.bf16 %v4567, %v4565
        %v4608 = vpack.c.bf16 %v4568, %v4566
        %v4609 = vpack.c.bf16 %v4571, %v4569
        %v4610 = vpack.c.bf16 %v4572, %v4570
        %v4611 = vpack.c.bf16 %v4575, %v4573
        %v4612 = vpack.c.bf16 %v4576, %v4574
        %v4613 = vpack.c.bf16 %v4579, %v4577
        %v4614 = vpack.c.bf16 %v4580, %v4578
        %v4615 = vpack.c.bf16 %v4583, %v4581
        %v4616 = vpack.c.bf16 %v4584, %v4582
        %s4617 = scalar_lea.vmem [#allocation2], 1536
        %v4618 = vld [vmem:[%s4617] sm:$0xff]
        %v4619 = vld [vmem:[%s4617 + $0x8] sm:$0xff]
        %v4620 = vld [vmem:[%s4617 + $0x10] sm:$0xff]
        %v4621 = vld [vmem:[%s4617 + $0x18] sm:$0xff]
        %v4622 = vld [vmem:[%s4617 + $0x20] sm:$0xff]
        %v4623 = vld [vmem:[%s4617 + $0x28] sm:$0xff]
        %v4624 = vld [vmem:[%s4617 + $0x30] sm:$0xff]
        %v4625 = vld [vmem:[%s4617 + $0x38] sm:$0xff]
        %v4626 = vld [vmem:[%s4617 + $0x40] sm:$0xff]
        %v4627 = vld [vmem:[%s4617 + $0x48] sm:$0xff]
        %v4628 = vld [vmem:[%s4617 + $0x50] sm:$0xff]
        %v4629 = vld [vmem:[%s4617 + $0x58] sm:$0xff]
        %v4630 = vld [vmem:[%s4617 + $0x60] sm:$0xff]
        %v4631 = vld [vmem:[%s4617 + $0x68] sm:$0xff]
        %v4632 = vld [vmem:[%s4617 + $0x70] sm:$0xff]
        %v4633 = vld [vmem:[%s4617 + $0x78] sm:$0xff]
        %v4634 = vld [vmem:[%s4617 + $0x80] sm:$0xff]
        %v4635 = vld [vmem:[%s4617 + $0x88] sm:$0xff]
        %v4636 = vld [vmem:[%s4617 + $0x90] sm:$0xff]
        %v4637 = vld [vmem:[%s4617 + $0x98] sm:$0xff]
        %v4638 = vld [vmem:[%s4617 + $0xa0] sm:$0xff]
        %v4639 = vld [vmem:[%s4617 + $0xa8] sm:$0xff]
        %v4640 = vld [vmem:[%s4617 + $0xb0] sm:$0xff]
        %v4641 = vld [vmem:[%s4617 + $0xb8] sm:$0xff]
        %v4642 = vld [vmem:[%s4617 + $0xc0] sm:$0xff]
        %v4643 = vld [vmem:[%s4617 + $0xc8] sm:$0xff]
        %v4644 = vld [vmem:[%s4617 + $0xd0] sm:$0xff]
        %v4645 = vld [vmem:[%s4617 + $0xd8] sm:$0xff]
        %v4646 = vld [vmem:[%s4617 + $0xe0] sm:$0xff]
        %v4647 = vld [vmem:[%s4617 + $0xe8] sm:$0xff]
        %v4648 = vld [vmem:[%s4617 + $0xf0] sm:$0xff]
        %v4649 = vld [vmem:[%s4617 + $0xf8] sm:$0xff]
        %s4650 = scalar_lea.vmem %s3, 7
        %v4651 = vld [vmem:[%s4650] ss:$8 sm:$0x3]
        %v4653 = vlaneseq
        %v4654 = vshrl.u32 %v4653, 7
        %v4655 = vsub.s32 0, %v4654
        %v4656 = vrot.slane %v4651, %v4655
        %v4657 = vlaneseq
        %v4658 = vshrl.u32 %v4657, 7
        %v4659 = vsub.s32 1, %v4658
        %v4660 = vrot.slane %v4651, %v4659
        %v4695 = vunpack.c.l.b16 %v4618
        %v4696 = vunpack.c.h.b16 %v4618
        %v4697 = vunpack.c.l.b16 %v4619
        %v4698 = vunpack.c.h.b16 %v4619
        %v4699 = vunpack.c.l.b16 %v4620
        %v4700 = vunpack.c.h.b16 %v4620
        %v4701 = vunpack.c.l.b16 %v4621
        %v4702 = vunpack.c.h.b16 %v4621
        %v4703 = vunpack.c.l.b16 %v4622
        %v4704 = vunpack.c.h.b16 %v4622
        %v4705 = vunpack.c.l.b16 %v4623
        %v4706 = vunpack.c.h.b16 %v4623
        %v4707 = vunpack.c.l.b16 %v4624
        %v4708 = vunpack.c.h.b16 %v4624
        %v4709 = vunpack.c.l.b16 %v4625
        %v4710 = vunpack.c.h.b16 %v4625
        %v4711 = vunpack.c.l.b16 %v4626
        %v4712 = vunpack.c.h.b16 %v4626
        %v4713 = vunpack.c.l.b16 %v4627
        %v4714 = vunpack.c.h.b16 %v4627
        %v4715 = vunpack.c.l.b16 %v4628
        %v4716 = vunpack.c.h.b16 %v4628
        %v4717 = vunpack.c.l.b16 %v4629
        %v4718 = vunpack.c.h.b16 %v4629
        %v4719 = vunpack.c.l.b16 %v4630
        %v4720 = vunpack.c.h.b16 %v4630
        %v4721 = vunpack.c.l.b16 %v4631
        %v4722 = vunpack.c.h.b16 %v4631
        %v4723 = vunpack.c.l.b16 %v4632
        %v4724 = vunpack.c.h.b16 %v4632
        %v4725 = vunpack.c.l.b16 %v4633
        %v4726 = vunpack.c.h.b16 %v4633
        %v4727 = vunpack.c.l.b16 %v4634
        %v4728 = vunpack.c.h.b16 %v4634
        %v4729 = vunpack.c.l.b16 %v4635
        %v4730 = vunpack.c.h.b16 %v4635
        %v4731 = vunpack.c.l.b16 %v4636
        %v4732 = vunpack.c.h.b16 %v4636
        %v4733 = vunpack.c.l.b16 %v4637
        %v4734 = vunpack.c.h.b16 %v4637
        %v4735 = vunpack.c.l.b16 %v4638
        %v4736 = vunpack.c.h.b16 %v4638
        %v4737 = vunpack.c.l.b16 %v4639
        %v4738 = vunpack.c.h.b16 %v4639
        %v4739 = vunpack.c.l.b16 %v4640
        %v4740 = vunpack.c.h.b16 %v4640
        %v4741 = vunpack.c.l.b16 %v4641
        %v4742 = vunpack.c.h.b16 %v4641
        %v4743 = vunpack.c.l.b16 %v4642
        %v4744 = vunpack.c.h.b16 %v4642
        %v4745 = vunpack.c.l.b16 %v4643
        %v4746 = vunpack.c.h.b16 %v4643
        %v4747 = vunpack.c.l.b16 %v4644
        %v4748 = vunpack.c.h.b16 %v4644
        %v4749 = vunpack.c.l.b16 %v4645
        %v4750 = vunpack.c.h.b16 %v4645
        %v4751 = vunpack.c.l.b16 %v4646
        %v4752 = vunpack.c.h.b16 %v4646
        %v4753 = vunpack.c.l.b16 %v4647
        %v4754 = vunpack.c.h.b16 %v4647
        %v4755 = vunpack.c.l.b16 %v4648
        %v4756 = vunpack.c.h.b16 %v4648
        %v4757 = vunpack.c.l.b16 %v4649
        %v4758 = vunpack.c.h.b16 %v4649
        %v4759 = vpack.c.b16 %v4697, %v4695
        %v4760 = vpack.c.b16 %v4698, %v4696
        %v4761 = vpack.c.b16 %v4701, %v4699
        %v4762 = vpack.c.b16 %v4702, %v4700
        %v4763 = vpack.c.b16 %v4705, %v4703
        %v4764 = vpack.c.b16 %v4706, %v4704
        %v4765 = vpack.c.b16 %v4709, %v4707
        %v4766 = vpack.c.b16 %v4710, %v4708
        %v4767 = vpack.c.b16 %v4713, %v4711
        %v4768 = vpack.c.b16 %v4714, %v4712
        %v4769 = vpack.c.b16 %v4717, %v4715
        %v4770 = vpack.c.b16 %v4718, %v4716
        %v4771 = vpack.c.b16 %v4721, %v4719
        %v4772 = vpack.c.b16 %v4722, %v4720
        %v4773 = vpack.c.b16 %v4725, %v4723
        %v4774 = vpack.c.b16 %v4726, %v4724
        %v4775 = vpack.c.b16 %v4729, %v4727
        %v4776 = vpack.c.b16 %v4730, %v4728
        %v4777 = vpack.c.b16 %v4733, %v4731
        %v4778 = vpack.c.b16 %v4734, %v4732
        %v4779 = vpack.c.b16 %v4737, %v4735
        %v4780 = vpack.c.b16 %v4738, %v4736
        %v4781 = vpack.c.b16 %v4741, %v4739
        %v4782 = vpack.c.b16 %v4742, %v4740
        %v4783 = vpack.c.b16 %v4745, %v4743
        %v4784 = vpack.c.b16 %v4746, %v4744
        %v4785 = vpack.c.b16 %v4749, %v4747
        %v4786 = vpack.c.b16 %v4750, %v4748
        %v4787 = vpack.c.b16 %v4753, %v4751
        %v4788 = vpack.c.b16 %v4754, %v4752
        %v4789 = vpack.c.b16 %v4757, %v4755
        %v4790 = vpack.c.b16 %v4758, %v4756
        %4823 = vmatprep.subr.bf16.mxu0 %v4760
        %4824 = vmatpush1.bf16.msra.mxu0 %v4759
        %4825 = vmatprep.subr.bf16.mxu0 %v4762
        %4826 = vmatpush1.bf16.msra.mxu0 %v4761
        %4827 = vmatprep.subr.bf16.mxu0 %v4764
        %4828 = vmatpush1.bf16.msra.mxu0 %v4763
        %4829 = vmatprep.subr.bf16.mxu0 %v4766
        %4830 = vmatpush1.bf16.msra.mxu0 %v4765
        %4831 = vmatprep.subr.bf16.mxu0 %v4768
        %4832 = vmatpush1.bf16.msra.mxu0 %v4767
        %4833 = vmatprep.subr.bf16.mxu0 %v4770
        %4834 = vmatpush1.bf16.msra.mxu0 %v4769
        %4835 = vmatprep.subr.bf16.mxu0 %v4772
        %4836 = vmatpush1.bf16.msra.mxu0 %v4771
        %4837 = vmatprep.subr.bf16.mxu0 %v4774
        %4838 = vmatpush1.bf16.msra.mxu0 %v4773
        %4839 = vmatprep.subr.bf16.mxu0 %v4776
        %4840 = vmatpush1.bf16.msra.mxu0 %v4775
        %4841 = vmatprep.subr.bf16.mxu0 %v4778
        %4842 = vmatpush1.bf16.msra.mxu0 %v4777
        %4843 = vmatprep.subr.bf16.mxu0 %v4780
        %4844 = vmatpush1.bf16.msra.mxu0 %v4779
        %4845 = vmatprep.subr.bf16.mxu0 %v4782
        %4846 = vmatpush1.bf16.msra.mxu0 %v4781
        %4847 = vmatprep.subr.bf16.mxu0 %v4784
        %4848 = vmatpush1.bf16.msra.mxu0 %v4783
        %4849 = vmatprep.subr.bf16.mxu0 %v4786
        %4850 = vmatpush1.bf16.msra.mxu0 %v4785
        %4851 = vmatprep.subr.bf16.mxu0 %v4788
        %4852 = vmatpush1.bf16.msra.mxu0 %v4787
        %4853 = vmatprep.subr.bf16.mxu0 %v4790
        %4854 = vmatpush1.bf16.msra.mxu0 %v4789
        %4855 = vmatprep.mubr.bf16.mxu0 %v4586
        %4856 = vmatmul.mubr.bf16.gmra.mrb[0].mxu0 %v4585
        %v4857 = vpop.f32.mrb[0].mxu0
        %v4858 = vadd.f32 %v4656, %v4857
        %v4859 = vpop.f32.mrb[0].mxu0
        %v4860 = vadd.f32 %v4660, %v4859
        %v4861 = vpop.f32.mrb[0].mxu0
        %v4862 = vadd.f32 %v4656, %v4861
        %v4863 = vpop.f32.mrb[0].mxu0
        %v4864 = vadd.f32 %v4660, %v4863
        %4865 = vmatprep.mubr.bf16.mxu0 %v4588
        %4866 = vmatmul.mubr.bf16.gmra.mrb[0].mxu0 %v4587
        %v4867 = vpop.f32.mrb[0].mxu0
        %v4868 = vadd.f32 %v4656, %v4867
        %v4869 = vpop.f32.mrb[0].mxu0
        %v4870 = vadd.f32 %v4660, %v4869
        %v4871 = vpop.f32.mrb[0].mxu0
        %v4872 = vadd.f32 %v4656, %v4871
        %v4873 = vpop.f32.mrb[0].mxu0
        %v4874 = vadd.f32 %v4660, %v4873
        %4875 = vmatprep.mubr.bf16.mxu0 %v4590
        %4876 = vmatmul.mubr.bf16.gmra.mrb[0].mxu0 %v4589
        %v4877 = vpop.f32.mrb[0].mxu0
        %v4878 = vadd.f32 %v4656, %v4877
        %v4879 = vpop.f32.mrb[0].mxu0
        %v4880 = vadd.f32 %v4660, %v4879
        %v4881 = vpop.f32.mrb[0].mxu0
        %v4882 = vadd.f32 %v4656, %v4881
        %v4883 = vpop.f32.mrb[0].mxu0
        %v4884 = vadd.f32 %v4660, %v4883
        %4885 = vmatprep.mubr.bf16.mxu0 %v4592
        %4886 = vmatmul.mubr.bf16.gmra.mrb[0].mxu0 %v4591
        %v4887 = vpop.f32.mrb[0].mxu0
        %v4888 = vadd.f32 %v4656, %v4887
        %v4889 = vpop.f32.mrb[0].mxu0
        %v4890 = vadd.f32 %v4660, %v4889
        %v4891 = vpop.f32.mrb[0].mxu0
        %v4892 = vadd.f32 %v4656, %v4891
        %v4893 = vpop.f32.mrb[0].mxu0
        %v4894 = vadd.f32 %v4660, %v4893
        %4895 = vmatprep.mubr.bf16.mxu0 %v4594
        %4896 = vmatmul.mubr.bf16.gmra.mrb[0].mxu0 %v4593
        %v4897 = vpop.f32.mrb[0].mxu0
        %v4898 = vadd.f32 %v4656, %v4897
        %v4899 = vpop.f32.mrb[0].mxu0
        %v4900 = vadd.f32 %v4660, %v4899
        %v4901 = vpop.f32.mrb[0].mxu0
        %v4902 = vadd.f32 %v4656, %v4901
        %v4903 = vpop.f32.mrb[0].mxu0
        %v4904 = vadd.f32 %v4660, %v4903
        %4905 = vmatprep.mubr.bf16.mxu0 %v4596
        %4906 = vmatmul.mubr.bf16.gmra.mrb[0].mxu0 %v4595
        %v4907 = vpop.f32.mrb[0].mxu0
        %v4908 = vadd.f32 %v4656, %v4907
        %v4909 = vpop.f32.mrb[0].mxu0
        %v4910 = vadd.f32 %v4660, %v4909
        %v4911 = vpop.f32.mrb[0].mxu0
        %v4912 = vadd.f32 %v4656, %v4911
        %v4913 = vpop.f32.mrb[0].mxu0
        %v4914 = vadd.f32 %v4660, %v4913
        %4915 = vmatprep.mubr.bf16.mxu0 %v4598
        %4916 = vmatmul.mubr.bf16.gmra.mrb[0].mxu0 %v4597
        %v4917 = vpop.f32.mrb[0].mxu0
        %v4918 = vadd.f32 %v4656, %v4917
        %v4919 = vpop.f32.mrb[0].mxu0
        %v4920 = vadd.f32 %v4660, %v4919
        %v4921 = vpop.f32.mrb[0].mxu0
        %v4922 = vadd.f32 %v4656, %v4921
        %v4923 = vpop.f32.mrb[0].mxu0
        %v4924 = vadd.f32 %v4660, %v4923
        %4925 = vmatprep.mubr.bf16.mxu0 %v4600
        %4926 = vmatmul.mubr.bf16.gmra.mrb[0].mxu0 %v4599
        %v4927 = vpop.f32.mrb[0].mxu0
        %v4928 = vadd.f32 %v4656, %v4927
        %v4929 = vpop.f32.mrb[0].mxu0
        %v4930 = vadd.f32 %v4660, %v4929
        %v4931 = vpop.f32.mrb[0].mxu0
        %v4932 = vadd.f32 %v4656, %v4931
        %v4933 = vpop.f32.mrb[0].mxu0
        %v4934 = vadd.f32 %v4660, %v4933
        %4935 = vmatprep.mubr.bf16.mxu0 %v4602
        %4936 = vmatmul.mubr.bf16.gmra.mrb[0].mxu0 %v4601
        %v4937 = vpop.f32.mrb[0].mxu0
        %v4938 = vadd.f32 %v4656, %v4937
        %v4939 = vpop.f32.mrb[0].mxu0
        %v4940 = vadd.f32 %v4660, %v4939
        %v4941 = vpop.f32.mrb[0].mxu0
        %v4942 = vadd.f32 %v4656, %v4941
        %v4943 = vpop.f32.mrb[0].mxu0
        %v4944 = vadd.f32 %v4660, %v4943
        %4945 = vmatprep.mubr.bf16.mxu0 %v4604
        %4946 = vmatmul.mubr.bf16.gmra.mrb[0].mxu0 %v4603
        %v4947 = vpop.f32.mrb[0].mxu0
        %v4948 = vadd.f32 %v4656, %v4947
        %v4949 = vpop.f32.mrb[0].mxu0
        %v4950 = vadd.f32 %v4660, %v4949
        %v4951 = vpop.f32.mrb[0].mxu0
        %v4952 = vadd.f32 %v4656, %v4951
        %v4953 = vpop.f32.mrb[0].mxu0
        %v4954 = vadd.f32 %v4660, %v4953
        %4955 = vmatprep.mubr.bf16.mxu0 %v4606
        %4956 = vmatmul.mubr.bf16.gmra.mrb[0].mxu0 %v4605
        %v4957 = vpop.f32.mrb[0].mxu0
        %v4958 = vadd.f32 %v4656, %v4957
        %v4959 = vpop.f32.mrb[0].mxu0
        %v4960 = vadd.f32 %v4660, %v4959
        %v4961 = vpop.f32.mrb[0].mxu0
        %v4962 = vadd.f32 %v4656, %v4961
        %v4963 = vpop.f32.mrb[0].mxu0
        %v4964 = vadd.f32 %v4660, %v4963
        %4965 = vmatprep.mubr.bf16.mxu0 %v4608
        %4966 = vmatmul.mubr.bf16.gmra.mrb[0].mxu0 %v4607
        %v4967 = vpop.f32.mrb[0].mxu0
        %v4968 = vadd.f32 %v4656, %v4967
        %v4969 = vpop.f32.mrb[0].mxu0
        %v4970 = vadd.f32 %v4660, %v4969
        %v4971 = vpop.f32.mrb[0].mxu0
        %v4972 = vadd.f32 %v4656, %v4971
        %v4973 = vpop.f32.mrb[0].mxu0
        %v4974 = vadd.f32 %v4660, %v4973
        %4975 = vmatprep.mubr.bf16.mxu0 %v4610
        %4976 = vmatmul.mubr.bf16.gmra.mrb[0].mxu0 %v4609
        %v4977 = vpop.f32.mrb[0].mxu0
        %v4978 = vadd.f32 %v4656, %v4977
        %v4979 = vpop.f32.mrb[0].mxu0
        %v4980 = vadd.f32 %v4660, %v4979
        %v4981 = vpop.f32.mrb[0].mxu0
        %v4982 = vadd.f32 %v4656, %v4981
        %v4983 = vpop.f32.mrb[0].mxu0
        %v4984 = vadd.f32 %v4660, %v4983
        %4985 = vmatprep.mubr.bf16.mxu0 %v4612
        %4986 = vmatmul.mubr.bf16.gmra.mrb[0].mxu0 %v4611
        %v4987 = vpop.f32.mrb[0].mxu0
        %v4988 = vadd.f32 %v4656, %v4987
        %v4989 = vpop.f32.mrb[0].mxu0
        %v4990 = vadd.f32 %v4660, %v4989
        %v4991 = vpop.f32.mrb[0].mxu0
        %v4992 = vadd.f32 %v4656, %v4991
        %v4993 = vpop.f32.mrb[0].mxu0
        %v4994 = vadd.f32 %v4660, %v4993
        %4995 = vmatprep.mubr.bf16.mxu0 %v4614
        %4996 = vmatmul.mubr.bf16.gmra.mrb[0].mxu0 %v4613
        %v4997 = vpop.f32.mrb[0].mxu0
        %v4998 = vadd.f32 %v4656, %v4997
        %v4999 = vpop.f32.mrb[0].mxu0
        %v5000 = vadd.f32 %v4660, %v4999
        %v5001 = vpop.f32.mrb[0].mxu0
        %v5002 = vadd.f32 %v4656, %v5001
        %v5003 = vpop.f32.mrb[0].mxu0
        %v5004 = vadd.f32 %v4660, %v5003
        %5005 = vmatprep.mubr.bf16.mxu0 %v4616
        %5006 = vmatmul.mubr.bf16.gmra.mrb[0].mxu0 %v4615
        %v5007 = vpop.f32.mrb[0].mxu0
        %v5008 = vadd.f32 %v4656, %v5007
        %v5009 = vpop.f32.mrb[0].mxu0
        %v5010 = vadd.f32 %v4660, %v5009
        %v5011 = vpop.f32.mrb[0].mxu0
        %v5012 = vadd.f32 %v4656, %v5011
        %v5013 = vpop.f32.mrb[0].mxu0
        %v5014 = vadd.f32 %v4660, %v5013
        %5015 = vdwg.mxu0
        %v5016 = vmax.f32 %v4858, 0.0
        %v5017 = vmax.f32 %v4860, 0.0
        %v5018 = vmax.f32 %v4862, 0.0
        %v5019 = vmax.f32 %v4864, 0.0
        %v5020 = vmax.f32 %v4868, 0.0
        %v5021 = vmax.f32 %v4870, 0.0
        %v5022 = vmax.f32 %v4872, 0.0
        %v5023 = vmax.f32 %v4874, 0.0
        %v5024 = vmax.f32 %v4878, 0.0
        %v5025 = vmax.f32 %v4880, 0.0
        %v5026 = vmax.f32 %v4882, 0.0
        %v5027 = vmax.f32 %v4884, 0.0
        %v5028 = vmax.f32 %v4888, 0.0
        %v5029 = vmax.f32 %v4890, 0.0
        %v5030 = vmax.f32 %v4892, 0.0
        %v5031 = vmax.f32 %v4894, 0.0
        %v5032 = vmax.f32 %v4898, 0.0
        %v5033 = vmax.f32 %v4900, 0.0
        %v5034 = vmax.f32 %v4902, 0.0
        %v5035 = vmax.f32 %v4904, 0.0
        %v5036 = vmax.f32 %v4908, 0.0
        %v5037 = vmax.f32 %v4910, 0.0
        %v5038 = vmax.f32 %v4912, 0.0
        %v5039 = vmax.f32 %v4914, 0.0
        %v5040 = vmax.f32 %v4918, 0.0
        %v5041 = vmax.f32 %v4920, 0.0
        %v5042 = vmax.f32 %v4922, 0.0
        %v5043 = vmax.f32 %v4924, 0.0
        %v5044 = vmax.f32 %v4928, 0.0
        %v5045 = vmax.f32 %v4930, 0.0
        %v5046 = vmax.f32 %v4932, 0.0
        %v5047 = vmax.f32 %v4934, 0.0
        %v5048 = vmax.f32 %v4938, 0.0
        %v5049 = vmax.f32 %v4940, 0.0
        %v5050 = vmax.f32 %v4942, 0.0
        %v5051 = vmax.f32 %v4944, 0.0
        %v5052 = vmax.f32 %v4948, 0.0
        %v5053 = vmax.f32 %v4950, 0.0
        %v5054 = vmax.f32 %v4952, 0.0
        %v5055 = vmax.f32 %v4954, 0.0
        %v5056 = vmax.f32 %v4958, 0.0
        %v5057 = vmax.f32 %v4960, 0.0
        %v5058 = vmax.f32 %v4962, 0.0
        %v5059 = vmax.f32 %v4964, 0.0
        %v5060 = vmax.f32 %v4968, 0.0
        %v5061 = vmax.f32 %v4970, 0.0
        %v5062 = vmax.f32 %v4972, 0.0
        %v5063 = vmax.f32 %v4974, 0.0
        %v5064 = vmax.f32 %v4978, 0.0
        %v5065 = vmax.f32 %v4980, 0.0
        %v5066 = vmax.f32 %v4982, 0.0
        %v5067 = vmax.f32 %v4984, 0.0
        %v5068 = vmax.f32 %v4988, 0.0
        %v5069 = vmax.f32 %v4990, 0.0
        %v5070 = vmax.f32 %v4992, 0.0
        %v5071 = vmax.f32 %v4994, 0.0
        %v5072 = vmax.f32 %v4998, 0.0
        %v5073 = vmax.f32 %v5000, 0.0
        %v5074 = vmax.f32 %v5002, 0.0
        %v5075 = vmax.f32 %v5004, 0.0
        %v5076 = vmax.f32 %v5008, 0.0
        %v5077 = vmax.f32 %v5010, 0.0
        %v5078 = vmax.f32 %v5012, 0.0
        %v5079 = vmax.f32 %v5014, 0.0
        %v5080 = vpack.c.bf16 %v5018, %v5016
        %v5081 = vpack.c.bf16 %v5019, %v5017
        %v5082 = vpack.c.bf16 %v5022, %v5020
        %v5083 = vpack.c.bf16 %v5023, %v5021
        %v5084 = vpack.c.bf16 %v5026, %v5024
        %v5085 = vpack.c.bf16 %v5027, %v5025
        %v5086 = vpack.c.bf16 %v5030, %v5028
        %v5087 = vpack.c.bf16 %v5031, %v5029
        %v5088 = vpack.c.bf16 %v5034, %v5032
        %v5089 = vpack.c.bf16 %v5035, %v5033
        %v5090 = vpack.c.bf16 %v5038, %v5036
        %v5091 = vpack.c.bf16 %v5039, %v5037
        %v5092 = vpack.c.bf16 %v5042, %v5040
        %v5093 = vpack.c.bf16 %v5043, %v5041
        %v5094 = vpack.c.bf16 %v5046, %v5044
        %v5095 = vpack.c.bf16 %v5047, %v5045
        %v5096 = vpack.c.bf16 %v5050, %v5048
        %v5097 = vpack.c.bf16 %v5051, %v5049
        %v5098 = vpack.c.bf16 %v5054, %v5052
        %v5099 = vpack.c.bf16 %v5055, %v5053
        %v5100 = vpack.c.bf16 %v5058, %v5056
        %v5101 = vpack.c.bf16 %v5059, %v5057
        %v5102 = vpack.c.bf16 %v5062, %v5060
        %v5103 = vpack.c.bf16 %v5063, %v5061
        %v5104 = vpack.c.bf16 %v5066, %v5064
        %v5105 = vpack.c.bf16 %v5067, %v5065
        %v5106 = vpack.c.bf16 %v5070, %v5068
        %v5107 = vpack.c.bf16 %v5071, %v5069
        %v5108 = vpack.c.bf16 %v5074, %v5072
        %v5109 = vpack.c.bf16 %v5075, %v5073
        %v5110 = vpack.c.bf16 %v5078, %v5076
        %v5111 = vpack.c.bf16 %v5079, %v5077
        %v5112 = vld [vmem:[%s4] sm:$0xf]
        %v5113 = vld [vmem:[%s4 + $0x4] sm:$0xf]
        %v5114 = vld [vmem:[%s4 + $0x8] sm:$0xf]
        %v5115 = vld [vmem:[%s4 + $0xc] sm:$0xf]
        %v5116 = vld [vmem:[%s4 + $0x10] sm:$0xf]
        %v5117 = vld [vmem:[%s4 + $0x14] sm:$0xf]
        %v5118 = vld [vmem:[%s4 + $0x18] sm:$0xf]
        %v5119 = vld [vmem:[%s4 + $0x1c] sm:$0xf]
        %v5120 = vld [vmem:[%s4 + $0x20] sm:$0xf]
        %v5121 = vld [vmem:[%s4 + $0x24] sm:$0xf]
        %v5122 = vld [vmem:[%s4 + $0x28] sm:$0xf]
        %v5123 = vld [vmem:[%s4 + $0x2c] sm:$0xf]
        %v5124 = vld [vmem:[%s4 + $0x30] sm:$0xf]
        %v5125 = vld [vmem:[%s4 + $0x34] sm:$0xf]
        %v5126 = vld [vmem:[%s4 + $0x38] sm:$0xf]
        %v5127 = vld [vmem:[%s4 + $0x3c] sm:$0xf]
        %v5128 = vld [vmem:[%s4 + $0x40] sm:$0xf]
        %v5129 = vld [vmem:[%s4 + $0x44] sm:$0xf]
        %v5130 = vld [vmem:[%s4 + $0x48] sm:$0xf]
        %v5131 = vld [vmem:[%s4 + $0x4c] sm:$0xf]
        %v5132 = vld [vmem:[%s4 + $0x50] sm:$0xf]
        %v5133 = vld [vmem:[%s4 + $0x54] sm:$0xf]
        %v5134 = vld [vmem:[%s4 + $0x58] sm:$0xf]
        %v5135 = vld [vmem:[%s4 + $0x5c] sm:$0xf]
        %v5136 = vld [vmem:[%s4 + $0x60] sm:$0xf]
        %v5137 = vld [vmem:[%s4 + $0x64] sm:$0xf]
        %v5138 = vld [vmem:[%s4 + $0x68] sm:$0xf]
        %v5139 = vld [vmem:[%s4 + $0x6c] sm:$0xf]
        %v5140 = vld [vmem:[%s4 + $0x70] sm:$0xf]
        %v5141 = vld [vmem:[%s4 + $0x74] sm:$0xf]
        %v5142 = vld [vmem:[%s4 + $0x78] sm:$0xf]
        %v5143 = vld [vmem:[%s4 + $0x7c] sm:$0xf]
        %v5176 = vunpack.c.l.b16 %v5112
        %v5177 = vunpack.c.l.b16 %v5113
        %v5178 = vunpack.c.l.b16 %v5114
        %v5179 = vunpack.c.l.b16 %v5115
        %v5180 = vunpack.c.l.b16 %v5116
        %v5181 = vunpack.c.l.b16 %v5117
        %v5182 = vunpack.c.l.b16 %v5118
        %v5183 = vunpack.c.l.b16 %v5119
        %v5184 = vunpack.c.l.b16 %v5120
        %v5185 = vunpack.c.l.b16 %v5121
        %v5186 = vunpack.c.l.b16 %v5122
        %v5187 = vunpack.c.l.b16 %v5123
        %v5188 = vunpack.c.l.b16 %v5124
        %v5189 = vunpack.c.l.b16 %v5125
        %v5190 = vunpack.c.l.b16 %v5126
        %v5191 = vunpack.c.l.b16 %v5127
        %v5192 = vunpack.c.l.b16 %v5128
        %v5193 = vunpack.c.l.b16 %v5129
        %v5194 = vunpack.c.l.b16 %v5130
        %v5195 = vunpack.c.l.b16 %v5131
        %v5196 = vunpack.c.l.b16 %v5132
        %v5197 = vunpack.c.l.b16 %v5133
        %v5198 = vunpack.c.l.b16 %v5134
        %v5199 = vunpack.c.l.b16 %v5135
        %v5200 = vunpack.c.l.b16 %v5136
        %v5201 = vunpack.c.l.b16 %v5137
        %v5202 = vunpack.c.l.b16 %v5138
        %v5203 = vunpack.c.l.b16 %v5139
        %v5204 = vunpack.c.l.b16 %v5140
        %v5205 = vunpack.c.l.b16 %v5141
        %v5206 = vunpack.c.l.b16 %v5142
        %v5207 = vunpack.c.l.b16 %v5143
        %v5208 = vpack.c.b16 %v5177, %v5176
        %v5209 = vpack.c.b16 %v5179, %v5178
        %v5210 = vpack.c.b16 %v5181, %v5180
        %v5211 = vpack.c.b16 %v5183, %v5182
        %v5212 = vpack.c.b16 %v5185, %v5184
        %v5213 = vpack.c.b16 %v5187, %v5186
        %v5214 = vpack.c.b16 %v5189, %v5188
        %v5215 = vpack.c.b16 %v5191, %v5190
        %v5216 = vpack.c.b16 %v5193, %v5192
        %v5217 = vpack.c.b16 %v5195, %v5194
        %v5218 = vpack.c.b16 %v5197, %v5196
        %v5219 = vpack.c.b16 %v5199, %v5198
        %v5220 = vpack.c.b16 %v5201, %v5200
        %v5221 = vpack.c.b16 %v5203, %v5202
        %v5222 = vpack.c.b16 %v5205, %v5204
        %v5223 = vpack.c.b16 %v5207, %v5206
        %5240 = vmatprep.subr.bf16.mxu0 0
        %5241 = vmatpush1.bf16.msra.mxu0 %v5208
        %5242 = vmatprep.subr.bf16.mxu0 0
        %5243 = vmatpush1.bf16.msra.mxu0 %v5209
        %5244 = vmatprep.subr.bf16.mxu0 0
        %5245 = vmatpush1.bf16.msra.mxu0 %v5210
        %5246 = vmatprep.subr.bf16.mxu0 0
        %5247 = vmatpush1.bf16.msra.mxu0 %v5211
        %5248 = vmatprep.subr.bf16.mxu0 0
        %5249 = vmatpush1.bf16.msra.mxu0 %v5212
        %5250 = vmatprep.subr.bf16.mxu0 0
        %5251 = vmatpush1.bf16.msra.mxu0 %v5213
        %5252 = vmatprep.subr.bf16.mxu0 0
        %5253 = vmatpush1.bf16.msra.mxu0 %v5214
        %5254 = vmatprep.subr.bf16.mxu0 0
        %5255 = vmatpush1.bf16.msra.mxu0 %v5215
        %5256 = vmatprep.subr.bf16.mxu0 0
        %5257 = vmatpush1.bf16.msra.mxu0 %v5216
        %5258 = vmatprep.subr.bf16.mxu0 0
        %5259 = vmatpush1.bf16.msra.mxu0 %v5217
        %5260 = vmatprep.subr.bf16.mxu0 0
        %5261 = vmatpush1.bf16.msra.mxu0 %v5218
        %5262 = vmatprep.subr.bf16.mxu0 0
        %5263 = vmatpush1.bf16.msra.mxu0 %v5219
        %5264 = vmatprep.subr.bf16.mxu0 0
        %5265 = vmatpush1.bf16.msra.mxu0 %v5220
        %5266 = vmatprep.subr.bf16.mxu0 0
        %5267 = vmatpush1.bf16.msra.mxu0 %v5221
        %5268 = vmatprep.subr.bf16.mxu0 0
        %5269 = vmatpush1.bf16.msra.mxu0 %v5222
        %5270 = vmatprep.subr.bf16.mxu0 0
        %5271 = vmatpush1.bf16.msra.mxu0 %v5223
        %5272 = vmatprep.mubr.bf16.mxu0 %v5081
        %5273 = vmatmul.mubr.bf16.gmra.mrb[0].mxu0 %v5080
        %v5274 = vpop.f32.mrb[0].mxu0
        %v5275 = vadd.f32 0.0, %v5274
        %v5276 = vpop.f32.mrb[0].mxu0
        %v5277 = vpop.f32.mrb[0].mxu0
        %v5278 = vadd.f32 0.0, %v5277
        %v5279 = vpop.f32.mrb[0].mxu0
        %5280 = vmatprep.mubr.bf16.mxu0 %v5083
        %5281 = vmatmul.mubr.bf16.gmra.mrb[0].mxu0 %v5082
        %v5282 = vpop.f32.mrb[0].mxu0
        %v5283 = vadd.f32 0.0, %v5282
        %v5284 = vpop.f32.mrb[0].mxu0
        %v5285 = vpop.f32.mrb[0].mxu0
        %v5286 = vadd.f32 0.0, %v5285
        %v5287 = vpop.f32.mrb[0].mxu0
        %5288 = vmatprep.mubr.bf16.mxu0 %v5085
        %5289 = vmatmul.mubr.bf16.gmra.mrb[0].mxu0 %v5084
        %v5290 = vpop.f32.mrb[0].mxu0
        %v5291 = vadd.f32 0.0, %v5290
        %v5292 = vpop.f32.mrb[0].mxu0
        %v5293 = vpop.f32.mrb[0].mxu0
        %v5294 = vadd.f32 0.0, %v5293
        %v5295 = vpop.f32.mrb[0].mxu0
        %5296 = vmatprep.mubr.bf16.mxu0 %v5087
        %5297 = vmatmul.mubr.bf16.gmra.mrb[0].mxu0 %v5086
        %v5298 = vpop.f32.mrb[0].mxu0
        %v5299 = vadd.f32 0.0, %v5298
        %v5300 = vpop.f32.mrb[0].mxu0
        %v5301 = vpop.f32.mrb[0].mxu0
        %v5302 = vadd.f32 0.0, %v5301
        %v5303 = vpop.f32.mrb[0].mxu0
        %5304 = vmatprep.mubr.bf16.mxu0 %v5089
        %5305 = vmatmul.mubr.bf16.gmra.mrb[0].mxu0 %v5088
        %v5306 = vpop.f32.mrb[0].mxu0
        %v5307 = vadd.f32 0.0, %v5306
        %v5308 = vpop.f32.mrb[0].mxu0
        %v5309 = vpop.f32.mrb[0].mxu0
        %v5310 = vadd.f32 0.0, %v5309
        %v5311 = vpop.f32.mrb[0].mxu0
        %5312 = vmatprep.mubr.bf16.mxu0 %v5091
        %5313 = vmatmul.mubr.bf16.gmra.mrb[0].mxu0 %v5090
        %v5314 = vpop.f32.mrb[0].mxu0
        %v5315 = vadd.f32 0.0, %v5314
        %v5316 = vpop.f32.mrb[0].mxu0
        %v5317 = vpop.f32.mrb[0].mxu0
        %v5318 = vadd.f32 0.0, %v5317
        %v5319 = vpop.f32.mrb[0].mxu0
        %5320 = vmatprep.mubr.bf16.mxu0 %v5093
        %5321 = vmatmul.mubr.bf16.gmra.mrb[0].mxu0 %v5092
        %v5322 = vpop.f32.mrb[0].mxu0
        %v5323 = vadd.f32 0.0, %v5322
        %v5324 = vpop.f32.mrb[0].mxu0
        %v5325 = vpop.f32.mrb[0].mxu0
        %v5326 = vadd.f32 0.0, %v5325
        %v5327 = vpop.f32.mrb[0].mxu0
        %5328 = vmatprep.mubr.bf16.mxu0 %v5095
        %5329 = vmatmul.mubr.bf16.gmra.mrb[0].mxu0 %v5094
        %v5330 = vpop.f32.mrb[0].mxu0
        %v5331 = vadd.f32 0.0, %v5330
        %v5332 = vpop.f32.mrb[0].mxu0
        %v5333 = vpop.f32.mrb[0].mxu0
        %v5334 = vadd.f32 0.0, %v5333
        %v5335 = vpop.f32.mrb[0].mxu0
        %5336 = vmatprep.mubr.bf16.mxu0 %v5097
        %5337 = vmatmul.mubr.bf16.gmra.mrb[0].mxu0 %v5096
        %v5338 = vpop.f32.mrb[0].mxu0
        %v5339 = vadd.f32 0.0, %v5338
        %v5340 = vpop.f32.mrb[0].mxu0
        %v5341 = vpop.f32.mrb[0].mxu0
        %v5342 = vadd.f32 0.0, %v5341
        %v5343 = vpop.f32.mrb[0].mxu0
        %5344 = vmatprep.mubr.bf16.mxu0 %v5099
        %5345 = vmatmul.mubr.bf16.gmra.mrb[0].mxu0 %v5098
        %v5346 = vpop.f32.mrb[0].mxu0
        %v5347 = vadd.f32 0.0, %v5346
        %v5348 = vpop.f32.mrb[0].mxu0
        %v5349 = vpop.f32.mrb[0].mxu0
        %v5350 = vadd.f32 0.0, %v5349
        %v5351 = vpop.f32.mrb[0].mxu0
        %5352 = vmatprep.mubr.bf16.mxu0 %v5101
        %5353 = vmatmul.mubr.bf16.gmra.mrb[0].mxu0 %v5100
        %v5354 = vpop.f32.mrb[0].mxu0
        %v5355 = vadd.f32 0.0, %v5354
        %v5356 = vpop.f32.mrb[0].mxu0
        %v5357 = vpop.f32.mrb[0].mxu0
        %v5358 = vadd.f32 0.0, %v5357
        %v5359 = vpop.f32.mrb[0].mxu0
        %5360 = vmatprep.mubr.bf16.mxu0 %v5103
        %5361 = vmatmul.mubr.bf16.gmra.mrb[0].mxu0 %v5102
        %v5362 = vpop.f32.mrb[0].mxu0
        %v5363 = vadd.f32 0.0, %v5362
        %v5364 = vpop.f32.mrb[0].mxu0
        %v5365 = vpop.f32.mrb[0].mxu0
        %v5366 = vadd.f32 0.0, %v5365
        %v5367 = vpop.f32.mrb[0].mxu0
        %5368 = vmatprep.mubr.bf16.mxu0 %v5105
        %5369 = vmatmul.mubr.bf16.gmra.mrb[0].mxu0 %v5104
        %v5370 = vpop.f32.mrb[0].mxu0
        %v5371 = vadd.f32 0.0, %v5370
        %v5372 = vpop.f32.mrb[0].mxu0
        %v5373 = vpop.f32.mrb[0].mxu0
        %v5374 = vadd.f32 0.0, %v5373
        %v5375 = vpop.f32.mrb[0].mxu0
        %5376 = vmatprep.mubr.bf16.mxu0 %v5107
        %5377 = vmatmul.mubr.bf16.gmra.mrb[0].mxu0 %v5106
        %v5378 = vpop.f32.mrb[0].mxu0
        %v5379 = vadd.f32 0.0, %v5378
        %v5380 = vpop.f32.mrb[0].mxu0
        %v5381 = vpop.f32.mrb[0].mxu0
        %v5382 = vadd.f32 0.0, %v5381
        %v5383 = vpop.f32.mrb[0].mxu0
        %5384 = vmatprep.mubr.bf16.mxu0 %v5109
        %5385 = vmatmul.mubr.bf16.gmra.mrb[0].mxu0 %v5108
        %v5386 = vpop.f32.mrb[0].mxu0
        %v5387 = vadd.f32 0.0, %v5386
        %v5388 = vpop.f32.mrb[0].mxu0
        %v5389 = vpop.f32.mrb[0].mxu0
        %v5390 = vadd.f32 0.0, %v5389
        %v5391 = vpop.f32.mrb[0].mxu0
        %5392 = vmatprep.mubr.bf16.mxu0 %v5111
        %5393 = vmatmul.mubr.bf16.gmra.mrb[0].mxu0 %v5110
        %v5394 = vpop.f32.mrb[0].mxu0
        %v5395 = vadd.f32 0.0, %v5394
        %v5396 = vpop.f32.mrb[0].mxu0
        %v5397 = vpop.f32.mrb[0].mxu0
        %v5398 = vadd.f32 0.0, %v5397
        %v5399 = vpop.f32.mrb[0].mxu0
        %5400 = vdwg.mxu0
        %v5401 = vld [vmem:[%s5] sm:$0x1]
        %v5403 = vlaneseq
        %v5404 = vshrl.u32 %v5403, 7
        %v5405 = vsub.s32 0, %v5404
        %v5406 = vrot.slane %v5401, %v5405
        %v5408 = vadd.f32 %v5275, %v5406
        %v5409 = vadd.f32 %v5278, %v5406
        %v5410 = vadd.f32 %v5283, %v5406
        %v5411 = vadd.f32 %v5286, %v5406
        %v5412 = vadd.f32 %v5291, %v5406
        %v5413 = vadd.f32 %v5294, %v5406
        %v5414 = vadd.f32 %v5299, %v5406
        %v5415 = vadd.f32 %v5302, %v5406
        %v5416 = vadd.f32 %v5307, %v5406
        %v5417 = vadd.f32 %v5310, %v5406
        %v5418 = vadd.f32 %v5315, %v5406
        %v5419 = vadd.f32 %v5318, %v5406
        %v5420 = vadd.f32 %v5323, %v5406
        %v5421 = vadd.f32 %v5326, %v5406
        %v5422 = vadd.f32 %v5331, %v5406
        %v5423 = vadd.f32 %v5334, %v5406
        %v5424 = vadd.f32 %v5339, %v5406
        %v5425 = vadd.f32 %v5342, %v5406
        %v5426 = vadd.f32 %v5347, %v5406
        %v5427 = vadd.f32 %v5350, %v5406
        %v5428 = vadd.f32 %v5355, %v5406
        %v5429 = vadd.f32 %v5358, %v5406
        %v5430 = vadd.f32 %v5363, %v5406
        %v5431 = vadd.f32 %v5366, %v5406
        %v5432 = vadd.f32 %v5371, %v5406
        %v5433 = vadd.f32 %v5374, %v5406
        %v5434 = vadd.f32 %v5379, %v5406
        %v5435 = vadd.f32 %v5382, %v5406
        %v5436 = vadd.f32 %v5387, %v5406
        %v5437 = vadd.f32 %v5390, %v5406
        %v5438 = vadd.f32 %v5395, %v5406
        %v5439 = vadd.f32 %v5398, %v5406
        %vm5440 = vcmask 64512
        %5441 = vst.msk [vmem:[%s268] sm:$0xff] %vm5440, %v5408
        %5442 = vst.msk [vmem:[%s268 + $0x8] sm:$0xff] %vm5440, %v5409
        %5443 = vst.msk [vmem:[%s268 + $0x10] sm:$0xff] %vm5440, %v5410
        %5444 = vst.msk [vmem:[%s268 + $0x18] sm:$0xff] %vm5440, %v5411
        %5445 = vst.msk [vmem:[%s268 + $0x20] sm:$0xff] %vm5440, %v5412
        %5446 = vst.msk [vmem:[%s268 + $0x28] sm:$0xff] %vm5440, %v5413
        %5447 = vst.msk [vmem:[%s268 + $0x30] sm:$0xff] %vm5440, %v5414
        %5448 = vst.msk [vmem:[%s268 + $0x38] sm:$0xff] %vm5440, %v5415
        %5449 = vst.msk [vmem:[%s268 + $0x40] sm:$0xff] %vm5440, %v5416
        %5450 = vst.msk [vmem:[%s268 + $0x48] sm:$0xff] %vm5440, %v5417
        %5451 = vst.msk [vmem:[%s268 + $0x50] sm:$0xff] %vm5440, %v5418
        %5452 = vst.msk [vmem:[%s268 + $0x58] sm:$0xff] %vm5440, %v5419
        %5453 = vst.msk [vmem:[%s268 + $0x60] sm:$0xff] %vm5440, %v5420
        %5454 = vst.msk [vmem:[%s268 + $0x68] sm:$0xff] %vm5440, %v5421
        %5455 = vst.msk [vmem:[%s268 + $0x70] sm:$0xff] %vm5440, %v5422
        %5456 = vst.msk [vmem:[%s268 + $0x78] sm:$0xff] %vm5440, %v5423
        %5457 = vst.msk [vmem:[%s268 + $0x80] sm:$0xff] %vm5440, %v5424
        %5458 = vst.msk [vmem:[%s268 + $0x88] sm:$0xff] %vm5440, %v5425
        %5459 = vst.msk [vmem:[%s268 + $0x90] sm:$0xff] %vm5440, %v5426
        %5460 = vst.msk [vmem:[%s268 + $0x98] sm:$0xff] %vm5440, %v5427
        %5461 = vst.msk [vmem:[%s268 + $0xa0] sm:$0xff] %vm5440, %v5428
        %5462 = vst.msk [vmem:[%s268 + $0xa8] sm:$0xff] %vm5440, %v5429
        %5463 = vst.msk [vmem:[%s268 + $0xb0] sm:$0xff] %vm5440, %v5430
        %5464 = vst.msk [vmem:[%s268 + $0xb8] sm:$0xff] %vm5440, %v5431
        %5465 = vst.msk [vmem:[%s268 + $0xc0] sm:$0xff] %vm5440, %v5432
        %5466 = vst.msk [vmem:[%s268 + $0xc8] sm:$0xff] %vm5440, %v5433
        %5467 = vst.msk [vmem:[%s268 + $0xd0] sm:$0xff] %vm5440, %v5434
        %5468 = vst.msk [vmem:[%s268 + $0xd8] sm:$0xff] %vm5440, %v5435
        %5469 = vst.msk [vmem:[%s268 + $0xe0] sm:$0xff] %vm5440, %v5436
        %5470 = vst.msk [vmem:[%s268 + $0xe8] sm:$0xff] %vm5440, %v5437
        %5471 = vst.msk [vmem:[%s268 + $0xf0] sm:$0xff] %vm5440, %v5438
        %5472 = vst.msk [vmem:[%s268 + $0xf8] sm:$0xff] %vm5440, %v5439
        %s5473 = smul.u32 32, %s18
        %p5474 = scmp.lt.s32.totalorder %s5473, 63
        %s5475 = scalar_select %p5474, %s5473, 63
        %s5476 = smul.addr %s5475, 8
        %s5477 = scalar_lea.vmem %s6, %s5476
        // Predicated region
        $region49: #{tpu_custom_call.1} parent=43 // pred_check
          %p5478 = pneg %p167
        $region50: #{tpu_custom_call.1} parent=43 // pred_check_branch
          %5480 = sbr.rel (%p5478) target = $region52
        $region51: #{tpu_custom_call.1} parent=43 // pred_region
          %s5481 = smul.u32 32, %s18
        $region52: #{tpu_custom_call.1} parent=43 // pred_fallthru
          _
      $region44: #{tpu_custom_call.1} parent=5 // pred_fallthru
        _
      %p5482 = scmp.le.s32.totalorder 2, %s13
      // Predicated region
      $region53: #{tpu_custom_call.1} parent=5 // pred_check
        %p5483 = pneg %p5482
      $region54: #{tpu_custom_call.1} parent=5 // pred_check_branch
        %5485 = sbr.rel (%p5483) target = $region56
      $region55: #{tpu_custom_call.1} parent=5 // pred_region
        %s5486 = ssub.s32 %s13, 2
        // Predicated region
        $region57: #{tpu_custom_call.1} parent=55 // pred_check
          %p5487 = pneg %p173
        $region58: #{tpu_custom_call.1} parent=55 // pred_check_branch
          %5489 = sbr.rel (%p5487) target = $region60
        $region59: #{tpu_custom_call.1} parent=55 // pred_region
          %s5490 = smul.u32 32, %s19
          %p5491 = scmp.lt.s32.totalorder %s5490, 63
          %s5492 = scalar_select %p5491, %s5490, 63
          %s5493 = smul.addr %s5492, 8
          %s5494 = scalar_lea.vmem %s6, %s5493
        $region60: #{tpu_custom_call.1} parent=55 // pred_fallthru
          _
      $region56: #{tpu_custom_call.1} parent=5 // pred_fallthru
        _
    $region6: #{tpu_custom_call.1} parent=1 // loop_footer
      %s17 = sadd.s32 1, %s13
    $region7: #{tpu_custom_call.1} parent=1 // loop_footer_branch
      %12 = sbr.rel target = $region3
    $region8: #{tpu_custom_call.1} parent=1 // loop_exit
      _
    %5495 = vsyncpa [#allocation3], 1
    %s5496 = scalar_lea.sflag [#allocation3], 1
    %5497 = vsyncpa %s5496, 1

</llo_original>
